<compile_context>
chip_gen: v5e
topology: v5e:2x2
jax: 0.10.0
libtpu: 0.0.40
codegen_flags: <defaults>
</compile_context>

<pallas_src>
import functools
import numpy as np

import jax
import jax.numpy as jnp
from jax.experimental import pallas as pl
from jax.experimental.pallas import tpu as pltpu


CONFIG = {
    "input_shape": (16, 16, 3),
    "class_number": 2,
    "sparse_ratio": 0.5,
    "upsample_layer": 2,
    "deconv_layer": 5,
    "use_none_layer": False,
}

# synthetic backbone channel plan
C_IN = 3
C1 = 16            # backbone stage-1 channels
C2 = 32            # backbone stage-2 channels (== midnet output channels)
C_CAT = 2 * C2     # decoder input channels: concat(main, sparse)
LANE = 128         # lane-dense padding for the final output store


# -----------------------------------------------------------------------------
# Single fused Pallas kernel
# -----------------------------------------------------------------------------
def _fused_motion_sparse_kernel(p1_ref, w1_ref, b1_ref,
                                g2_ref, w2_ref, b2_ref,
                                wm_ref, wa_ref, bm_ref,
                                gd_ref, wdm_ref, wds_ref, bd_ref,
                                up_ref, out_ref, *, sparse_ratio):
    """Whole motion_sparse forward on VMEM-resident 2-D tiles.

    p1   (2B*H1*W1, 27)            conv1 im2col patches of the stacked (main, aux) batch
    w1   (27, C1), b1 (1, C1)      conv1 weights
    g2   (9, 2B*H2*W2, 2B*H1*W1)   per-tap 0/1 gather matrices (conv2: 3x3, stride 2, pad 1)
    w2   (9, C1, C2), b2 (1, C2)   conv2 weights split per tap
    wm/wa (C2, C2), bm (1, C2)     transform_sparse 1x1 conv split over concat(main, aux)
    gd   (9, B*H2*W2, B*H2*W2)     per-tap gather matrices (decoder conv: 3x3, stride 1, pad 1)
    wdm/wds (9, C2, LANE)          decoder weights split (main / sparse half), lane-padded
    bd   (1, LANE)                 decoder bias, lane-padded
    up   (B*H*W, B*H2*W2)          block-diag kron(Rh, Rw) bilinear-upsample matrix
    out  (B*H*W, LANE)             lane-dense output; first class_number columns are real
    """
    f32 = jnp.float32

    # --- backbone stage 1: 3x3 stride-2 conv + ReLU (main+aux stacked on the row axis)
    f1 = jnp.dot(p1_ref[...], w1_ref[...], preferred_element_type=f32) + b1_ref[...]
    f1 = jnp.maximum(f1, 0.0)                                    # (2B*H1*W1, C1)

    # --- backbone stage 2: 3x3 stride-2 conv + ReLU as 9 (gather @ f1) @ W_tap matmuls
    n_taps = g2_ref.shape[0]
    acc2 = None
    for t in range(n_taps):
        gt = jnp.dot(g2_ref[t], f1, preferred_element_type=f32)          # (2B*H2*W2, C1)
        zt = jnp.dot(gt, w2_ref[t], preferred_element_type=f32)          # (2B*H2*W2, C2)
        acc2 = zt if acc2 is None else acc2 + zt
    f2 = jnp.maximum(acc2 + b2_ref[...], 0.0)                    # (2B*H2*W2, C2)

    # --- split the stacked frame axis back into main / aux features
    half = f2.shape[0] // 2
    main_f = f2[:half, :]                                        # (B*H2*W2, C2)
    aux_f = f2[half:, :]                                         # (B*H2*W2, C2)

    # --- transform_sparse: 1x1 conv on concat(main, aux) + ReLU + per-pixel sparse gate
    y = (jnp.dot(main_f, wm_ref[...], preferred_element_type=f32)
         + jnp.dot(aux_f, wa_ref[...], preferred_element_type=f32)
         + bm_ref[...])
    y = jnp.maximum(y, 0.0)
    y_max = jnp.max(y, axis=-1, keepdims=True)
    y_sparse = jnp.where(y >= sparse_ratio * y_max, y, 0.0)      # (B*H2*W2, C2)

    # --- decoder 3x3 conv on concat(main, y_sparse): split-weight form avoids in-kernel concat
    accd = None
    for t in range(n_taps):
        zt = (jnp.dot(main_f, wdm_ref[t], preferred_element_type=f32)
              + jnp.dot(y_sparse, wds_ref[t], preferred_element_type=f32))   # (B*H2*W2, LANE)
        dt = jnp.dot(gd_ref[t], zt, preferred_element_type=f32)              # (B*H2*W2, LANE)
        accd = dt if accd is None else accd + dt
    logits = accd + bd_ref[...]                                  # (B*H2*W2, LANE), classes lane-padded

    # --- fused bilinear upsample: one lane-dense matmul against block-diag kron(Rh, Rw)
    out_ref[...] = jnp.dot(up_ref[...], logits, preferred_element_type=f32)


# -----------------------------------------------------------------------------
# Constant-matrix plan (built once in numpy, batch-size specialized)
# -----------------------------------------------------------------------------
def _conv3x3_gather_taps(hi, wi, stride):
    """0/1 matrices g[t] gathering the source pixel of tap t (kh*3+kw), zero outside (pad=1)."""
    ho = (hi + 2 - 3) // stride + 1
    wo = (wi + 2 - 3) // stride + 1
    g = np.zeros((9, ho * wo, hi * wi), np.float32)
    for kh in range(3):
        for kw in range(3):
            t = kh * 3 + kw
            for oh in range(ho):
                ih = oh * stride + kh - 1
                if not 0 <= ih < hi:
                    continue
                for ow in range(wo):
                    iw = ow * stride + kw - 1
                    if not 0 <= iw < wi:
                        continue
                    g[t, oh * wo + ow, ih * wi + iw] = 1.0
    return g, ho, wo


def _bilinear_matrix(out_size, in_size):
    """Row-stochastic interpolation matrix; PyTorch bilinear, align_corners=False."""
    R = np.zeros((out_size, in_size), np.float32)
    if in_size == 1:
        R[:, 0] = 1.0
        return R
    scale = in_size / out_size
    for o in range(out_size):
        src = max((o + 0.5) * scale - 0.5, 0.0)
        i0 = min(int(np.floor(src)), in_size - 1)
        i1 = min(i0 + 1, in_size - 1)
        w = src - i0
        R[o, i0] += 1.0 - w
        R[o, i1] += w
    return R


def build_plan(config, batch_size):
    """Constant gather / upsample matrices for a fixed (input_shape, batch) deployment."""
    H, W, _ = config["input_shape"]
    n_imgs = 2 * batch_size                                     # main + aux stacked
    H1, W1 = (H - 1) // 2 + 1, (W - 1) // 2 + 1                 # conv1: 3x3, s2, pad 1
    g2, H2, W2 = _conv3x3_gather_taps(H1, W1, stride=2)         # conv2
    gd, _, _ = _conv3x3_gather_taps(H2, W2, stride=1)           # decoder conv

    eye_all = np.eye(n_imgs, dtype=np.float32)
    eye_b = np.eye(batch_size, dtype=np.float32)
    g2_bd = np.stack([np.kron(eye_all, g2[t]) for t in range(9)])   # (9, 2B*H2*W2, 2B*H1*W1)
    gd_bd = np.stack([np.kron(eye_b, gd[t]) for t in range(9)])     # (9, B*H2*W2, B*H2*W2)

    Rh = _bilinear_matrix(H, H2)
    Rw = _bilinear_matrix(W, W2)
    up = np.kron(eye_b, np.kron(Rh, Rw))                            # (B*H*W, B*H2*W2)

    return {"g2": jnp.asarray(g2_bd), "gd": jnp.asarray(gd_bd), "up": jnp.asarray(up)}


# -----------------------------------------------------------------------------
# Parameters (PyTorch-layout OIHW) and kernel-ready packing
# -----------------------------------------------------------------------------
def init_params(key, config):
    ncls = config["class_number"]
    ks = jax.random.split(key, 4)

    def w(k, shape, scale=0.1):
        return (scale * jax.random.normal(k, shape, jnp.float32)).astype(jnp.float32)

    return {
        # backbone (motion_backbone.forward_layers): two conv3x3-stride2 + ReLU stages
        "bb_w1": w(ks[0], (C1, C_IN, 3, 3)), "bb_b1": jnp.zeros((C1,), jnp.float32),
        "bb_w2": w(ks[1], (C2, C1, 3, 3)),   "bb_b2": jnp.zeros((C2,), jnp.float32),
        # midnet (transform_sparse): 1x1 conv on concat(main, aux) -> C2 channels
        "mid_w": w(ks[2], (2 * C2, C2)),     "mid_b": jnp.zeros((C2,), jnp.float32),
        # decoder (motionnet_upsample_bilinear): conv3x3 -> class_number logits
        "dec_w": w(ks[3], (ncls, C_CAT, 3, 3)),
        "dec_b": jnp.zeros((ncls,), jnp.float32),
    }


def pack_params(params, config):
    """Convert OIHW weights into the kernel's tap-stacked / lane-padded layout (once)."""
    ncls = config["class_number"]
    n_cols = ((ncls + LANE - 1) // LANE) * LANE

    w1 = params["bb_w1"].reshape(C1, C_IN * 9).T                 # rows ordered (ci, tap)
    b1 = params["bb_b1"].reshape(1, C1)

    w2 = jnp.transpose(params["bb_w2"], (2, 3, 1, 0)).reshape(9, C1, C2)   # tap = kh*3+kw
    b2 = params["bb_b2"].reshape(1, C2)

    wm = params["mid_w"][:C2]
    wa = params["mid_w"][C2:]
    bm = params["mid_b"].reshape(1, C2)

    dec = jnp.transpose(params["dec_w"], (2, 3, 1, 0)).reshape(9, C_CAT, ncls)
    pad = ((0, 0), (0, 0), (0, n_cols - ncls))
    wdm = jnp.pad(dec[:, :C2, :], pad)                           # main-feature half
    wds = jnp.pad(dec[:, C2:, :], pad)                           # sparse-feature half
    bd = jnp.pad(params["dec_b"].reshape(1, ncls), ((0, 0), (0, n_cols - ncls)))

    return {"w1": w1, "b1": b1, "w2": w2, "b2": b2, "wm": wm, "wa": wa, "bm": bm,
            "wdm": wdm, "wds": wds, "bd": bd}


# -----------------------------------------------------------------------------
# Forward
# -----------------------------------------------------------------------------
def _conv1_patches(x_nhwc):
    """im2col for the 3x3 stride-2 pad-1 first conv; columns ordered (cin, tap)."""
    N, H, W, C = x_nhwc.shape
    xp = jnp.pad(x_nhwc, ((0, 0), (1, 1), (1, 1), (0, 0)))
    Ho = (H - 1) // 2 + 1
    Wo = (W - 1) // 2 + 1
    cols = []
    for r in range(3):
        for c in range(3):
            cols.append(xp[:, r:r + 2 * Ho:2, c:c + 2 * Wo:2, :])
    p = jnp.stack(cols, axis=-1)                                 # (N, Ho, Wo, C, 9)
    return p.reshape(N * Ho * Wo, C * 9)


def motion_sparse_forward(packed, plan, img_main, img_aux, *, config):
    """motion_sparse.forward((img_main, img_aux)) -> {'masks': [(B, class_number, H, W)]}."""
    H, W, _ = config["input_shape"]
    ncls = config["class_number"]
    B = img_main.shape[0]

    # one backbone pass: stack main+aux frames along the batch axis
    x = jnp.concatenate([img_main, img_aux], axis=0)             # (2B, 3, H, W)
    x = jnp.transpose(x, (0, 2, 3, 1)).astype(jnp.float32)       # NHWC
    p1 = _conv1_patches(x)                                       # (2B*H1*W1, 27)

    n_cols = packed["bd"].shape[1]
    vmem = pl.BlockSpec(memory_space=pltpu.MemorySpace.VMEM)
    out2d = pl.pallas_call(
        functools.partial(_fused_motion_sparse_kernel,
                          sparse_ratio=config["sparse_ratio"]),
        out_shape=jax.ShapeDtypeStruct((B * H * W, n_cols), jnp.float32),
        in_specs=[vmem] * 14,
        out_specs=vmem,
    )(p1, packed["w1"], packed["b1"],
      plan["g2"], packed["w2"], packed["b2"],
      packed["wm"], packed["wa"], packed["bm"],
      plan["gd"], packed["wdm"], packed["wds"], packed["bd"],
      plan["up"])

    # rows are (b, ho, wo); drop lane padding and go back to NCHW
    y = out2d[:, :ncls].reshape(B, H, W, ncls)
    y = jnp.transpose(y, (0, 3, 1, 2))
    return {"masks": [y]}


# -----------------------------------------------------------------------------
# Straightforward jnp reference (previous-version style) for validation
# -----------------------------------------------------------------------------
def _conv2d_ref(x_nhwc, w_oihw, b, *, stride, relu):
    O, I, kh, kw = w_oihw.shape
    N, H, W, C = x_nhwc.shape
    xp = jnp.pad(x_nhwc, ((0, 0), (1, 1), (1, 1), (0, 0)))
    Ho = (H + 2 - kh) // stride + 1
    Wo = (W + 2 - kw) // stride + 1
    cols = []
    for r in range(kh):
        for c in range(kw):
            cols.append(xp[:, r:r + stride * Ho:stride, c:c + stride * Wo:stride, :])
    p = jnp.stack(cols, axis=-1).reshape(N * Ho * Wo, C * kh * kw)
    y = p @ w_oihw.reshape(O, -1).T + b
    if relu:
        y = jnp.maximum(y, 0.0)
    return y.reshape(N, Ho, Wo, O)


def _reference_forward(params, img_main, img_aux, config):
    H, W, _ = config["input_shape"]
    ratio = config["sparse_ratio"]

    def backbone(img):
        x = jnp.transpose(img, (0, 2, 3, 1)).astype(jnp.float32)
        x = _conv2d_ref(x, params["bb_w1"], params["bb_b1"], stride=2, relu=True)
        x = _conv2d_ref(x, params["bb_w2"], params["bb_b2"], stride=2, relu=True)
        return x

    main = backbone(img_main)
    aux = backbone(img_aux)
    B, Hf, Wf, C = main.shape
    m2 = main.reshape(-1, C)
    a2 = aux.reshape(-1, C)
    y = jnp.maximum(m2 @ params["mid_w"][:C] + a2 @ params["mid_w"][C:]
                    + params["mid_b"], 0.0)
    y_max = jnp.max(y, axis=-1, keepdims=True)
    ys = jnp.where(y >= ratio * y_max, y, 0.0)
    feat = jnp.concatenate([m2, ys], axis=-1).reshape(B, Hf, Wf, 2 * C)
    logits = _conv2d_ref(feat, params["dec_w"], params["dec_b"], stride=1, relu=False)
    Rh = jnp.asarray(_bilinear_matrix(H, Hf))
    Rw = jnp.asarray(_bilinear_matrix(W, Wf))
    up = jnp.einsum("oh,bhwc->bowc", Rh, logits)
    up = jnp.einsum("pw,bowc->bopc", Rw, up)
    return jnp.transpose(up, (0, 3, 1, 2))


# -----------------------------------------------------------------------------
if __name__ == "__main__":
    key = jax.random.PRNGKey(0)
    k_main, k_aux, k_params = jax.random.split(key, 3)

    B = 2
    H, W, Cin = CONFIG["input_shape"]
    ncls = CONFIG["class_number"]
    img_main = jax.random.normal(k_main, (B, Cin, H, W), jnp.float32)
    img_aux = jax.random.normal(k_aux, (B, Cin, H, W), jnp.float32)

    raw_params = init_params(k_params, CONFIG)
    packed = pack_params(raw_params, CONFIG)
    plan = build_plan(CONFIG, B)

    fwd = jax.jit(functools.partial(motion_sparse_forward, config=CONFIG))
    out = fwd(packed, plan, img_main, img_aux)
    y = out["masks"][0]
    jax.block_until_ready(y)

    assert y.shape == (B, ncls, H, W), y.shape
    assert y.dtype == jnp.float32
    assert bool(jnp.all(jnp.isfinite(y)))

    # validate the fused single-kernel forward against the straightforward jnp reference
    with jax.default_matmul_precision("float32"):
        y_ref = _reference_forward(raw_params, img_main, img_aux, CONFIG)
    max_err = float(jnp.max(jnp.abs(y - y_ref)))
    assert max_err < 3e-2, f"kernel/reference mismatch: max abs err {max_err}"

    print("KERNEL_OK")
</pallas_src>

<mosaic_0001>
module attributes {stable_mosaic.version = 11 : i64} {
  func.func @_fused_motion_sparse_kernel(%arg0: memref<256x27xf32, #tpu.memory_space<vmem>>, %arg1: memref<27x16xf32, #tpu.memory_space<vmem>>, %arg2: memref<1x16xf32, #tpu.memory_space<vmem>>, %arg3: memref<9x64x256xf32, #tpu.memory_space<vmem>>, %arg4: memref<9x16x32xf32, #tpu.memory_space<vmem>>, %arg5: memref<1x32xf32, #tpu.memory_space<vmem>>, %arg6: memref<32x32xf32, #tpu.memory_space<vmem>>, %arg7: memref<32x32xf32, #tpu.memory_space<vmem>>, %arg8: memref<1x32xf32, #tpu.memory_space<vmem>>, %arg9: memref<9x32x32xf32, #tpu.memory_space<vmem>>, %arg10: memref<9x32x128xf32, #tpu.memory_space<vmem>>, %arg11: memref<9x32x128xf32, #tpu.memory_space<vmem>>, %arg12: memref<1x128xf32, #tpu.memory_space<vmem>>, %arg13: memref<512x32xf32, #tpu.memory_space<vmem>>, %arg14: memref<512x128xf32, #tpu.memory_space<vmem>>) attributes {dimension_semantics = [], scalar_prefetch = 0 : i64, scratch_operands = 0 : i64, tpu.core_type = #tpu.core_type<tc>} {
    %c0 = arith.constant 0 : index
    %c0_0 = arith.constant 0 : index
    %0 = vector.load %arg0[%c0, %c0_0] : memref<256x27xf32, #tpu.memory_space<vmem>>, vector<256x27xf32>
    %c0_1 = arith.constant 0 : index
    %c0_2 = arith.constant 0 : index
    %1 = vector.load %arg1[%c0_1, %c0_2] : memref<27x16xf32, #tpu.memory_space<vmem>>, vector<27x16xf32>
    %cst = arith.constant dense<0.000000e+00> : vector<256x16xf32>
    %2 = tpu.matmul %0, %1, %cst {dimension_numbers = #tpu.dot_dimension_numbers<[1], [0], [0], [1], [0, 0, 1, 1], [], []>} : vector<256x27xf32>, vector<27x16xf32>, vector<256x16xf32> -> vector<256x16xf32>
    %c0_3 = arith.constant 0 : index
    %c0_4 = arith.constant 0 : index
    %3 = vector.load %arg2[%c0_3, %c0_4] : memref<1x16xf32, #tpu.memory_space<vmem>>, vector<1x16xf32>
    %4 = vector.broadcast %3 : vector<1x16xf32> to vector<256x16xf32>
    %5 = arith.addf %2, %4 : vector<256x16xf32>
    %cst_5 = arith.constant 0.000000e+00 : f32
    %6 = vector.broadcast %cst_5 : f32 to vector<256x16xf32>
    %7 = arith.maximumf %5, %6 : vector<256x16xf32>
    %c0_6 = arith.constant 0 : index
    %c0_7 = arith.constant 0 : index
    %c0_8 = arith.constant 0 : index
    %8 = vector.load %arg3[%c0_6, %c0_7, %c0_8] : memref<9x64x256xf32, #tpu.memory_space<vmem>>, vector<1x64x256xf32>
    %9 = vector.shape_cast %8 : vector<1x64x256xf32> to vector<64x256xf32>
    %cst_9 = arith.constant dense<0.000000e+00> : vector<64x16xf32>
    %10 = tpu.matmul %9, %7, %cst_9 {dimension_numbers = #tpu.dot_dimension_numbers<[1], [0], [0], [1], [0, 0, 1, 1], [], []>} : vector<64x256xf32>, vector<256x16xf32>, vector<64x16xf32> -> vector<64x16xf32>
    %c0_10 = arith.constant 0 : index
    %c0_11 = arith.constant 0 : index
    %c0_12 = arith.constant 0 : index
    %11 = vector.load %arg4[%c0_10, %c0_11, %c0_12] : memref<9x16x32xf32, #tpu.memory_space<vmem>>, vector<1x16x32xf32>
    %12 = vector.shape_cast %11 : vector<1x16x32xf32> to vector<16x32xf32>
    %cst_13 = arith.constant dense<0.000000e+00> : vector<64x32xf32>
    %13 = tpu.matmul %10, %12, %cst_13 {dimension_numbers = #tpu.dot_dimension_numbers<[1], [0], [0], [1], [0, 0, 1, 1], [], []>} : vector<64x16xf32>, vector<16x32xf32>, vector<64x32xf32> -> vector<64x32xf32>
    %c1 = arith.constant 1 : index
    %c0_14 = arith.constant 0 : index
    %c0_15 = arith.constant 0 : index
    %14 = vector.load %arg3[%c1, %c0_14, %c0_15] : memref<9x64x256xf32, #tpu.memory_space<vmem>>, vector<1x64x256xf32>
    %15 = vector.shape_cast %14 : vector<1x64x256xf32> to vector<64x256xf32>
    %cst_16 = arith.constant dense<0.000000e+00> : vector<64x16xf32>
    %16 = tpu.matmul %15, %7, %cst_16 {dimension_numbers = #tpu.dot_dimension_numbers<[1], [0], [0], [1], [0, 0, 1, 1], [], []>} : vector<64x256xf32>, vector<256x16xf32>, vector<64x16xf32> -> vector<64x16xf32>
    %c1_17 = arith.constant 1 : index
    %c0_18 = arith.constant 0 : index
    %c0_19 = arith.constant 0 : index
    %17 = vector.load %arg4[%c1_17, %c0_18, %c0_19] : memref<9x16x32xf32, #tpu.memory_space<vmem>>, vector<1x16x32xf32>
    %18 = vector.shape_cast %17 : vector<1x16x32xf32> to vector<16x32xf32>
    %cst_20 = arith.constant dense<0.000000e+00> : vector<64x32xf32>
    %19 = tpu.matmul %16, %18, %cst_20 {dimension_numbers = #tpu.dot_dimension_numbers<[1], [0], [0], [1], [0, 0, 1, 1], [], []>} : vector<64x16xf32>, vector<16x32xf32>, vector<64x32xf32> -> vector<64x32xf32>
    %20 = arith.addf %13, %19 : vector<64x32xf32>
    %c2 = arith.constant 2 : index
    %c0_21 = arith.constant 0 : index
    %c0_22 = arith.constant 0 : index
    %21 = vector.load %arg3[%c2, %c0_21, %c0_22] : memref<9x64x256xf32, #tpu.memory_space<vmem>>, vector<1x64x256xf32>
    %22 = vector.shape_cast %21 : vector<1x64x256xf32> to vector<64x256xf32>
    %cst_23 = arith.constant dense<0.000000e+00> : vector<64x16xf32>
    %23 = tpu.matmul %22, %7, %cst_23 {dimension_numbers = #tpu.dot_dimension_numbers<[1], [0], [0], [1], [0, 0, 1, 1], [], []>} : vector<64x256xf32>, vector<256x16xf32>, vector<64x16xf32> -> vector<64x16xf32>
    %c2_24 = arith.constant 2 : index
    %c0_25 = arith.constant 0 : index
    %c0_26 = arith.constant 0 : index
    %24 = vector.load %arg4[%c2_24, %c0_25, %c0_26] : memref<9x16x32xf32, #tpu.memory_space<vmem>>, vector<1x16x32xf32>
    %25 = vector.shape_cast %24 : vector<1x16x32xf32> to vector<16x32xf32>
    %cst_27 = arith.constant dense<0.000000e+00> : vector<64x32xf32>
    %26 = tpu.matmul %23, %25, %cst_27 {dimension_numbers = #tpu.dot_dimension_numbers<[1], [0], [0], [1], [0, 0, 1, 1], [], []>} : vector<64x16xf32>, vector<16x32xf32>, vector<64x32xf32> -> vector<64x32xf32>
    %27 = arith.addf %20, %26 : vector<64x32xf32>
    %c3 = arith.constant 3 : index
    %c0_28 = arith.constant 0 : index
    %c0_29 = arith.constant 0 : index
    %28 = vector.load %arg3[%c3, %c0_28, %c0_29] : memref<9x64x256xf32, #tpu.memory_space<vmem>>, vector<1x64x256xf32>
    %29 = vector.shape_cast %28 : vector<1x64x256xf32> to vector<64x256xf32>
    %cst_30 = arith.constant dense<0.000000e+00> : vector<64x16xf32>
    %30 = tpu.matmul %29, %7, %cst_30 {dimension_numbers = #tpu.dot_dimension_numbers<[1], [0], [0], [1], [0, 0, 1, 1], [], []>} : vector<64x256xf32>, vector<256x16xf32>, vector<64x16xf32> -> vector<64x16xf32>
    %c3_31 = arith.constant 3 : index
    %c0_32 = arith.constant 0 : index
    %c0_33 = arith.constant 0 : index
    %31 = vector.load %arg4[%c3_31, %c0_32, %c0_33] : memref<9x16x32xf32, #tpu.memory_space<vmem>>, vector<1x16x32xf32>
    %32 = vector.shape_cast %31 : vector<1x16x32xf32> to vector<16x32xf32>
    %cst_34 = arith.constant dense<0.000000e+00> : vector<64x32xf32>
    %33 = tpu.matmul %30, %32, %cst_34 {dimension_numbers = #tpu.dot_dimension_numbers<[1], [0], [0], [1], [0, 0, 1, 1], [], []>} : vector<64x16xf32>, vector<16x32xf32>, vector<64x32xf32> -> vector<64x32xf32>
    %34 = arith.addf %27, %33 : vector<64x32xf32>
    %c4 = arith.constant 4 : index
    %c0_35 = arith.constant 0 : index
    %c0_36 = arith.constant 0 : index
    %35 = vector.load %arg3[%c4, %c0_35, %c0_36] : memref<9x64x256xf32, #tpu.memory_space<vmem>>, vector<1x64x256xf32>
    %36 = vector.shape_cast %35 : vector<1x64x256xf32> to vector<64x256xf32>
    %cst_37 = arith.constant dense<0.000000e+00> : vector<64x16xf32>
    %37 = tpu.matmul %36, %7, %cst_37 {dimension_numbers = #tpu.dot_dimension_numbers<[1], [0], [0], [1], [0, 0, 1, 1], [], []>} : vector<64x256xf32>, vector<256x16xf32>, vector<64x16xf32> -> vector<64x16xf32>
    %c4_38 = arith.constant 4 : index
    %c0_39 = arith.constant 0 : index
    %c0_40 = arith.constant 0 : index
    %38 = vector.load %arg4[%c4_38, %c0_39, %c0_40] : memref<9x16x32xf32, #tpu.memory_space<vmem>>, vector<1x16x32xf32>
    %39 = vector.shape_cast %38 : vector<1x16x32xf32> to vector<16x32xf32>
    %cst_41 = arith.constant dense<0.000000e+00> : vector<64x32xf32>
    %40 = tpu.matmul %37, %39, %cst_41 {dimension_numbers = #tpu.dot_dimension_numbers<[1], [0], [0], [1], [0, 0, 1, 1], [], []>} : vector<64x16xf32>, vector<16x32xf32>, vector<64x32xf32> -> vector<64x32xf32>
    %41 = arith.addf %34, %40 : vector<64x32xf32>
    %c5 = arith.constant 5 : index
    %c0_42 = arith.constant 0 : index
    %c0_43 = arith.constant 0 : index
    %42 = vector.load %arg3[%c5, %c0_42, %c0_43] : memref<9x64x256xf32, #tpu.memory_space<vmem>>, vector<1x64x256xf32>
    %43 = vector.shape_cast %42 : vector<1x64x256xf32> to vector<64x256xf32>
    %cst_44 = arith.constant dense<0.000000e+00> : vector<64x16xf32>
    %44 = tpu.matmul %43, %7, %cst_44 {dimension_numbers = #tpu.dot_dimension_numbers<[1], [0], [0], [1], [0, 0, 1, 1], [], []>} : vector<64x256xf32>, vector<256x16xf32>, vector<64x16xf32> -> vector<64x16xf32>
    %c5_45 = arith.constant 5 : index
    %c0_46 = arith.constant 0 : index
    %c0_47 = arith.constant 0 : index
    %45 = vector.load %arg4[%c5_45, %c0_46, %c0_47] : memref<9x16x32xf32, #tpu.memory_space<vmem>>, vector<1x16x32xf32>
    %46 = vector.shape_cast %45 : vector<1x16x32xf32> to vector<16x32xf32>
    %cst_48 = arith.constant dense<0.000000e+00> : vector<64x32xf32>
    %47 = tpu.matmul %44, %46, %cst_48 {dimension_numbers = #tpu.dot_dimension_numbers<[1], [0], [0], [1], [0, 0, 1, 1], [], []>} : vector<64x16xf32>, vector<16x32xf32>, vector<64x32xf32> -> vector<64x32xf32>
    %48 = arith.addf %41, %47 : vector<64x32xf32>
    %c6 = arith.constant 6 : index
    %c0_49 = arith.constant 0 : index
    %c0_50 = arith.constant 0 : index
    %49 = vector.load %arg3[%c6, %c0_49, %c0_50] : memref<9x64x256xf32, #tpu.memory_space<vmem>>, vector<1x64x256xf32>
    %50 = vector.shape_cast %49 : vector<1x64x256xf32> to vector<64x256xf32>
    %cst_51 = arith.constant dense<0.000000e+00> : vector<64x16xf32>
    %51 = tpu.matmul %50, %7, %cst_51 {dimension_numbers = #tpu.dot_dimension_numbers<[1], [0], [0], [1], [0, 0, 1, 1], [], []>} : vector<64x256xf32>, vector<256x16xf32>, vector<64x16xf32> -> vector<64x16xf32>
    %c6_52 = arith.constant 6 : index
    %c0_53 = arith.constant 0 : index
    %c0_54 = arith.constant 0 : index
    %52 = vector.load %arg4[%c6_52, %c0_53, %c0_54] : memref<9x16x32xf32, #tpu.memory_space<vmem>>, vector<1x16x32xf32>
    %53 = vector.shape_cast %52 : vector<1x16x32xf32> to vector<16x32xf32>
    %cst_55 = arith.constant dense<0.000000e+00> : vector<64x32xf32>
    %54 = tpu.matmul %51, %53, %cst_55 {dimension_numbers = #tpu.dot_dimension_numbers<[1], [0], [0], [1], [0, 0, 1, 1], [], []>} : vector<64x16xf32>, vector<16x32xf32>, vector<64x32xf32> -> vector<64x32xf32>
    %55 = arith.addf %48, %54 : vector<64x32xf32>
    %c7 = arith.constant 7 : index
    %c0_56 = arith.constant 0 : index
    %c0_57 = arith.constant 0 : index
    %56 = vector.load %arg3[%c7, %c0_56, %c0_57] : memref<9x64x256xf32, #tpu.memory_space<vmem>>, vector<1x64x256xf32>
    %57 = vector.shape_cast %56 : vector<1x64x256xf32> to vector<64x256xf32>
    %cst_58 = arith.constant dense<0.000000e+00> : vector<64x16xf32>
    %58 = tpu.matmul %57, %7, %cst_58 {dimension_numbers = #tpu.dot_dimension_numbers<[1], [0], [0], [1], [0, 0, 1, 1], [], []>} : vector<64x256xf32>, vector<256x16xf32>, vector<64x16xf32> -> vector<64x16xf32>
    %c7_59 = arith.constant 7 : index
    %c0_60 = arith.constant 0 : index
    %c0_61 = arith.constant 0 : index
    %59 = vector.load %arg4[%c7_59, %c0_60, %c0_61] : memref<9x16x32xf32, #tpu.memory_space<vmem>>, vector<1x16x32xf32>
    %60 = vector.shape_cast %59 : vector<1x16x32xf32> to vector<16x32xf32>
    %cst_62 = arith.constant dense<0.000000e+00> : vector<64x32xf32>
    %61 = tpu.matmul %58, %60, %cst_62 {dimension_numbers = #tpu.dot_dimension_numbers<[1], [0], [0], [1], [0, 0, 1, 1], [], []>} : vector<64x16xf32>, vector<16x32xf32>, vector<64x32xf32> -> vector<64x32xf32>
    %62 = arith.addf %55, %61 : vector<64x32xf32>
    %c8 = arith.constant 8 : index
    %c0_63 = arith.constant 0 : index
    %c0_64 = arith.constant 0 : index
    %63 = vector.load %arg3[%c8, %c0_63, %c0_64] : memref<9x64x256xf32, #tpu.memory_space<vmem>>, vector<1x64x256xf32>
    %64 = vector.shape_cast %63 : vector<1x64x256xf32> to vector<64x256xf32>
    %cst_65 = arith.constant dense<0.000000e+00> : vector<64x16xf32>
    %65 = tpu.matmul %64, %7, %cst_65 {dimension_numbers = #tpu.dot_dimension_numbers<[1], [0], [0], [1], [0, 0, 1, 1], [], []>} : vector<64x256xf32>, vector<256x16xf32>, vector<64x16xf32> -> vector<64x16xf32>
    %c8_66 = arith.constant 8 : index
    %c0_67 = arith.constant 0 : index
    %c0_68 = arith.constant 0 : index
    %66 = vector.load %arg4[%c8_66, %c0_67, %c0_68] : memref<9x16x32xf32, #tpu.memory_space<vmem>>, vector<1x16x32xf32>
    %67 = vector.shape_cast %66 : vector<1x16x32xf32> to vector<16x32xf32>
    %cst_69 = arith.constant dense<0.000000e+00> : vector<64x32xf32>
    %68 = tpu.matmul %65, %67, %cst_69 {dimension_numbers = #tpu.dot_dimension_numbers<[1], [0], [0], [1], [0, 0, 1, 1], [], []>} : vector<64x16xf32>, vector<16x32xf32>, vector<64x32xf32> -> vector<64x32xf32>
    %69 = arith.addf %62, %68 : vector<64x32xf32>
    %c0_70 = arith.constant 0 : index
    %c0_71 = arith.constant 0 : index
    %70 = vector.load %arg5[%c0_70, %c0_71] : memref<1x32xf32, #tpu.memory_space<vmem>>, vector<1x32xf32>
    %71 = vector.broadcast %70 : vector<1x32xf32> to vector<64x32xf32>
    %72 = arith.addf %69, %71 : vector<64x32xf32>
    %cst_72 = arith.constant 0.000000e+00 : f32
    %73 = vector.broadcast %cst_72 : f32 to vector<64x32xf32>
    %74 = arith.maximumf %72, %73 : vector<64x32xf32>
    %75 = vector.extract_strided_slice %74 {offsets = [0, 0], sizes = [32, 32], strides = [1, 1]} : vector<64x32xf32> to vector<32x32xf32>
    %76 = vector.extract_strided_slice %74 {offsets = [32, 0], sizes = [32, 32], strides = [1, 1]} : vector<64x32xf32> to vector<32x32xf32>
    %c0_73 = arith.constant 0 : index
    %c0_74 = arith.constant 0 : index
    %77 = vector.load %arg6[%c0_73, %c0_74] : memref<32x32xf32, #tpu.memory_space<vmem>>, vector<32x32xf32>
    %cst_75 = arith.constant dense<0.000000e+00> : vector<32x32xf32>
    %78 = tpu.matmul %75, %77, %cst_75 {dimension_numbers = #tpu.dot_dimension_numbers<[1], [0], [0], [1], [0, 0, 1, 1], [], []>} : vector<32x32xf32>, vector<32x32xf32>, vector<32x32xf32> -> vector<32x32xf32>
    %c0_76 = arith.constant 0 : index
    %c0_77 = arith.constant 0 : index
    %79 = vector.load %arg7[%c0_76, %c0_77] : memref<32x32xf32, #tpu.memory_space<vmem>>, vector<32x32xf32>
    %cst_78 = arith.constant dense<0.000000e+00> : vector<32x32xf32>
    %80 = tpu.matmul %76, %79, %cst_78 {dimension_numbers = #tpu.dot_dimension_numbers<[1], [0], [0], [1], [0, 0, 1, 1], [], []>} : vector<32x32xf32>, vector<32x32xf32>, vector<32x32xf32> -> vector<32x32xf32>
    %81 = arith.addf %78, %80 : vector<32x32xf32>
    %c0_79 = arith.constant 0 : index
    %c0_80 = arith.constant 0 : index
    %82 = vector.load %arg8[%c0_79, %c0_80] : memref<1x32xf32, #tpu.memory_space<vmem>>, vector<1x32xf32>
    %83 = vector.broadcast %82 : vector<1x32xf32> to vector<32x32xf32>
    %84 = arith.addf %81, %83 : vector<32x32xf32>
    %cst_81 = arith.constant 0.000000e+00 : f32
    %85 = vector.broadcast %cst_81 : f32 to vector<32x32xf32>
    %86 = arith.maximumf %84, %85 : vector<32x32xf32>
    %cst_82 = arith.constant dense<0xFF800000> : vector<32xf32>
    %87 = vector.multi_reduction <maximumf>, %86, %cst_82 [1] : vector<32x32xf32> to vector<32xf32>
    %88 = vector.shape_cast %87 : vector<32xf32> to vector<32x1xf32>
    %cst_83 = arith.constant 5.000000e-01 : f32
    %89 = vector.broadcast %cst_83 : f32 to vector<32x1xf32>
    %90 = arith.mulf %89, %88 : vector<32x1xf32>
    %91 = vector.broadcast %90 : vector<32x1xf32> to vector<32x32xf32>
    %92 = arith.cmpf oge, %86, %91 : vector<32x32xf32>
    %cst_84 = arith.constant 0.000000e+00 : f32
    %93 = vector.broadcast %cst_84 : f32 to vector<32x32xf32>
    %94 = arith.select %92, %86, %93 : vector<32x32xi1>, vector<32x32xf32>
    %c0_85 = arith.constant 0 : index
    %c0_86 = arith.constant 0 : index
    %c0_87 = arith.constant 0 : index
    %95 = vector.load %arg10[%c0_85, %c0_86, %c0_87] : memref<9x32x128xf32, #tpu.memory_space<vmem>>, vector<1x32x128xf32>
    %96 = vector.shape_cast %95 : vector<1x32x128xf32> to vector<32x128xf32>
    %cst_88 = arith.constant dense<0.000000e+00> : vector<32x128xf32>
    %97 = tpu.matmul %75, %96, %cst_88 {dimension_numbers = #tpu.dot_dimension_numbers<[1], [0], [0], [1], [0, 0, 1, 1], [], []>} : vector<32x32xf32>, vector<32x128xf32>, vector<32x128xf32> -> vector<32x128xf32>
    %c0_89 = arith.constant 0 : index
    %c0_90 = arith.constant 0 : index
    %c0_91 = arith.constant 0 : index
    %98 = vector.load %arg11[%c0_89, %c0_90, %c0_91] : memref<9x32x128xf32, #tpu.memory_space<vmem>>, vector<1x32x128xf32>
    %99 = vector.shape_cast %98 : vector<1x32x128xf32> to vector<32x128xf32>
    %cst_92 = arith.constant dense<0.000000e+00> : vector<32x128xf32>
    %100 = tpu.matmul %94, %99, %cst_92 {dimension_numbers = #tpu.dot_dimension_numbers<[1], [0], [0], [1], [0, 0, 1, 1], [], []>} : vector<32x32xf32>, vector<32x128xf32>, vector<32x128xf32> -> vector<32x128xf32>
    %101 = arith.addf %97, %100 : vector<32x128xf32>
    %c0_93 = arith.constant 0 : index
    %c0_94 = arith.constant 0 : index
    %c0_95 = arith.constant 0 : index
    %102 = vector.load %arg9[%c0_93, %c0_94, %c0_95] : memref<9x32x32xf32, #tpu.memory_space<vmem>>, vector<1x32x32xf32>
    %103 = vector.shape_cast %102 : vector<1x32x32xf32> to vector<32x32xf32>
    %cst_96 = arith.constant dense<0.000000e+00> : vector<32x128xf32>
    %104 = tpu.matmul %103, %101, %cst_96 {dimension_numbers = #tpu.dot_dimension_numbers<[1], [0], [0], [1], [0, 0, 1, 1], [], []>} : vector<32x32xf32>, vector<32x128xf32>, vector<32x128xf32> -> vector<32x128xf32>
    %c1_97 = arith.constant 1 : index
    %c0_98 = arith.constant 0 : index
    %c0_99 = arith.constant 0 : index
    %105 = vector.load %arg10[%c1_97, %c0_98, %c0_99] : memref<9x32x128xf32, #tpu.memory_space<vmem>>, vector<1x32x128xf32>
    %106 = vector.shape_cast %105 : vector<1x32x128xf32> to vector<32x128xf32>
    %cst_100 = arith.constant dense<0.000000e+00> : vector<32x128xf32>
    %107 = tpu.matmul %75, %106, %cst_100 {dimension_numbers = #tpu.dot_dimension_numbers<[1], [0], [0], [1], [0, 0, 1, 1], [], []>} : vector<32x32xf32>, vector<32x128xf32>, vector<32x128xf32> -> vector<32x128xf32>
    %c1_101 = arith.constant 1 : index
    %c0_102 = arith.constant 0 : index
    %c0_103 = arith.constant 0 : index
    %108 = vector.load %arg11[%c1_101, %c0_102, %c0_103] : memref<9x32x128xf32, #tpu.memory_space<vmem>>, vector<1x32x128xf32>
    %109 = vector.shape_cast %108 : vector<1x32x128xf32> to vector<32x128xf32>
    %cst_104 = arith.constant dense<0.000000e+00> : vector<32x128xf32>
    %110 = tpu.matmul %94, %109, %cst_104 {dimension_numbers = #tpu.dot_dimension_numbers<[1], [0], [0], [1], [0, 0, 1, 1], [], []>} : vector<32x32xf32>, vector<32x128xf32>, vector<32x128xf32> -> vector<32x128xf32>
    %111 = arith.addf %107, %110 : vector<32x128xf32>
    %c1_105 = arith.constant 1 : index
    %c0_106 = arith.constant 0 : index
    %c0_107 = arith.constant 0 : index
    %112 = vector.load %arg9[%c1_105, %c0_106, %c0_107] : memref<9x32x32xf32, #tpu.memory_space<vmem>>, vector<1x32x32xf32>
    %113 = vector.shape_cast %112 : vector<1x32x32xf32> to vector<32x32xf32>
    %cst_108 = arith.constant dense<0.000000e+00> : vector<32x128xf32>
    %114 = tpu.matmul %113, %111, %cst_108 {dimension_numbers = #tpu.dot_dimension_numbers<[1], [0], [0], [1], [0, 0, 1, 1], [], []>} : vector<32x32xf32>, vector<32x128xf32>, vector<32x128xf32> -> vector<32x128xf32>
    %115 = arith.addf %104, %114 : vector<32x128xf32>
    %c2_109 = arith.constant 2 : index
    %c0_110 = arith.constant 0 : index
    %c0_111 = arith.constant 0 : index
    %116 = vector.load %arg10[%c2_109, %c0_110, %c0_111] : memref<9x32x128xf32, #tpu.memory_space<vmem>>, vector<1x32x128xf32>
    %117 = vector.shape_cast %116 : vector<1x32x128xf32> to vector<32x128xf32>
    %cst_112 = arith.constant dense<0.000000e+00> : vector<32x128xf32>
    %118 = tpu.matmul %75, %117, %cst_112 {dimension_numbers = #tpu.dot_dimension_numbers<[1], [0], [0], [1], [0, 0, 1, 1], [], []>} : vector<32x32xf32>, vector<32x128xf32>, vector<32x128xf32> -> vector<32x128xf32>
    %c2_113 = arith.constant 2 : index
    %c0_114 = arith.constant 0 : index
    %c0_115 = arith.constant 0 : index
    %119 = vector.load %arg11[%c2_113, %c0_114, %c0_115] : memref<9x32x128xf32, #tpu.memory_space<vmem>>, vector<1x32x128xf32>
    %120 = vector.shape_cast %119 : vector<1x32x128xf32> to vector<32x128xf32>
    %cst_116 = arith.constant dense<0.000000e+00> : vector<32x128xf32>
    %121 = tpu.matmul %94, %120, %cst_116 {dimension_numbers = #tpu.dot_dimension_numbers<[1], [0], [0], [1], [0, 0, 1, 1], [], []>} : vector<32x32xf32>, vector<32x128xf32>, vector<32x128xf32> -> vector<32x128xf32>
    %122 = arith.addf %118, %121 : vector<32x128xf32>
    %c2_117 = arith.constant 2 : index
    %c0_118 = arith.constant 0 : index
    %c0_119 = arith.constant 0 : index
    %123 = vector.load %arg9[%c2_117, %c0_118, %c0_119] : memref<9x32x32xf32, #tpu.memory_space<vmem>>, vector<1x32x32xf32>
    %124 = vector.shape_cast %123 : vector<1x32x32xf32> to vector<32x32xf32>
    %cst_120 = arith.constant dense<0.000000e+00> : vector<32x128xf32>
    %125 = tpu.matmul %124, %122, %cst_120 {dimension_numbers = #tpu.dot_dimension_numbers<[1], [0], [0], [1], [0, 0, 1, 1], [], []>} : vector<32x32xf32>, vector<32x128xf32>, vector<32x128xf32> -> vector<32x128xf32>
    %126 = arith.addf %115, %125 : vector<32x128xf32>
    %c3_121 = arith.constant 3 : index
    %c0_122 = arith.constant 0 : index
    %c0_123 = arith.constant 0 : index
    %127 = vector.load %arg10[%c3_121, %c0_122, %c0_123] : memref<9x32x128xf32, #tpu.memory_space<vmem>>, vector<1x32x128xf32>
    %128 = vector.shape_cast %127 : vector<1x32x128xf32> to vector<32x128xf32>
    %cst_124 = arith.constant dense<0.000000e+00> : vector<32x128xf32>
    %129 = tpu.matmul %75, %128, %cst_124 {dimension_numbers = #tpu.dot_dimension_numbers<[1], [0], [0], [1], [0, 0, 1, 1], [], []>} : vector<32x32xf32>, vector<32x128xf32>, vector<32x128xf32> -> vector<32x128xf32>
    %c3_125 = arith.constant 3 : index
    %c0_126 = arith.constant 0 : index
    %c0_127 = arith.constant 0 : index
    %130 = vector.load %arg11[%c3_125, %c0_126, %c0_127] : memref<9x32x128xf32, #tpu.memory_space<vmem>>, vector<1x32x128xf32>
    %131 = vector.shape_cast %130 : vector<1x32x128xf32> to vector<32x128xf32>
    %cst_128 = arith.constant dense<0.000000e+00> : vector<32x128xf32>
    %132 = tpu.matmul %94, %131, %cst_128 {dimension_numbers = #tpu.dot_dimension_numbers<[1], [0], [0], [1], [0, 0, 1, 1], [], []>} : vector<32x32xf32>, vector<32x128xf32>, vector<32x128xf32> -> vector<32x128xf32>
    %133 = arith.addf %129, %132 : vector<32x128xf32>
    %c3_129 = arith.constant 3 : index
    %c0_130 = arith.constant 0 : index
    %c0_131 = arith.constant 0 : index
    %134 = vector.load %arg9[%c3_129, %c0_130, %c0_131] : memref<9x32x32xf32, #tpu.memory_space<vmem>>, vector<1x32x32xf32>
    %135 = vector.shape_cast %134 : vector<1x32x32xf32> to vector<32x32xf32>
    %cst_132 = arith.constant dense<0.000000e+00> : vector<32x128xf32>
    %136 = tpu.matmul %135, %133, %cst_132 {dimension_numbers = #tpu.dot_dimension_numbers<[1], [0], [0], [1], [0, 0, 1, 1], [], []>} : vector<32x32xf32>, vector<32x128xf32>, vector<32x128xf32> -> vector<32x128xf32>
    %137 = arith.addf %126, %136 : vector<32x128xf32>
    %c4_133 = arith.constant 4 : index
    %c0_134 = arith.constant 0 : index
    %c0_135 = arith.constant 0 : index
    %138 = vector.load %arg10[%c4_133, %c0_134, %c0_135] : memref<9x32x128xf32, #tpu.memory_space<vmem>>, vector<1x32x128xf32>
    %139 = vector.shape_cast %138 : vector<1x32x128xf32> to vector<32x128xf32>
    %cst_136 = arith.constant dense<0.000000e+00> : vector<32x128xf32>
    %140 = tpu.matmul %75, %139, %cst_136 {dimension_numbers = #tpu.dot_dimension_numbers<[1], [0], [0], [1], [0, 0, 1, 1], [], []>} : vector<32x32xf32>, vector<32x128xf32>, vector<32x128xf32> -> vector<32x128xf32>
    %c4_137 = arith.constant 4 : index
    %c0_138 = arith.constant 0 : index
    %c0_139 = arith.constant 0 : index
    %141 = vector.load %arg11[%c4_137, %c0_138, %c0_139] : memref<9x32x128xf32, #tpu.memory_space<vmem>>, vector<1x32x128xf32>
    %142 = vector.shape_cast %141 : vector<1x32x128xf32> to vector<32x128xf32>
    %cst_140 = arith.constant dense<0.000000e+00> : vector<32x128xf32>
    %143 = tpu.matmul %94, %142, %cst_140 {dimension_numbers = #tpu.dot_dimension_numbers<[1], [0], [0], [1], [0, 0, 1, 1], [], []>} : vector<32x32xf32>, vector<32x128xf32>, vector<32x128xf32> -> vector<32x128xf32>
    %144 = arith.addf %140, %143 : vector<32x128xf32>
    %c4_141 = arith.constant 4 : index
    %c0_142 = arith.constant 0 : index
    %c0_143 = arith.constant 0 : index
    %145 = vector.load %arg9[%c4_141, %c0_142, %c0_143] : memref<9x32x32xf32, #tpu.memory_space<vmem>>, vector<1x32x32xf32>
    %146 = vector.shape_cast %145 : vector<1x32x32xf32> to vector<32x32xf32>
    %cst_144 = arith.constant dense<0.000000e+00> : vector<32x128xf32>
    %147 = tpu.matmul %146, %144, %cst_144 {dimension_numbers = #tpu.dot_dimension_numbers<[1], [0], [0], [1], [0, 0, 1, 1], [], []>} : vector<32x32xf32>, vector<32x128xf32>, vector<32x128xf32> -> vector<32x128xf32>
    %148 = arith.addf %137, %147 : vector<32x128xf32>
    %c5_145 = arith.constant 5 : index
    %c0_146 = arith.constant 0 : index
    %c0_147 = arith.constant 0 : index
    %149 = vector.load %arg10[%c5_145, %c0_146, %c0_147] : memref<9x32x128xf32, #tpu.memory_space<vmem>>, vector<1x32x128xf32>
    %150 = vector.shape_cast %149 : vector<1x32x128xf32> to vector<32x128xf32>
    %cst_148 = arith.constant dense<0.000000e+00> : vector<32x128xf32>
    %151 = tpu.matmul %75, %150, %cst_148 {dimension_numbers = #tpu.dot_dimension_numbers<[1], [0], [0], [1], [0, 0, 1, 1], [], []>} : vector<32x32xf32>, vector<32x128xf32>, vector<32x128xf32> -> vector<32x128xf32>
    %c5_149 = arith.constant 5 : index
    %c0_150 = arith.constant 0 : index
    %c0_151 = arith.constant 0 : index
    %152 = vector.load %arg11[%c5_149, %c0_150, %c0_151] : memref<9x32x128xf32, #tpu.memory_space<vmem>>, vector<1x32x128xf32>
    %153 = vector.shape_cast %152 : vector<1x32x128xf32> to vector<32x128xf32>
    %cst_152 = arith.constant dense<0.000000e+00> : vector<32x128xf32>
    %154 = tpu.matmul %94, %153, %cst_152 {dimension_numbers = #tpu.dot_dimension_numbers<[1], [0], [0], [1], [0, 0, 1, 1], [], []>} : vector<32x32xf32>, vector<32x128xf32>, vector<32x128xf32> -> vector<32x128xf32>
    %155 = arith.addf %151, %154 : vector<32x128xf32>
    %c5_153 = arith.constant 5 : index
    %c0_154 = arith.constant 0 : index
    %c0_155 = arith.constant 0 : index
    %156 = vector.load %arg9[%c5_153, %c0_154, %c0_155] : memref<9x32x32xf32, #tpu.memory_space<vmem>>, vector<1x32x32xf32>
    %157 = vector.shape_cast %156 : vector<1x32x32xf32> to vector<32x32xf32>
    %cst_156 = arith.constant dense<0.000000e+00> : vector<32x128xf32>
    %158 = tpu.matmul %157, %155, %cst_156 {dimension_numbers = #tpu.dot_dimension_numbers<[1], [0], [0], [1], [0, 0, 1, 1], [], []>} : vector<32x32xf32>, vector<32x128xf32>, vector<32x128xf32> -> vector<32x128xf32>
    %159 = arith.addf %148, %158 : vector<32x128xf32>
    %c6_157 = arith.constant 6 : index
    %c0_158 = arith.constant 0 : index
    %c0_159 = arith.constant 0 : index
    %160 = vector.load %arg10[%c6_157, %c0_158, %c0_159] : memref<9x32x128xf32, #tpu.memory_space<vmem>>, vector<1x32x128xf32>
    %161 = vector.shape_cast %160 : vector<1x32x128xf32> to vector<32x128xf32>
    %cst_160 = arith.constant dense<0.000000e+00> : vector<32x128xf32>
    %162 = tpu.matmul %75, %161, %cst_160 {dimension_numbers = #tpu.dot_dimension_numbers<[1], [0], [0], [1], [0, 0, 1, 1], [], []>} : vector<32x32xf32>, vector<32x128xf32>, vector<32x128xf32> -> vector<32x128xf32>
    %c6_161 = arith.constant 6 : index
    %c0_162 = arith.constant 0 : index
    %c0_163 = arith.constant 0 : index
    %163 = vector.load %arg11[%c6_161, %c0_162, %c0_163] : memref<9x32x128xf32, #tpu.memory_space<vmem>>, vector<1x32x128xf32>
    %164 = vector.shape_cast %163 : vector<1x32x128xf32> to vector<32x128xf32>
    %cst_164 = arith.constant dense<0.000000e+00> : vector<32x128xf32>
    %165 = tpu.matmul %94, %164, %cst_164 {dimension_numbers = #tpu.dot_dimension_numbers<[1], [0], [0], [1], [0, 0, 1, 1], [], []>} : vector<32x32xf32>, vector<32x128xf32>, vector<32x128xf32> -> vector<32x128xf32>
    %166 = arith.addf %162, %165 : vector<32x128xf32>
    %c6_165 = arith.constant 6 : index
    %c0_166 = arith.constant 0 : index
    %c0_167 = arith.constant 0 : index
    %167 = vector.load %arg9[%c6_165, %c0_166, %c0_167] : memref<9x32x32xf32, #tpu.memory_space<vmem>>, vector<1x32x32xf32>
    %168 = vector.shape_cast %167 : vector<1x32x32xf32> to vector<32x32xf32>
    %cst_168 = arith.constant dense<0.000000e+00> : vector<32x128xf32>
    %169 = tpu.matmul %168, %166, %cst_168 {dimension_numbers = #tpu.dot_dimension_numbers<[1], [0], [0], [1], [0, 0, 1, 1], [], []>} : vector<32x32xf32>, vector<32x128xf32>, vector<32x128xf32> -> vector<32x128xf32>
    %170 = arith.addf %159, %169 : vector<32x128xf32>
    %c7_169 = arith.constant 7 : index
    %c0_170 = arith.constant 0 : index
    %c0_171 = arith.constant 0 : index
    %171 = vector.load %arg10[%c7_169, %c0_170, %c0_171] : memref<9x32x128xf32, #tpu.memory_space<vmem>>, vector<1x32x128xf32>
    %172 = vector.shape_cast %171 : vector<1x32x128xf32> to vector<32x128xf32>
    %cst_172 = arith.constant dense<0.000000e+00> : vector<32x128xf32>
    %173 = tpu.matmul %75, %172, %cst_172 {dimension_numbers = #tpu.dot_dimension_numbers<[1], [0], [0], [1], [0, 0, 1, 1], [], []>} : vector<32x32xf32>, vector<32x128xf32>, vector<32x128xf32> -> vector<32x128xf32>
    %c7_173 = arith.constant 7 : index
    %c0_174 = arith.constant 0 : index
    %c0_175 = arith.constant 0 : index
    %174 = vector.load %arg11[%c7_173, %c0_174, %c0_175] : memref<9x32x128xf32, #tpu.memory_space<vmem>>, vector<1x32x128xf32>
    %175 = vector.shape_cast %174 : vector<1x32x128xf32> to vector<32x128xf32>
    %cst_176 = arith.constant dense<0.000000e+00> : vector<32x128xf32>
    %176 = tpu.matmul %94, %175, %cst_176 {dimension_numbers = #tpu.dot_dimension_numbers<[1], [0], [0], [1], [0, 0, 1, 1], [], []>} : vector<32x32xf32>, vector<32x128xf32>, vector<32x128xf32> -> vector<32x128xf32>
    %177 = arith.addf %173, %176 : vector<32x128xf32>
    %c7_177 = arith.constant 7 : index
    %c0_178 = arith.constant 0 : index
    %c0_179 = arith.constant 0 : index
    %178 = vector.load %arg9[%c7_177, %c0_178, %c0_179] : memref<9x32x32xf32, #tpu.memory_space<vmem>>, vector<1x32x32xf32>
    %179 = vector.shape_cast %178 : vector<1x32x32xf32> to vector<32x32xf32>
    %cst_180 = arith.constant dense<0.000000e+00> : vector<32x128xf32>
    %180 = tpu.matmul %179, %177, %cst_180 {dimension_numbers = #tpu.dot_dimension_numbers<[1], [0], [0], [1], [0, 0, 1, 1], [], []>} : vector<32x32xf32>, vector<32x128xf32>, vector<32x128xf32> -> vector<32x128xf32>
    %181 = arith.addf %170, %180 : vector<32x128xf32>
    %c8_181 = arith.constant 8 : index
    %c0_182 = arith.constant 0 : index
    %c0_183 = arith.constant 0 : index
    %182 = vector.load %arg10[%c8_181, %c0_182, %c0_183] : memref<9x32x128xf32, #tpu.memory_space<vmem>>, vector<1x32x128xf32>
    %183 = vector.shape_cast %182 : vector<1x32x128xf32> to vector<32x128xf32>
    %cst_184 = arith.constant dense<0.000000e+00> : vector<32x128xf32>
    %184 = tpu.matmul %75, %183, %cst_184 {dimension_numbers = #tpu.dot_dimension_numbers<[1], [0], [0], [1], [0, 0, 1, 1], [], []>} : vector<32x32xf32>, vector<32x128xf32>, vector<32x128xf32> -> vector<32x128xf32>
    %c8_185 = arith.constant 8 : index
    %c0_186 = arith.constant 0 : index
    %c0_187 = arith.constant 0 : index
    %185 = vector.load %arg11[%c8_185, %c0_186, %c0_187] : memref<9x32x128xf32, #tpu.memory_space<vmem>>, vector<1x32x128xf32>
    %186 = vector.shape_cast %185 : vector<1x32x128xf32> to vector<32x128xf32>
    %cst_188 = arith.constant dense<0.000000e+00> : vector<32x128xf32>
    %187 = tpu.matmul %94, %186, %cst_188 {dimension_numbers = #tpu.dot_dimension_numbers<[1], [0], [0], [1], [0, 0, 1, 1], [], []>} : vector<32x32xf32>, vector<32x128xf32>, vector<32x128xf32> -> vector<32x128xf32>
    %188 = arith.addf %184, %187 : vector<32x128xf32>
    %c8_189 = arith.constant 8 : index
    %c0_190 = arith.constant 0 : index
    %c0_191 = arith.constant 0 : index
    %189 = vector.load %arg9[%c8_189, %c0_190, %c0_191] : memref<9x32x32xf32, #tpu.memory_space<vmem>>, vector<1x32x32xf32>
    %190 = vector.shape_cast %189 : vector<1x32x32xf32> to vector<32x32xf32>
    %cst_192 = arith.constant dense<0.000000e+00> : vector<32x128xf32>
    %191 = tpu.matmul %190, %188, %cst_192 {dimension_numbers = #tpu.dot_dimension_numbers<[1], [0], [0], [1], [0, 0, 1, 1], [], []>} : vector<32x32xf32>, vector<32x128xf32>, vector<32x128xf32> -> vector<32x128xf32>
    %192 = arith.addf %181, %191 : vector<32x128xf32>
    %c0_193 = arith.constant 0 : index
    %c0_194 = arith.constant 0 : index
    %193 = vector.load %arg12[%c0_193, %c0_194] : memref<1x128xf32, #tpu.memory_space<vmem>>, vector<1x128xf32>
    %194 = vector.broadcast %193 : vector<1x128xf32> to vector<32x128xf32>
    %195 = arith.addf %192, %194 : vector<32x128xf32>
    %c0_195 = arith.constant 0 : index
    %c0_196 = arith.constant 0 : index
    %196 = vector.load %arg13[%c0_195, %c0_196] : memref<512x32xf32, #tpu.memory_space<vmem>>, vector<512x32xf32>
    %cst_197 = arith.constant dense<0.000000e+00> : vector<512x128xf32>
    %197 = tpu.matmul %196, %195, %cst_197 {dimension_numbers = #tpu.dot_dimension_numbers<[1], [0], [0], [1], [0, 0, 1, 1], [], []>} : vector<512x32xf32>, vector<32x128xf32>, vector<512x128xf32> -> vector<512x128xf32>
    %c0_198 = arith.constant 0 : index
    %c0_199 = arith.constant 0 : index
    %198 = vector.load %arg14[%c0_198, %c0_199] : memref<512x128xf32, #tpu.memory_space<vmem>>, vector<512x128xf32>
    tpu.vector_store %arg14[%c0_198, %c0_199], %197 {strides = array<i32>} : memref<512x128xf32, #tpu.memory_space<vmem>>, vector<512x128xf32>,
    return
  }
}

</mosaic_0001>

<llo_original>
// kernel: motion_sparse_forward.1
$region0: #{motion_sparse_forward.1}
  #allocation0 [shape = 'u32[]', space=smem, size = 0x4, offset = 0x4, fixed_abs, tag = 'smem constant byte address 0x4 - core index']
  #allocation1 [shape = 'u32[72,128]{1,0:T(1,128)}', space=vmem, size = 0x9000, scoped, tag = 'internal scratch']
  %s0 = inlined_call_operand.vmem [shape: f32[256,27], index: 0, kind: input, shape index: {}]
  %s1 = inlined_call_operand.vmem [shape: f32[27,16], index: 1, kind: input, shape index: {}]
  %s2 = inlined_call_operand.vmem [shape: f32[1,16], index: 2, kind: input, shape index: {}]
  %s3 = inlined_call_operand.vmem [shape: f32[9,64,256], index: 3, kind: input, shape index: {}]
  %s4 = inlined_call_operand.vmem [shape: f32[9,16,32], index: 4, kind: input, shape index: {}]
  %s5 = inlined_call_operand.vmem [shape: f32[1,32], index: 5, kind: input, shape index: {}]
  %s6 = inlined_call_operand.vmem [shape: f32[32,32], index: 6, kind: input, shape index: {}]
  %s7 = inlined_call_operand.vmem [shape: f32[32,32], index: 7, kind: input, shape index: {}]
  %s8 = inlined_call_operand.vmem [shape: f32[1,32], index: 8, kind: input, shape index: {}]
  %s9 = inlined_call_operand.vmem [shape: f32[9,32,32], index: 9, kind: input, shape index: {}]
  %s10 = inlined_call_operand.vmem [shape: f32[9,32,128], index: 10, kind: input, shape index: {}]
  %s11 = inlined_call_operand.vmem [shape: f32[9,32,128], index: 11, kind: input, shape index: {}]
  %s12 = inlined_call_operand.vmem [shape: f32[1,128], index: 12, kind: input, shape index: {}]
  %s13 = inlined_call_operand.vmem [shape: f32[512,32], index: 13, kind: input, shape index: {}]
  %s14 = inlined_call_operand.vmem [shape: f32[512,128], index: 14, kind: output, shape index: {}]
  %s15 = sld [smem:[#allocation0]]
  $region66: #{motion_sparse_forward.1} parent=0
    _
  %s17 = ssub.s32 1, %s15
  %s18 = scalar_select 0, %s17, %s15
  // Predicated region
  $region2: #{motion_sparse_forward.1} parent=0 // pred_check
    _
  $region3: #{motion_sparse_forward.1} parent=0 // pred_check_branch
    %20 = sbr.rel (0) target = $region5
  $region4: #{motion_sparse_forward.1} parent=0 // pred_region
    _
  $region5: #{motion_sparse_forward.1} parent=0 // pred_fallthru
    _
  // Predicated region
  $region6: #{motion_sparse_forward.1} parent=0 // pred_check
    _
  $region7: #{motion_sparse_forward.1} parent=0 // pred_check_branch
    %22 = sbr.rel (0) target = $region9
  $region8: #{motion_sparse_forward.1} parent=0 // pred_region
    _
  $region9: #{motion_sparse_forward.1} parent=0 // pred_fallthru
    _
  // Predicated region
  $region10: #{motion_sparse_forward.1} parent=0 // pred_check
    _
  $region11: #{motion_sparse_forward.1} parent=0 // pred_check_branch
    %24 = sbr.rel (0) target = $region13
  $region12: #{motion_sparse_forward.1} parent=0 // pred_region
    _
  $region13: #{motion_sparse_forward.1} parent=0 // pred_fallthru
    _
  // Predicated region
  $region14: #{motion_sparse_forward.1} parent=0 // pred_check
    _
  $region15: #{motion_sparse_forward.1} parent=0 // pred_check_branch
    %26 = sbr.rel (0) target = $region17
  $region16: #{motion_sparse_forward.1} parent=0 // pred_region
    _
  $region17: #{motion_sparse_forward.1} parent=0 // pred_fallthru
    _
  // Predicated region
  $region18: #{motion_sparse_forward.1} parent=0 // pred_check
    _
  $region19: #{motion_sparse_forward.1} parent=0 // pred_check_branch
    %28 = sbr.rel (0) target = $region21
  $region20: #{motion_sparse_forward.1} parent=0 // pred_region
    _
  $region21: #{motion_sparse_forward.1} parent=0 // pred_fallthru
    _
  // Predicated region
  $region22: #{motion_sparse_forward.1} parent=0 // pred_check
    _
  $region23: #{motion_sparse_forward.1} parent=0 // pred_check_branch
    %30 = sbr.rel (0) target = $region25
  $region24: #{motion_sparse_forward.1} parent=0 // pred_region
    _
  $region25: #{motion_sparse_forward.1} parent=0 // pred_fallthru
    _
  // Predicated region
  $region26: #{motion_sparse_forward.1} parent=0 // pred_check
    _
  $region27: #{motion_sparse_forward.1} parent=0 // pred_check_branch
    %32 = sbr.rel (0) target = $region29
  $region28: #{motion_sparse_forward.1} parent=0 // pred_region
    _
  $region29: #{motion_sparse_forward.1} parent=0 // pred_fallthru
    _
  // Predicated region
  $region30: #{motion_sparse_forward.1} parent=0 // pred_check
    _
  $region31: #{motion_sparse_forward.1} parent=0 // pred_check_branch
    %34 = sbr.rel (0) target = $region33
  $region32: #{motion_sparse_forward.1} parent=0 // pred_region
    _
  $region33: #{motion_sparse_forward.1} parent=0 // pred_fallthru
    _
  // Predicated region
  $region34: #{motion_sparse_forward.1} parent=0 // pred_check
    _
  $region35: #{motion_sparse_forward.1} parent=0 // pred_check_branch
    %36 = sbr.rel (0) target = $region37
  $region36: #{motion_sparse_forward.1} parent=0 // pred_region
    _
  $region37: #{motion_sparse_forward.1} parent=0 // pred_fallthru
    _
  // Predicated region
  $region38: #{motion_sparse_forward.1} parent=0 // pred_check
    _
  $region39: #{motion_sparse_forward.1} parent=0 // pred_check_branch
    %38 = sbr.rel (0) target = $region41
  $region40: #{motion_sparse_forward.1} parent=0 // pred_region
    _
  $region41: #{motion_sparse_forward.1} parent=0 // pred_fallthru
    _
  // Predicated region
  $region42: #{motion_sparse_forward.1} parent=0 // pred_check
    _
  $region43: #{motion_sparse_forward.1} parent=0 // pred_check_branch
    %40 = sbr.rel (0) target = $region45
  $region44: #{motion_sparse_forward.1} parent=0 // pred_region
    _
  $region45: #{motion_sparse_forward.1} parent=0 // pred_fallthru
    _
  // Predicated region
  $region46: #{motion_sparse_forward.1} parent=0 // pred_check
    _
  $region47: #{motion_sparse_forward.1} parent=0 // pred_check_branch
    %42 = sbr.rel (0) target = $region49
  $region48: #{motion_sparse_forward.1} parent=0 // pred_region
    _
  $region49: #{motion_sparse_forward.1} parent=0 // pred_fallthru
    _
  // Predicated region
  $region50: #{motion_sparse_forward.1} parent=0 // pred_check
    _
  $region51: #{motion_sparse_forward.1} parent=0 // pred_check_branch
    %44 = sbr.rel (0) target = $region53
  $region52: #{motion_sparse_forward.1} parent=0 // pred_region
    _
  $region53: #{motion_sparse_forward.1} parent=0 // pred_fallthru
    _
  // Predicated region
  $region54: #{motion_sparse_forward.1} parent=0 // pred_check
    _
  $region55: #{motion_sparse_forward.1} parent=0 // pred_check_branch
    %46 = sbr.rel (0) target = $region57
  $region56: #{motion_sparse_forward.1} parent=0 // pred_region
    _
  $region57: #{motion_sparse_forward.1} parent=0 // pred_fallthru
    _
  %v47 = vld [vmem:[%s0] sm:$0xff]
  %v48 = vld [vmem:[%s0 + $0x8] sm:$0xff]
  %v49 = vld [vmem:[%s0 + $0x10] sm:$0xff]
  %v50 = vld [vmem:[%s0 + $0x18] sm:$0xff]
  %v51 = vld [vmem:[%s0 + $0x20] sm:$0xff]
  %v52 = vld [vmem:[%s0 + $0x28] sm:$0xff]
  %v53 = vld [vmem:[%s0 + $0x30] sm:$0xff]
  %v54 = vld [vmem:[%s0 + $0x38] sm:$0xff]
  %v55 = vld [vmem:[%s0 + $0x40] sm:$0xff]
  %v56 = vld [vmem:[%s0 + $0x48] sm:$0xff]
  %v57 = vld [vmem:[%s0 + $0x50] sm:$0xff]
  %v58 = vld [vmem:[%s0 + $0x58] sm:$0xff]
  %v59 = vld [vmem:[%s0 + $0x60] sm:$0xff]
  %v60 = vld [vmem:[%s0 + $0x68] sm:$0xff]
  %v61 = vld [vmem:[%s0 + $0x70] sm:$0xff]
  %v62 = vld [vmem:[%s0 + $0x78] sm:$0xff]
  %v63 = vld [vmem:[%s0 + $0x80] sm:$0xff]
  %v64 = vld [vmem:[%s0 + $0x88] sm:$0xff]
  %v65 = vld [vmem:[%s0 + $0x90] sm:$0xff]
  %v66 = vld [vmem:[%s0 + $0x98] sm:$0xff]
  %v67 = vld [vmem:[%s0 + $0xa0] sm:$0xff]
  %v68 = vld [vmem:[%s0 + $0xa8] sm:$0xff]
  %v69 = vld [vmem:[%s0 + $0xb0] sm:$0xff]
  %v70 = vld [vmem:[%s0 + $0xb8] sm:$0xff]
  %v71 = vld [vmem:[%s0 + $0xc0] sm:$0xff]
  %v72 = vld [vmem:[%s0 + $0xc8] sm:$0xff]
  %v73 = vld [vmem:[%s0 + $0xd0] sm:$0xff]
  %v74 = vld [vmem:[%s0 + $0xd8] sm:$0xff]
  %v75 = vld [vmem:[%s0 + $0xe0] sm:$0xff]
  %v76 = vld [vmem:[%s0 + $0xe8] sm:$0xff]
  %v77 = vld [vmem:[%s0 + $0xf0] sm:$0xff]
  %v78 = vld [vmem:[%s0 + $0xf8] sm:$0xff]
  %v79 = vld [vmem:[%s1] sm:$0xff]
  %v80 = vld [vmem:[%s1 + $0x8] sm:$0xff]
  %v81 = vld [vmem:[%s1 + $0x10] sm:$0xff]
  %v82 = vld [vmem:[%s1 + $0x18] sm:$0x7]
  %v83 = vld [vmem:[%s2] sm:$0x1]
  %v85 = vperm.slane %v83, 0
  %vm87 = vcmask 220160
  %v89 = vsel %vm87, %v47, 0
  %v92 = vsel %vm87, %v48, 0
  %v95 = vsel %vm87, %v49, 0
  %v98 = vsel %vm87, %v50, 0
  %v101 = vsel %vm87, %v51, 0
  %v104 = vsel %vm87, %v52, 0
  %v107 = vsel %vm87, %v53, 0
  %v110 = vsel %vm87, %v54, 0
  %v113 = vsel %vm87, %v55, 0
  %v116 = vsel %vm87, %v56, 0
  %v119 = vsel %vm87, %v57, 0
  %v122 = vsel %vm87, %v58, 0
  %v125 = vsel %vm87, %v59, 0
  %v128 = vsel %vm87, %v60, 0
  %v131 = vsel %vm87, %v61, 0
  %v134 = vsel %vm87, %v62, 0
  %v137 = vsel %vm87, %v63, 0
  %v140 = vsel %vm87, %v64, 0
  %v143 = vsel %vm87, %v65, 0
  %v146 = vsel %vm87, %v66, 0
  %v149 = vsel %vm87, %v67, 0
  %v152 = vsel %vm87, %v68, 0
  %v155 = vsel %vm87, %v69, 0
  %v158 = vsel %vm87, %v70, 0
  %v161 = vsel %vm87, %v71, 0
  %v164 = vsel %vm87, %v72, 0
  %v167 = vsel %vm87, %v73, 0
  %v170 = vsel %vm87, %v74, 0
  %v173 = vsel %vm87, %v75, 0
  %v176 = vsel %vm87, %v76, 0
  %v179 = vsel %vm87, %v77, 0
  %v182 = vsel %vm87, %v78, 0
  %vm184 = vcmask 1042432
  %v186 = vsel %vm184, %v82, 0
  %188 = vmatpush.msra.mxu0 0.0
  %189 = vmatpush.msra.mxu0 0.0
  %190 = vmatpush.msra.mxu0 0.0
  %191 = vmatpush.msra.mxu0 0.0
  %192 = vmatpush.msra.mxu0 0.0
  %193 = vmatpush.msra.mxu0 0.0
  %194 = vmatpush.msra.mxu0 0.0
  %195 = vmatpush.msra.mxu0 0.0
  %196 = vmatpush.msra.mxu0 0.0
  %197 = vmatpush.msra.mxu0 0.0
  %198 = vmatpush.msra.mxu0 0.0
  %199 = vmatpush.msra.mxu0 0.0
  %200 = vmatpush.msra.mxu0 %v186
  %201 = vmatpush.msra.mxu0 %v81
  %202 = vmatpush.msra.mxu0 %v80
  %203 = vmatpush.msra.mxu0 %v79
  %204 = vmatmul.f32.gmra.mxu0 %v89
  %v205 = vpop.f32.mrf.mxu0
  %v206 = vadd.f32 %v85, %v205
  %207 = vmatmul.f32.gmra.mxu0 %v92
  %v208 = vpop.f32.mrf.mxu0
  %v209 = vadd.f32 %v85, %v208
  %210 = vmatmul.f32.gmra.mxu0 %v95
  %v211 = vpop.f32.mrf.mxu0
  %v212 = vadd.f32 %v85, %v211
  %213 = vmatmul.f32.gmra.mxu0 %v98
  %v214 = vpop.f32.mrf.mxu0
  %v215 = vadd.f32 %v85, %v214
  %216 = vmatmul.f32.gmra.mxu0 %v101
  %v217 = vpop.f32.mrf.mxu0
  %v218 = vadd.f32 %v85, %v217
  %219 = vmatmul.f32.gmra.mxu0 %v104
  %v220 = vpop.f32.mrf.mxu0
  %v221 = vadd.f32 %v85, %v220
  %222 = vmatmul.f32.gmra.mxu0 %v107
  %v223 = vpop.f32.mrf.mxu0
  %v224 = vadd.f32 %v85, %v223
  %225 = vmatmul.f32.gmra.mxu0 %v110
  %v226 = vpop.f32.mrf.mxu0
  %v227 = vadd.f32 %v85, %v226
  %228 = vmatmul.f32.gmra.mxu0 %v113
  %v229 = vpop.f32.mrf.mxu0
  %v230 = vadd.f32 %v85, %v229
  %231 = vmatmul.f32.gmra.mxu0 %v116
  %v232 = vpop.f32.mrf.mxu0
  %v233 = vadd.f32 %v85, %v232
  %234 = vmatmul.f32.gmra.mxu0 %v119
  %v235 = vpop.f32.mrf.mxu0
  %v236 = vadd.f32 %v85, %v235
  %237 = vmatmul.f32.gmra.mxu0 %v122
  %v238 = vpop.f32.mrf.mxu0
  %v239 = vadd.f32 %v85, %v238
  %240 = vmatmul.f32.gmra.mxu0 %v125
  %v241 = vpop.f32.mrf.mxu0
  %v242 = vadd.f32 %v85, %v241
  %243 = vmatmul.f32.gmra.mxu0 %v128
  %v244 = vpop.f32.mrf.mxu0
  %v245 = vadd.f32 %v85, %v244
  %246 = vmatmul.f32.gmra.mxu0 %v131
  %v247 = vpop.f32.mrf.mxu0
  %v248 = vadd.f32 %v85, %v247
  %249 = vmatmul.f32.gmra.mxu0 %v134
  %v250 = vpop.f32.mrf.mxu0
  %v251 = vadd.f32 %v85, %v250
  %252 = vmatmul.f32.gmra.mxu0 %v137
  %v253 = vpop.f32.mrf.mxu0
  %v254 = vadd.f32 %v85, %v253
  %255 = vmatmul.f32.gmra.mxu0 %v140
  %v256 = vpop.f32.mrf.mxu0
  %v257 = vadd.f32 %v85, %v256
  %258 = vmatmul.f32.gmra.mxu0 %v143
  %v259 = vpop.f32.mrf.mxu0
  %v260 = vadd.f32 %v85, %v259
  %261 = vmatmul.f32.gmra.mxu0 %v146
  %v262 = vpop.f32.mrf.mxu0
  %v263 = vadd.f32 %v85, %v262
  %264 = vmatmul.f32.gmra.mxu0 %v149
  %v265 = vpop.f32.mrf.mxu0
  %v266 = vadd.f32 %v85, %v265
  %267 = vmatmul.f32.gmra.mxu0 %v152
  %v268 = vpop.f32.mrf.mxu0
  %v269 = vadd.f32 %v85, %v268
  %270 = vmatmul.f32.gmra.mxu0 %v155
  %v271 = vpop.f32.mrf.mxu0
  %v272 = vadd.f32 %v85, %v271
  %273 = vmatmul.f32.gmra.mxu0 %v158
  %v274 = vpop.f32.mrf.mxu0
  %v275 = vadd.f32 %v85, %v274
  %276 = vmatmul.f32.gmra.mxu0 %v161
  %v277 = vpop.f32.mrf.mxu0
  %v278 = vadd.f32 %v85, %v277
  %279 = vmatmul.f32.gmra.mxu0 %v164
  %v280 = vpop.f32.mrf.mxu0
  %v281 = vadd.f32 %v85, %v280
  %282 = vmatmul.f32.gmra.mxu0 %v167
  %v283 = vpop.f32.mrf.mxu0
  %v284 = vadd.f32 %v85, %v283
  %285 = vmatmul.f32.gmra.mxu0 %v170
  %v286 = vpop.f32.mrf.mxu0
  %v287 = vadd.f32 %v85, %v286
  %288 = vmatmul.f32.gmra.mxu0 %v173
  %v289 = vpop.f32.mrf.mxu0
  %v290 = vadd.f32 %v85, %v289
  %291 = vmatmul.f32.gmra.mxu0 %v176
  %v292 = vpop.f32.mrf.mxu0
  %v293 = vadd.f32 %v85, %v292
  %294 = vmatmul.f32.gmra.mxu0 %v179
  %v295 = vpop.f32.mrf.mxu0
  %v296 = vadd.f32 %v85, %v295
  %297 = vmatmul.f32.gmra.mxu0 %v182
  %v298 = vpop.f32.mrf.mxu0
  %v299 = vadd.f32 %v85, %v298
  %300 = vdwg.mxu0
  %v301 = vmax.f32 %v206, 0.0
  %v302 = vmax.f32 %v209, 0.0
  %v303 = vmax.f32 %v212, 0.0
  %v304 = vmax.f32 %v215, 0.0
  %v305 = vmax.f32 %v218, 0.0
  %v306 = vmax.f32 %v221, 0.0
  %v307 = vmax.f32 %v224, 0.0
  %v308 = vmax.f32 %v227, 0.0
  %v309 = vmax.f32 %v230, 0.0
  %v310 = vmax.f32 %v233, 0.0
  %v311 = vmax.f32 %v236, 0.0
  %v312 = vmax.f32 %v239, 0.0
  %v313 = vmax.f32 %v242, 0.0
  %v314 = vmax.f32 %v245, 0.0
  %v315 = vmax.f32 %v248, 0.0
  %v316 = vmax.f32 %v251, 0.0
  %v317 = vmax.f32 %v254, 0.0
  %v318 = vmax.f32 %v257, 0.0
  %v319 = vmax.f32 %v260, 0.0
  %v320 = vmax.f32 %v263, 0.0
  %v321 = vmax.f32 %v266, 0.0
  %v322 = vmax.f32 %v269, 0.0
  %v323 = vmax.f32 %v272, 0.0
  %v324 = vmax.f32 %v275, 0.0
  %v325 = vmax.f32 %v278, 0.0
  %v326 = vmax.f32 %v281, 0.0
  %v327 = vmax.f32 %v284, 0.0
  %v328 = vmax.f32 %v287, 0.0
  %v329 = vmax.f32 %v290, 0.0
  %v330 = vmax.f32 %v293, 0.0
  %v331 = vmax.f32 %v296, 0.0
  %v332 = vmax.f32 %v299, 0.0
  %v333 = vld [vmem:[%s3] sm:$0xff]
  %v334 = vld [vmem:[%s3 + $0x8] sm:$0xff]
  %v335 = vld [vmem:[%s3 + $0x10] sm:$0xff]
  %v336 = vld [vmem:[%s3 + $0x18] sm:$0xff]
  %v337 = vld [vmem:[%s3 + $0x20] sm:$0xff]
  %v338 = vld [vmem:[%s3 + $0x28] sm:$0xff]
  %v339 = vld [vmem:[%s3 + $0x30] sm:$0xff]
  %v340 = vld [vmem:[%s3 + $0x38] sm:$0xff]
  %v341 = vld [vmem:[%s3 + $0x40] sm:$0xff]
  %v342 = vld [vmem:[%s3 + $0x48] sm:$0xff]
  %v343 = vld [vmem:[%s3 + $0x50] sm:$0xff]
  %v344 = vld [vmem:[%s3 + $0x58] sm:$0xff]
  %v345 = vld [vmem:[%s3 + $0x60] sm:$0xff]
  %v346 = vld [vmem:[%s3 + $0x68] sm:$0xff]
  %v347 = vld [vmem:[%s3 + $0x70] sm:$0xff]
  %v348 = vld [vmem:[%s3 + $0x78] sm:$0xff]
  %349 = vmatpush.msra.mxu0 %v316
  %350 = vmatpush.msra.mxu0 %v315
  %351 = vmatpush.msra.mxu0 %v314
  %352 = vmatpush.msra.mxu0 %v313
  %353 = vmatpush.msra.mxu0 %v312
  %354 = vmatpush.msra.mxu0 %v311
  %355 = vmatpush.msra.mxu0 %v310
  %356 = vmatpush.msra.mxu0 %v309
  %357 = vmatpush.msra.mxu0 %v308
  %358 = vmatpush.msra.mxu0 %v307
  %359 = vmatpush.msra.mxu0 %v306
  %360 = vmatpush.msra.mxu0 %v305
  %361 = vmatpush.msra.mxu0 %v304
  %362 = vmatpush.msra.mxu0 %v303
  %363 = vmatpush.msra.mxu0 %v302
  %364 = vmatpush.msra.mxu0 %v301
  %365 = vmatmul.f32.gmra.mxu0 %v333
  %v366 = vpop.f32.mrf.mxu0
  %v367 = vadd.f32 0.0, %v366
  %368 = vmatmul.f32.gmra.mxu0 %v335
  %v369 = vpop.f32.mrf.mxu0
  %v370 = vadd.f32 0.0, %v369
  %371 = vmatmul.f32.gmra.mxu0 %v337
  %v372 = vpop.f32.mrf.mxu0
  %v373 = vadd.f32 0.0, %v372
  %374 = vmatmul.f32.gmra.mxu0 %v339
  %v375 = vpop.f32.mrf.mxu0
  %v376 = vadd.f32 0.0, %v375
  %377 = vmatmul.f32.gmra.mxu0 %v341
  %v378 = vpop.f32.mrf.mxu0
  %v379 = vadd.f32 0.0, %v378
  %380 = vmatmul.f32.gmra.mxu0 %v343
  %v381 = vpop.f32.mrf.mxu0
  %v382 = vadd.f32 0.0, %v381
  %383 = vmatmul.f32.gmra.mxu0 %v345
  %v384 = vpop.f32.mrf.mxu0
  %v385 = vadd.f32 0.0, %v384
  %386 = vmatmul.f32.gmra.mxu0 %v347
  %v387 = vpop.f32.mrf.mxu0
  %v388 = vadd.f32 0.0, %v387
  %389 = vdwg.mxu0
  %390 = vmatpush.msra.mxu0 %v332
  %391 = vmatpush.msra.mxu0 %v331
  %392 = vmatpush.msra.mxu0 %v330
  %393 = vmatpush.msra.mxu0 %v329
  %394 = vmatpush.msra.mxu0 %v328
  %395 = vmatpush.msra.mxu0 %v327
  %396 = vmatpush.msra.mxu0 %v326
  %397 = vmatpush.msra.mxu0 %v325
  %398 = vmatpush.msra.mxu0 %v324
  %399 = vmatpush.msra.mxu0 %v323
  %400 = vmatpush.msra.mxu0 %v322
  %401 = vmatpush.msra.mxu0 %v321
  %402 = vmatpush.msra.mxu0 %v320
  %403 = vmatpush.msra.mxu0 %v319
  %404 = vmatpush.msra.mxu0 %v318
  %405 = vmatpush.msra.mxu0 %v317
  %406 = vmatmul.f32.gmra.mxu0 %v334
  %v407 = vpop.f32.mrf.mxu0
  %v408 = vadd.f32 %v367, %v407
  %409 = vmatmul.f32.gmra.mxu0 %v336
  %v410 = vpop.f32.mrf.mxu0
  %v411 = vadd.f32 %v370, %v410
  %412 = vmatmul.f32.gmra.mxu0 %v338
  %v413 = vpop.f32.mrf.mxu0
  %v414 = vadd.f32 %v373, %v413
  %415 = vmatmul.f32.gmra.mxu0 %v340
  %v416 = vpop.f32.mrf.mxu0
  %v417 = vadd.f32 %v376, %v416
  %418 = vmatmul.f32.gmra.mxu0 %v342
  %v419 = vpop.f32.mrf.mxu0
  %v420 = vadd.f32 %v379, %v419
  %421 = vmatmul.f32.gmra.mxu0 %v344
  %v422 = vpop.f32.mrf.mxu0
  %v423 = vadd.f32 %v382, %v422
  %424 = vmatmul.f32.gmra.mxu0 %v346
  %v425 = vpop.f32.mrf.mxu0
  %v426 = vadd.f32 %v385, %v425
  %427 = vmatmul.f32.gmra.mxu0 %v348
  %v428 = vpop.f32.mrf.mxu0
  %v429 = vadd.f32 %v388, %v428
  %430 = vdwg.mxu0
  %v431 = vld [vmem:[%s4] sm:$0xff]
  %v432 = vld [vmem:[%s4 + $0x8] sm:$0xff]
  %s433 = scalar_lea.vmem %s3, 128
  %v434 = vld [vmem:[%s433] sm:$0xff]
  %v435 = vld [vmem:[%s433 + $0x8] sm:$0xff]
  %v436 = vld [vmem:[%s433 + $0x10] sm:$0xff]
  %v437 = vld [vmem:[%s433 + $0x18] sm:$0xff]
  %v438 = vld [vmem:[%s433 + $0x20] sm:$0xff]
  %v439 = vld [vmem:[%s433 + $0x28] sm:$0xff]
  %v440 = vld [vmem:[%s433 + $0x30] sm:$0xff]
  %v441 = vld [vmem:[%s433 + $0x38] sm:$0xff]
  %v442 = vld [vmem:[%s433 + $0x40] sm:$0xff]
  %v443 = vld [vmem:[%s433 + $0x48] sm:$0xff]
  %v444 = vld [vmem:[%s433 + $0x50] sm:$0xff]
  %v445 = vld [vmem:[%s433 + $0x58] sm:$0xff]
  %v446 = vld [vmem:[%s433 + $0x60] sm:$0xff]
  %v447 = vld [vmem:[%s433 + $0x68] sm:$0xff]
  %v448 = vld [vmem:[%s433 + $0x70] sm:$0xff]
  %v449 = vld [vmem:[%s433 + $0x78] sm:$0xff]
  %450 = vmatpush.msra.mxu0 %v316
  %451 = vmatpush.msra.mxu0 %v315
  %452 = vmatpush.msra.mxu0 %v314
  %453 = vmatpush.msra.mxu0 %v313
  %454 = vmatpush.msra.mxu0 %v312
  %455 = vmatpush.msra.mxu0 %v311
  %456 = vmatpush.msra.mxu0 %v310
  %457 = vmatpush.msra.mxu0 %v309
  %458 = vmatpush.msra.mxu0 %v308
  %459 = vmatpush.msra.mxu0 %v307
  %460 = vmatpush.msra.mxu0 %v306
  %461 = vmatpush.msra.mxu0 %v305
  %462 = vmatpush.msra.mxu0 %v304
  %463 = vmatpush.msra.mxu0 %v303
  %464 = vmatpush.msra.mxu0 %v302
  %465 = vmatpush.msra.mxu0 %v301
  %466 = vmatmul.f32.gmra.mxu0 %v434
  %v467 = vpop.f32.mrf.mxu0
  %v468 = vadd.f32 0.0, %v467
  %469 = vmatmul.f32.gmra.mxu0 %v436
  %v470 = vpop.f32.mrf.mxu0
  %v471 = vadd.f32 0.0, %v470
  %472 = vmatmul.f32.gmra.mxu0 %v438
  %v473 = vpop.f32.mrf.mxu0
  %v474 = vadd.f32 0.0, %v473
  %475 = vmatmul.f32.gmra.mxu0 %v440
  %v476 = vpop.f32.mrf.mxu0
  %v477 = vadd.f32 0.0, %v476
  %478 = vmatmul.f32.gmra.mxu0 %v442
  %v479 = vpop.f32.mrf.mxu0
  %v480 = vadd.f32 0.0, %v479
  %481 = vmatmul.f32.gmra.mxu0 %v444
  %v482 = vpop.f32.mrf.mxu0
  %v483 = vadd.f32 0.0, %v482
  %484 = vmatmul.f32.gmra.mxu0 %v446
  %v485 = vpop.f32.mrf.mxu0
  %v486 = vadd.f32 0.0, %v485
  %487 = vmatmul.f32.gmra.mxu0 %v448
  %v488 = vpop.f32.mrf.mxu0
  %v489 = vadd.f32 0.0, %v488
  %490 = vdwg.mxu0
  %491 = vmatpush.msra.mxu0 %v332
  %492 = vmatpush.msra.mxu0 %v331
  %493 = vmatpush.msra.mxu0 %v330
  %494 = vmatpush.msra.mxu0 %v329
  %495 = vmatpush.msra.mxu0 %v328
  %496 = vmatpush.msra.mxu0 %v327
  %497 = vmatpush.msra.mxu0 %v326
  %498 = vmatpush.msra.mxu0 %v325
  %499 = vmatpush.msra.mxu0 %v324
  %500 = vmatpush.msra.mxu0 %v323
  %501 = vmatpush.msra.mxu0 %v322
  %502 = vmatpush.msra.mxu0 %v321
  %503 = vmatpush.msra.mxu0 %v320
  %504 = vmatpush.msra.mxu0 %v319
  %505 = vmatpush.msra.mxu0 %v318
  %506 = vmatpush.msra.mxu0 %v317
  %507 = vmatmul.f32.gmra.mxu0 %v435
  %v508 = vpop.f32.mrf.mxu0
  %v509 = vadd.f32 %v468, %v508
  %510 = vmatmul.f32.gmra.mxu0 %v437
  %v511 = vpop.f32.mrf.mxu0
  %v512 = vadd.f32 %v471, %v511
  %513 = vmatmul.f32.gmra.mxu0 %v439
  %v514 = vpop.f32.mrf.mxu0
  %v515 = vadd.f32 %v474, %v514
  %516 = vmatmul.f32.gmra.mxu0 %v441
  %v517 = vpop.f32.mrf.mxu0
  %v518 = vadd.f32 %v477, %v517
  %519 = vmatmul.f32.gmra.mxu0 %v443
  %v520 = vpop.f32.mrf.mxu0
  %v521 = vadd.f32 %v480, %v520
  %522 = vmatmul.f32.gmra.mxu0 %v445
  %v523 = vpop.f32.mrf.mxu0
  %v524 = vadd.f32 %v483, %v523
  %525 = vmatmul.f32.gmra.mxu0 %v447
  %v526 = vpop.f32.mrf.mxu0
  %v527 = vadd.f32 %v486, %v526
  %528 = vmatmul.f32.gmra.mxu0 %v449
  %v529 = vpop.f32.mrf.mxu0
  %v530 = vadd.f32 %v489, %v529
  %531 = vdwg.mxu0
  %s532 = scalar_lea.vmem %s4, 16
  %v533 = vld [vmem:[%s532] sm:$0xff]
  %v534 = vld [vmem:[%s532 + $0x8] sm:$0xff]
  %vm535 = vcmask 130048
  %v537 = vsel %vm535, %v509, 0
  %v540 = vsel %vm535, %v512, 0
  %v543 = vsel %vm535, %v515, 0
  %v546 = vsel %vm535, %v518, 0
  %v549 = vsel %vm535, %v521, 0
  %v552 = vsel %vm535, %v524, 0
  %v555 = vsel %vm535, %v527, 0
  %v558 = vsel %vm535, %v530, 0
  %560 = vmatpush.msra.mxu0 0.0
  %561 = vmatpush.msra.mxu0 0.0
  %562 = vmatpush.msra.mxu0 0.0
  %563 = vmatpush.msra.mxu0 0.0
  %564 = vmatpush.msra.mxu0 0.0
  %565 = vmatpush.msra.mxu0 0.0
  %566 = vmatpush.msra.mxu0 0.0
  %567 = vmatpush.msra.mxu0 0.0
  %568 = vmatpush.msra.mxu0 0.0
  %569 = vmatpush.msra.mxu0 0.0
  %570 = vmatpush.msra.mxu0 0.0
  %571 = vmatpush.msra.mxu0 0.0
  %572 = vmatpush.msra.mxu0 0.0
  %573 = vmatpush.msra.mxu0 0.0
  %574 = vmatpush.msra.mxu0 %v534
  %575 = vmatpush.msra.mxu0 %v533
  %576 = vmatmul.f32.gmra.mxu0 %v537
  %v577 = vpop.f32.mrf.mxu0
  %v578 = vadd.f32 0.0, %v577
  %579 = vmatmul.f32.gmra.mxu0 %v540
  %v580 = vpop.f32.mrf.mxu0
  %v581 = vadd.f32 0.0, %v580
  %582 = vmatmul.f32.gmra.mxu0 %v543
  %v583 = vpop.f32.mrf.mxu0
  %v584 = vadd.f32 0.0, %v583
  %585 = vmatmul.f32.gmra.mxu0 %v546
  %v586 = vpop.f32.mrf.mxu0
  %v587 = vadd.f32 0.0, %v586
  %588 = vmatmul.f32.gmra.mxu0 %v549
  %v589 = vpop.f32.mrf.mxu0
  %v590 = vadd.f32 0.0, %v589
  %591 = vmatmul.f32.gmra.mxu0 %v552
  %v592 = vpop.f32.mrf.mxu0
  %v593 = vadd.f32 0.0, %v592
  %594 = vmatmul.f32.gmra.mxu0 %v555
  %v595 = vpop.f32.mrf.mxu0
  %v596 = vadd.f32 0.0, %v595
  %597 = vmatmul.f32.gmra.mxu0 %v558
  %v598 = vpop.f32.mrf.mxu0
  %v599 = vadd.f32 0.0, %v598
  %600 = vdwg.mxu0
  %v602 = vsel %vm535, %v408, 0
  %v605 = vsel %vm535, %v411, 0
  %v608 = vsel %vm535, %v414, 0
  %v611 = vsel %vm535, %v417, 0
  %v614 = vsel %vm535, %v420, 0
  %v617 = vsel %vm535, %v423, 0
  %v620 = vsel %vm535, %v426, 0
  %v623 = vsel %vm535, %v429, 0
  %625 = vmatpush.msra.mxu0 0.0
  %626 = vmatpush.msra.mxu0 0.0
  %627 = vmatpush.msra.mxu0 0.0
  %628 = vmatpush.msra.mxu0 0.0
  %629 = vmatpush.msra.mxu0 0.0
  %630 = vmatpush.msra.mxu0 0.0
  %631 = vmatpush.msra.mxu0 0.0
  %632 = vmatpush.msra.mxu0 0.0
  %633 = vmatpush.msra.mxu0 0.0
  %634 = vmatpush.msra.mxu0 0.0
  %635 = vmatpush.msra.mxu0 0.0
  %636 = vmatpush.msra.mxu0 0.0
  %637 = vmatpush.msra.mxu0 0.0
  %638 = vmatpush.msra.mxu0 0.0
  %639 = vmatpush.msra.mxu0 %v432
  %640 = vmatpush.msra.mxu0 %v431
  %641 = vmatmul.f32.gmra.mxu0 %v602
  %v642 = vpop.f32.mrf.mxu0
  %v643 = vadd.f32 %v578, %v642
  %644 = vmatmul.f32.gmra.mxu0 %v605
  %v645 = vpop.f32.mrf.mxu0
  %v646 = vadd.f32 %v581, %v645
  %647 = vmatmul.f32.gmra.mxu0 %v608
  %v648 = vpop.f32.mrf.mxu0
  %v649 = vadd.f32 %v584, %v648
  %650 = vmatmul.f32.gmra.mxu0 %v611
  %v651 = vpop.f32.mrf.mxu0
  %v652 = vadd.f32 %v587, %v651
  %653 = vmatmul.f32.gmra.mxu0 %v614
  %v654 = vpop.f32.mrf.mxu0
  %v655 = vadd.f32 %v590, %v654
  %656 = vmatmul.f32.gmra.mxu0 %v617
  %v657 = vpop.f32.mrf.mxu0
  %v658 = vadd.f32 %v593, %v657
  %659 = vmatmul.f32.gmra.mxu0 %v620
  %v660 = vpop.f32.mrf.mxu0
  %v661 = vadd.f32 %v596, %v660
  %662 = vmatmul.f32.gmra.mxu0 %v623
  %v663 = vpop.f32.mrf.mxu0
  %v664 = vadd.f32 %v599, %v663
  %665 = vdwg.mxu0
  %s666 = scalar_lea.vmem %s3, 256
  %v667 = vld [vmem:[%s666] sm:$0xff]
  %v668 = vld [vmem:[%s666 + $0x8] sm:$0xff]
  %v669 = vld [vmem:[%s666 + $0x10] sm:$0xff]
  %v670 = vld [vmem:[%s666 + $0x18] sm:$0xff]
  %v671 = vld [vmem:[%s666 + $0x20] sm:$0xff]
  %v672 = vld [vmem:[%s666 + $0x28] sm:$0xff]
  %v673 = vld [vmem:[%s666 + $0x30] sm:$0xff]
  %v674 = vld [vmem:[%s666 + $0x38] sm:$0xff]
  %v675 = vld [vmem:[%s666 + $0x40] sm:$0xff]
  %v676 = vld [vmem:[%s666 + $0x48] sm:$0xff]
  %v677 = vld [vmem:[%s666 + $0x50] sm:$0xff]
  %v678 = vld [vmem:[%s666 + $0x58] sm:$0xff]
  %v679 = vld [vmem:[%s666 + $0x60] sm:$0xff]
  %v680 = vld [vmem:[%s666 + $0x68] sm:$0xff]
  %v681 = vld [vmem:[%s666 + $0x70] sm:$0xff]
  %v682 = vld [vmem:[%s666 + $0x78] sm:$0xff]
  %683 = vmatpush.msra.mxu0 %v316
  %684 = vmatpush.msra.mxu0 %v315
  %685 = vmatpush.msra.mxu0 %v314
  %686 = vmatpush.msra.mxu0 %v313
  %687 = vmatpush.msra.mxu0 %v312
  %688 = vmatpush.msra.mxu0 %v311
  %689 = vmatpush.msra.mxu0 %v310
  %690 = vmatpush.msra.mxu0 %v309
  %691 = vmatpush.msra.mxu0 %v308
  %692 = vmatpush.msra.mxu0 %v307
  %693 = vmatpush.msra.mxu0 %v306
  %694 = vmatpush.msra.mxu0 %v305
  %695 = vmatpush.msra.mxu0 %v304
  %696 = vmatpush.msra.mxu0 %v303
  %697 = vmatpush.msra.mxu0 %v302
  %698 = vmatpush.msra.mxu0 %v301
  %699 = vmatmul.f32.gmra.mxu0 %v667
  %v700 = vpop.f32.mrf.mxu0
  %v701 = vadd.f32 0.0, %v700
  %702 = vmatmul.f32.gmra.mxu0 %v669
  %v703 = vpop.f32.mrf.mxu0
  %v704 = vadd.f32 0.0, %v703
  %705 = vmatmul.f32.gmra.mxu0 %v671
  %v706 = vpop.f32.mrf.mxu0
  %v707 = vadd.f32 0.0, %v706
  %708 = vmatmul.f32.gmra.mxu0 %v673
  %v709 = vpop.f32.mrf.mxu0
  %v710 = vadd.f32 0.0, %v709
  %711 = vmatmul.f32.gmra.mxu0 %v675
  %v712 = vpop.f32.mrf.mxu0
  %v713 = vadd.f32 0.0, %v712
  %714 = vmatmul.f32.gmra.mxu0 %v677
  %v715 = vpop.f32.mrf.mxu0
  %v716 = vadd.f32 0.0, %v715
  %717 = vmatmul.f32.gmra.mxu0 %v679
  %v718 = vpop.f32.mrf.mxu0
  %v719 = vadd.f32 0.0, %v718
  %720 = vmatmul.f32.gmra.mxu0 %v681
  %v721 = vpop.f32.mrf.mxu0
  %v722 = vadd.f32 0.0, %v721
  %723 = vdwg.mxu0
  %724 = vmatpush.msra.mxu0 %v332
  %725 = vmatpush.msra.mxu0 %v331
  %726 = vmatpush.msra.mxu0 %v330
  %727 = vmatpush.msra.mxu0 %v329
  %728 = vmatpush.msra.mxu0 %v328
  %729 = vmatpush.msra.mxu0 %v327
  %730 = vmatpush.msra.mxu0 %v326
  %731 = vmatpush.msra.mxu0 %v325
  %732 = vmatpush.msra.mxu0 %v324
  %733 = vmatpush.msra.mxu0 %v323
  %734 = vmatpush.msra.mxu0 %v322
  %735 = vmatpush.msra.mxu0 %v321
  %736 = vmatpush.msra.mxu0 %v320
  %737 = vmatpush.msra.mxu0 %v319
  %738 = vmatpush.msra.mxu0 %v318
  %739 = vmatpush.msra.mxu0 %v317
  %740 = vmatmul.f32.gmra.mxu0 %v668
  %v741 = vpop.f32.mrf.mxu0
  %v742 = vadd.f32 %v701, %v741
  %743 = vmatmul.f32.gmra.mxu0 %v670
  %v744 = vpop.f32.mrf.mxu0
  %v745 = vadd.f32 %v704, %v744
  %746 = vmatmul.f32.gmra.mxu0 %v672
  %v747 = vpop.f32.mrf.mxu0
  %v748 = vadd.f32 %v707, %v747
  %749 = vmatmul.f32.gmra.mxu0 %v674
  %v750 = vpop.f32.mrf.mxu0
  %v751 = vadd.f32 %v710, %v750
  %752 = vmatmul.f32.gmra.mxu0 %v676
  %v753 = vpop.f32.mrf.mxu0
  %v754 = vadd.f32 %v713, %v753
  %755 = vmatmul.f32.gmra.mxu0 %v678
  %v756 = vpop.f32.mrf.mxu0
  %v757 = vadd.f32 %v716, %v756
  %758 = vmatmul.f32.gmra.mxu0 %v680
  %v759 = vpop.f32.mrf.mxu0
  %v760 = vadd.f32 %v719, %v759
  %761 = vmatmul.f32.gmra.mxu0 %v682
  %v762 = vpop.f32.mrf.mxu0
  %v763 = vadd.f32 %v722, %v762
  %764 = vdwg.mxu0
  %s765 = scalar_lea.vmem %s4, 32
  %v766 = vld [vmem:[%s765] sm:$0xff]
  %v767 = vld [vmem:[%s765 + $0x8] sm:$0xff]
  %v769 = vsel %vm535, %v742, 0
  %v772 = vsel %vm535, %v745, 0
  %v775 = vsel %vm535, %v748, 0
  %v778 = vsel %vm535, %v751, 0
  %v781 = vsel %vm535, %v754, 0
  %v784 = vsel %vm535, %v757, 0
  %v787 = vsel %vm535, %v760, 0
  %v790 = vsel %vm535, %v763, 0
  %792 = vmatpush.msra.mxu0 0.0
  %793 = vmatpush.msra.mxu0 0.0
  %794 = vmatpush.msra.mxu0 0.0
  %795 = vmatpush.msra.mxu0 0.0
  %796 = vmatpush.msra.mxu0 0.0
  %797 = vmatpush.msra.mxu0 0.0
  %798 = vmatpush.msra.mxu0 0.0
  %799 = vmatpush.msra.mxu0 0.0
  %800 = vmatpush.msra.mxu0 0.0
  %801 = vmatpush.msra.mxu0 0.0
  %802 = vmatpush.msra.mxu0 0.0
  %803 = vmatpush.msra.mxu0 0.0
  %804 = vmatpush.msra.mxu0 0.0
  %805 = vmatpush.msra.mxu0 0.0
  %806 = vmatpush.msra.mxu0 %v767
  %807 = vmatpush.msra.mxu0 %v766
  %808 = vmatmul.f32.gmra.mxu0 %v769
  %v809 = vpop.f32.mrf.mxu0
  %v810 = vadd.f32 0.0, %v809
  %811 = vmatmul.f32.gmra.mxu0 %v772
  %v812 = vpop.f32.mrf.mxu0
  %v813 = vadd.f32 0.0, %v812
  %814 = vmatmul.f32.gmra.mxu0 %v775
  %v815 = vpop.f32.mrf.mxu0
  %v816 = vadd.f32 0.0, %v815
  %817 = vmatmul.f32.gmra.mxu0 %v778
  %v818 = vpop.f32.mrf.mxu0
  %v819 = vadd.f32 0.0, %v818
  %820 = vmatmul.f32.gmra.mxu0 %v781
  %v821 = vpop.f32.mrf.mxu0
  %v822 = vadd.f32 0.0, %v821
  %823 = vmatmul.f32.gmra.mxu0 %v784
  %v824 = vpop.f32.mrf.mxu0
  %v825 = vadd.f32 0.0, %v824
  %826 = vmatmul.f32.gmra.mxu0 %v787
  %v827 = vpop.f32.mrf.mxu0
  %v828 = vadd.f32 0.0, %v827
  %829 = vmatmul.f32.gmra.mxu0 %v790
  %v830 = vpop.f32.mrf.mxu0
  %v831 = vadd.f32 0.0, %v830
  %832 = vdwg.mxu0
  %v833 = vadd.f32 %v643, %v810
  %v834 = vadd.f32 %v646, %v813
  %v835 = vadd.f32 %v649, %v816
  %v836 = vadd.f32 %v652, %v819
  %v837 = vadd.f32 %v655, %v822
  %v838 = vadd.f32 %v658, %v825
  %v839 = vadd.f32 %v661, %v828
  %v840 = vadd.f32 %v664, %v831
  %s841 = scalar_lea.vmem %s3, 384
  %v842 = vld [vmem:[%s841] sm:$0xff]
  %v843 = vld [vmem:[%s841 + $0x8] sm:$0xff]
  %v844 = vld [vmem:[%s841 + $0x10] sm:$0xff]
  %v845 = vld [vmem:[%s841 + $0x18] sm:$0xff]
  %v846 = vld [vmem:[%s841 + $0x20] sm:$0xff]
  %v847 = vld [vmem:[%s841 + $0x28] sm:$0xff]
  %v848 = vld [vmem:[%s841 + $0x30] sm:$0xff]
  %v849 = vld [vmem:[%s841 + $0x38] sm:$0xff]
  %v850 = vld [vmem:[%s841 + $0x40] sm:$0xff]
  %v851 = vld [vmem:[%s841 + $0x48] sm:$0xff]
  %v852 = vld [vmem:[%s841 + $0x50] sm:$0xff]
  %v853 = vld [vmem:[%s841 + $0x58] sm:$0xff]
  %v854 = vld [vmem:[%s841 + $0x60] sm:$0xff]
  %v855 = vld [vmem:[%s841 + $0x68] sm:$0xff]
  %v856 = vld [vmem:[%s841 + $0x70] sm:$0xff]
  %v857 = vld [vmem:[%s841 + $0x78] sm:$0xff]
  %858 = vmatpush.msra.mxu0 %v316
  %859 = vmatpush.msra.mxu0 %v315
  %860 = vmatpush.msra.mxu0 %v314
  %861 = vmatpush.msra.mxu0 %v313
  %862 = vmatpush.msra.mxu0 %v312
  %863 = vmatpush.msra.mxu0 %v311
  %864 = vmatpush.msra.mxu0 %v310
  %865 = vmatpush.msra.mxu0 %v309
  %866 = vmatpush.msra.mxu0 %v308
  %867 = vmatpush.msra.mxu0 %v307
  %868 = vmatpush.msra.mxu0 %v306
  %869 = vmatpush.msra.mxu0 %v305
  %870 = vmatpush.msra.mxu0 %v304
  %871 = vmatpush.msra.mxu0 %v303
  %872 = vmatpush.msra.mxu0 %v302
  %873 = vmatpush.msra.mxu0 %v301
  %874 = vmatmul.f32.gmra.mxu0 %v842
  %v875 = vpop.f32.mrf.mxu0
  %v876 = vadd.f32 0.0, %v875
  %877 = vmatmul.f32.gmra.mxu0 %v844
  %v878 = vpop.f32.mrf.mxu0
  %v879 = vadd.f32 0.0, %v878
  %880 = vmatmul.f32.gmra.mxu0 %v846
  %v881 = vpop.f32.mrf.mxu0
  %v882 = vadd.f32 0.0, %v881
  %883 = vmatmul.f32.gmra.mxu0 %v848
  %v884 = vpop.f32.mrf.mxu0
  %v885 = vadd.f32 0.0, %v884
  %886 = vmatmul.f32.gmra.mxu0 %v850
  %v887 = vpop.f32.mrf.mxu0
  %v888 = vadd.f32 0.0, %v887
  %889 = vmatmul.f32.gmra.mxu0 %v852
  %v890 = vpop.f32.mrf.mxu0
  %v891 = vadd.f32 0.0, %v890
  %892 = vmatmul.f32.gmra.mxu0 %v854
  %v893 = vpop.f32.mrf.mxu0
  %v894 = vadd.f32 0.0, %v893
  %895 = vmatmul.f32.gmra.mxu0 %v856
  %v896 = vpop.f32.mrf.mxu0
  %v897 = vadd.f32 0.0, %v896
  %898 = vdwg.mxu0
  %899 = vmatpush.msra.mxu0 %v332
  %900 = vmatpush.msra.mxu0 %v331
  %901 = vmatpush.msra.mxu0 %v330
  %902 = vmatpush.msra.mxu0 %v329
  %903 = vmatpush.msra.mxu0 %v328
  %904 = vmatpush.msra.mxu0 %v327
  %905 = vmatpush.msra.mxu0 %v326
  %906 = vmatpush.msra.mxu0 %v325
  %907 = vmatpush.msra.mxu0 %v324
  %908 = vmatpush.msra.mxu0 %v323
  %909 = vmatpush.msra.mxu0 %v322
  %910 = vmatpush.msra.mxu0 %v321
  %911 = vmatpush.msra.mxu0 %v320
  %912 = vmatpush.msra.mxu0 %v319
  %913 = vmatpush.msra.mxu0 %v318
  %914 = vmatpush.msra.mxu0 %v317
  %915 = vmatmul.f32.gmra.mxu0 %v843
  %v916 = vpop.f32.mrf.mxu0
  %v917 = vadd.f32 %v876, %v916
  %918 = vmatmul.f32.gmra.mxu0 %v845
  %v919 = vpop.f32.mrf.mxu0
  %v920 = vadd.f32 %v879, %v919
  %921 = vmatmul.f32.gmra.mxu0 %v847
  %v922 = vpop.f32.mrf.mxu0
  %v923 = vadd.f32 %v882, %v922
  %924 = vmatmul.f32.gmra.mxu0 %v849
  %v925 = vpop.f32.mrf.mxu0
  %v926 = vadd.f32 %v885, %v925
  %927 = vmatmul.f32.gmra.mxu0 %v851
  %v928 = vpop.f32.mrf.mxu0
  %v929 = vadd.f32 %v888, %v928
  %930 = vmatmul.f32.gmra.mxu0 %v853
  %v931 = vpop.f32.mrf.mxu0
  %v932 = vadd.f32 %v891, %v931
  %933 = vmatmul.f32.gmra.mxu0 %v855
  %v934 = vpop.f32.mrf.mxu0
  %v935 = vadd.f32 %v894, %v934
  %936 = vmatmul.f32.gmra.mxu0 %v857
  %v937 = vpop.f32.mrf.mxu0
  %v938 = vadd.f32 %v897, %v937
  %939 = vdwg.mxu0
  %s940 = scalar_lea.vmem %s4, 48
  %v941 = vld [vmem:[%s940] sm:$0xff]
  %v942 = vld [vmem:[%s940 + $0x8] sm:$0xff]
  %v944 = vsel %vm535, %v917, 0
  %v947 = vsel %vm535, %v920, 0
  %v950 = vsel %vm535, %v923, 0
  %v953 = vsel %vm535, %v926, 0
  %v956 = vsel %vm535, %v929, 0
  %v959 = vsel %vm535, %v932, 0
  %v962 = vsel %vm535, %v935, 0
  %v965 = vsel %vm535, %v938, 0
  %967 = vmatpush.msra.mxu0 0.0
  %968 = vmatpush.msra.mxu0 0.0
  %969 = vmatpush.msra.mxu0 0.0
  %970 = vmatpush.msra.mxu0 0.0
  %971 = vmatpush.msra.mxu0 0.0
  %972 = vmatpush.msra.mxu0 0.0
  %973 = vmatpush.msra.mxu0 0.0
  %974 = vmatpush.msra.mxu0 0.0
  %975 = vmatpush.msra.mxu0 0.0
  %976 = vmatpush.msra.mxu0 0.0
  %977 = vmatpush.msra.mxu0 0.0
  %978 = vmatpush.msra.mxu0 0.0
  %979 = vmatpush.msra.mxu0 0.0
  %980 = vmatpush.msra.mxu0 0.0
  %981 = vmatpush.msra.mxu0 %v942
  %982 = vmatpush.msra.mxu0 %v941
  %983 = vmatmul.f32.gmra.mxu0 %v944
  %v984 = vpop.f32.mrf.mxu0
  %v985 = vadd.f32 0.0, %v984
  %986 = vmatmul.f32.gmra.mxu0 %v947
  %v987 = vpop.f32.mrf.mxu0
  %v988 = vadd.f32 0.0, %v987
  %989 = vmatmul.f32.gmra.mxu0 %v950
  %v990 = vpop.f32.mrf.mxu0
  %v991 = vadd.f32 0.0, %v990
  %992 = vmatmul.f32.gmra.mxu0 %v953
  %v993 = vpop.f32.mrf.mxu0
  %v994 = vadd.f32 0.0, %v993
  %995 = vmatmul.f32.gmra.mxu0 %v956
  %v996 = vpop.f32.mrf.mxu0
  %v997 = vadd.f32 0.0, %v996
  %998 = vmatmul.f32.gmra.mxu0 %v959
  %v999 = vpop.f32.mrf.mxu0
  %v1000 = vadd.f32 0.0, %v999
  %1001 = vmatmul.f32.gmra.mxu0 %v962
  %v1002 = vpop.f32.mrf.mxu0
  %v1003 = vadd.f32 0.0, %v1002
  %1004 = vmatmul.f32.gmra.mxu0 %v965
  %v1005 = vpop.f32.mrf.mxu0
  %v1006 = vadd.f32 0.0, %v1005
  %1007 = vdwg.mxu0
  %v1008 = vadd.f32 %v833, %v985
  %v1009 = vadd.f32 %v834, %v988
  %v1010 = vadd.f32 %v835, %v991
  %v1011 = vadd.f32 %v836, %v994
  %v1012 = vadd.f32 %v837, %v997
  %v1013 = vadd.f32 %v838, %v1000
  %v1014 = vadd.f32 %v839, %v1003
  %v1015 = vadd.f32 %v840, %v1006
  %s1016 = scalar_lea.vmem %s3, 512
  %v1017 = vld [vmem:[%s1016] sm:$0xff]
  %v1018 = vld [vmem:[%s1016 + $0x8] sm:$0xff]
  %v1019 = vld [vmem:[%s1016 + $0x10] sm:$0xff]
  %v1020 = vld [vmem:[%s1016 + $0x18] sm:$0xff]
  %v1021 = vld [vmem:[%s1016 + $0x20] sm:$0xff]
  %v1022 = vld [vmem:[%s1016 + $0x28] sm:$0xff]
  %v1023 = vld [vmem:[%s1016 + $0x30] sm:$0xff]
  %v1024 = vld [vmem:[%s1016 + $0x38] sm:$0xff]
  %v1025 = vld [vmem:[%s1016 + $0x40] sm:$0xff]
  %v1026 = vld [vmem:[%s1016 + $0x48] sm:$0xff]
  %v1027 = vld [vmem:[%s1016 + $0x50] sm:$0xff]
  %v1028 = vld [vmem:[%s1016 + $0x58] sm:$0xff]
  %v1029 = vld [vmem:[%s1016 + $0x60] sm:$0xff]
  %v1030 = vld [vmem:[%s1016 + $0x68] sm:$0xff]
  %v1031 = vld [vmem:[%s1016 + $0x70] sm:$0xff]
  %v1032 = vld [vmem:[%s1016 + $0x78] sm:$0xff]
  %1033 = vmatpush.msra.mxu0 %v316
  %1034 = vmatpush.msra.mxu0 %v315
  %1035 = vmatpush.msra.mxu0 %v314
  %1036 = vmatpush.msra.mxu0 %v313
  %1037 = vmatpush.msra.mxu0 %v312
  %1038 = vmatpush.msra.mxu0 %v311
  %1039 = vmatpush.msra.mxu0 %v310
  %1040 = vmatpush.msra.mxu0 %v309
  %1041 = vmatpush.msra.mxu0 %v308
  %1042 = vmatpush.msra.mxu0 %v307
  %1043 = vmatpush.msra.mxu0 %v306
  %1044 = vmatpush.msra.mxu0 %v305
  %1045 = vmatpush.msra.mxu0 %v304
  %1046 = vmatpush.msra.mxu0 %v303
  %1047 = vmatpush.msra.mxu0 %v302
  %1048 = vmatpush.msra.mxu0 %v301
  %1049 = vmatmul.f32.gmra.mxu0 %v1017
  %v1050 = vpop.f32.mrf.mxu0
  %v1051 = vadd.f32 0.0, %v1050
  %1052 = vmatmul.f32.gmra.mxu0 %v1019
  %v1053 = vpop.f32.mrf.mxu0
  %v1054 = vadd.f32 0.0, %v1053
  %1055 = vmatmul.f32.gmra.mxu0 %v1021
  %v1056 = vpop.f32.mrf.mxu0
  %v1057 = vadd.f32 0.0, %v1056
  %1058 = vmatmul.f32.gmra.mxu0 %v1023
  %v1059 = vpop.f32.mrf.mxu0
  %v1060 = vadd.f32 0.0, %v1059
  %1061 = vmatmul.f32.gmra.mxu0 %v1025
  %v1062 = vpop.f32.mrf.mxu0
  %v1063 = vadd.f32 0.0, %v1062
  %1064 = vmatmul.f32.gmra.mxu0 %v1027
  %v1065 = vpop.f32.mrf.mxu0
  %v1066 = vadd.f32 0.0, %v1065
  %1067 = vmatmul.f32.gmra.mxu0 %v1029
  %v1068 = vpop.f32.mrf.mxu0
  %v1069 = vadd.f32 0.0, %v1068
  %1070 = vmatmul.f32.gmra.mxu0 %v1031
  %v1071 = vpop.f32.mrf.mxu0
  %v1072 = vadd.f32 0.0, %v1071
  %1073 = vdwg.mxu0
  %1074 = vmatpush.msra.mxu0 %v332
  %1075 = vmatpush.msra.mxu0 %v331
  %1076 = vmatpush.msra.mxu0 %v330
  %1077 = vmatpush.msra.mxu0 %v329
  %1078 = vmatpush.msra.mxu0 %v328
  %1079 = vmatpush.msra.mxu0 %v327
  %1080 = vmatpush.msra.mxu0 %v326
  %1081 = vmatpush.msra.mxu0 %v325
  %1082 = vmatpush.msra.mxu0 %v324
  %1083 = vmatpush.msra.mxu0 %v323
  %1084 = vmatpush.msra.mxu0 %v322
  %1085 = vmatpush.msra.mxu0 %v321
  %1086 = vmatpush.msra.mxu0 %v320
  %1087 = vmatpush.msra.mxu0 %v319
  %1088 = vmatpush.msra.mxu0 %v318
  %1089 = vmatpush.msra.mxu0 %v317
  %1090 = vmatmul.f32.gmra.mxu0 %v1018
  %v1091 = vpop.f32.mrf.mxu0
  %v1092 = vadd.f32 %v1051, %v1091
  %1093 = vmatmul.f32.gmra.mxu0 %v1020
  %v1094 = vpop.f32.mrf.mxu0
  %v1095 = vadd.f32 %v1054, %v1094
  %1096 = vmatmul.f32.gmra.mxu0 %v1022
  %v1097 = vpop.f32.mrf.mxu0
  %v1098 = vadd.f32 %v1057, %v1097
  %1099 = vmatmul.f32.gmra.mxu0 %v1024
  %v1100 = vpop.f32.mrf.mxu0
  %v1101 = vadd.f32 %v1060, %v1100
  %1102 = vmatmul.f32.gmra.mxu0 %v1026
  %v1103 = vpop.f32.mrf.mxu0
  %v1104 = vadd.f32 %v1063, %v1103
  %1105 = vmatmul.f32.gmra.mxu0 %v1028
  %v1106 = vpop.f32.mrf.mxu0
  %v1107 = vadd.f32 %v1066, %v1106
  %1108 = vmatmul.f32.gmra.mxu0 %v1030
  %v1109 = vpop.f32.mrf.mxu0
  %v1110 = vadd.f32 %v1069, %v1109
  %1111 = vmatmul.f32.gmra.mxu0 %v1032
  %v1112 = vpop.f32.mrf.mxu0
  %v1113 = vadd.f32 %v1072, %v1112
  %1114 = vdwg.mxu0
  %s1115 = scalar_lea.vmem %s4, 64
  %v1116 = vld [vmem:[%s1115] sm:$0xff]
  %v1117 = vld [vmem:[%s1115 + $0x8] sm:$0xff]
  %v1119 = vsel %vm535, %v1092, 0
  %v1122 = vsel %vm535, %v1095, 0
  %v1125 = vsel %vm535, %v1098, 0
  %v1128 = vsel %vm535, %v1101, 0
  %v1131 = vsel %vm535, %v1104, 0
  %v1134 = vsel %vm535, %v1107, 0
  %v1137 = vsel %vm535, %v1110, 0
  %v1140 = vsel %vm535, %v1113, 0
  %1142 = vmatpush.msra.mxu0 0.0
  %1143 = vmatpush.msra.mxu0 0.0
  %1144 = vmatpush.msra.mxu0 0.0
  %1145 = vmatpush.msra.mxu0 0.0
  %1146 = vmatpush.msra.mxu0 0.0
  %1147 = vmatpush.msra.mxu0 0.0
  %1148 = vmatpush.msra.mxu0 0.0
  %1149 = vmatpush.msra.mxu0 0.0
  %1150 = vmatpush.msra.mxu0 0.0
  %1151 = vmatpush.msra.mxu0 0.0
  %1152 = vmatpush.msra.mxu0 0.0
  %1153 = vmatpush.msra.mxu0 0.0
  %1154 = vmatpush.msra.mxu0 0.0
  %1155 = vmatpush.msra.mxu0 0.0
  %1156 = vmatpush.msra.mxu0 %v1117
  %1157 = vmatpush.msra.mxu0 %v1116
  %1158 = vmatmul.f32.gmra.mxu0 %v1119
  %v1159 = vpop.f32.mrf.mxu0
  %v1160 = vadd.f32 0.0, %v1159
  %1161 = vmatmul.f32.gmra.mxu0 %v1122
  %v1162 = vpop.f32.mrf.mxu0
  %v1163 = vadd.f32 0.0, %v1162
  %1164 = vmatmul.f32.gmra.mxu0 %v1125
  %v1165 = vpop.f32.mrf.mxu0
  %v1166 = vadd.f32 0.0, %v1165
  %1167 = vmatmul.f32.gmra.mxu0 %v1128
  %v1168 = vpop.f32.mrf.mxu0
  %v1169 = vadd.f32 0.0, %v1168
  %1170 = vmatmul.f32.gmra.mxu0 %v1131
  %v1171 = vpop.f32.mrf.mxu0
  %v1172 = vadd.f32 0.0, %v1171
  %1173 = vmatmul.f32.gmra.mxu0 %v1134
  %v1174 = vpop.f32.mrf.mxu0
  %v1175 = vadd.f32 0.0, %v1174
  %1176 = vmatmul.f32.gmra.mxu0 %v1137
  %v1177 = vpop.f32.mrf.mxu0
  %v1178 = vadd.f32 0.0, %v1177
  %1179 = vmatmul.f32.gmra.mxu0 %v1140
  %v1180 = vpop.f32.mrf.mxu0
  %v1181 = vadd.f32 0.0, %v1180
  %1182 = vdwg.mxu0
  %v1183 = vadd.f32 %v1008, %v1160
  %v1184 = vadd.f32 %v1009, %v1163
  %v1185 = vadd.f32 %v1010, %v1166
  %v1186 = vadd.f32 %v1011, %v1169
  %v1187 = vadd.f32 %v1012, %v1172
  %v1188 = vadd.f32 %v1013, %v1175
  %v1189 = vadd.f32 %v1014, %v1178
  %v1190 = vadd.f32 %v1015, %v1181
  %s1191 = scalar_lea.vmem %s3, 640
  %v1192 = vld [vmem:[%s1191] sm:$0xff]
  %v1193 = vld [vmem:[%s1191 + $0x8] sm:$0xff]
  %v1194 = vld [vmem:[%s1191 + $0x10] sm:$0xff]
  %v1195 = vld [vmem:[%s1191 + $0x18] sm:$0xff]
  %v1196 = vld [vmem:[%s1191 + $0x20] sm:$0xff]
  %v1197 = vld [vmem:[%s1191 + $0x28] sm:$0xff]
  %v1198 = vld [vmem:[%s1191 + $0x30] sm:$0xff]
  %v1199 = vld [vmem:[%s1191 + $0x38] sm:$0xff]
  %v1200 = vld [vmem:[%s1191 + $0x40] sm:$0xff]
  %v1201 = vld [vmem:[%s1191 + $0x48] sm:$0xff]
  %v1202 = vld [vmem:[%s1191 + $0x50] sm:$0xff]
  %v1203 = vld [vmem:[%s1191 + $0x58] sm:$0xff]
  %v1204 = vld [vmem:[%s1191 + $0x60] sm:$0xff]
  %v1205 = vld [vmem:[%s1191 + $0x68] sm:$0xff]
  %v1206 = vld [vmem:[%s1191 + $0x70] sm:$0xff]
  %v1207 = vld [vmem:[%s1191 + $0x78] sm:$0xff]
  %1208 = vmatpush.msra.mxu0 %v316
  %1209 = vmatpush.msra.mxu0 %v315
  %1210 = vmatpush.msra.mxu0 %v314
  %1211 = vmatpush.msra.mxu0 %v313
  %1212 = vmatpush.msra.mxu0 %v312
  %1213 = vmatpush.msra.mxu0 %v311
  %1214 = vmatpush.msra.mxu0 %v310
  %1215 = vmatpush.msra.mxu0 %v309
  %1216 = vmatpush.msra.mxu0 %v308
  %1217 = vmatpush.msra.mxu0 %v307
  %1218 = vmatpush.msra.mxu0 %v306
  %1219 = vmatpush.msra.mxu0 %v305
  %1220 = vmatpush.msra.mxu0 %v304
  %1221 = vmatpush.msra.mxu0 %v303
  %1222 = vmatpush.msra.mxu0 %v302
  %1223 = vmatpush.msra.mxu0 %v301
  %1224 = vmatmul.f32.gmra.mxu0 %v1192
  %v1225 = vpop.f32.mrf.mxu0
  %v1226 = vadd.f32 0.0, %v1225
  %1227 = vmatmul.f32.gmra.mxu0 %v1194
  %v1228 = vpop.f32.mrf.mxu0
  %v1229 = vadd.f32 0.0, %v1228
  %1230 = vmatmul.f32.gmra.mxu0 %v1196
  %v1231 = vpop.f32.mrf.mxu0
  %v1232 = vadd.f32 0.0, %v1231
  %1233 = vmatmul.f32.gmra.mxu0 %v1198
  %v1234 = vpop.f32.mrf.mxu0
  %v1235 = vadd.f32 0.0, %v1234
  %1236 = vmatmul.f32.gmra.mxu0 %v1200
  %v1237 = vpop.f32.mrf.mxu0
  %v1238 = vadd.f32 0.0, %v1237
  %1239 = vmatmul.f32.gmra.mxu0 %v1202
  %v1240 = vpop.f32.mrf.mxu0
  %v1241 = vadd.f32 0.0, %v1240
  %1242 = vmatmul.f32.gmra.mxu0 %v1204
  %v1243 = vpop.f32.mrf.mxu0
  %v1244 = vadd.f32 0.0, %v1243
  %1245 = vmatmul.f32.gmra.mxu0 %v1206
  %v1246 = vpop.f32.mrf.mxu0
  %v1247 = vadd.f32 0.0, %v1246
  %1248 = vdwg.mxu0
  %1249 = vmatpush.msra.mxu0 %v332
  %1250 = vmatpush.msra.mxu0 %v331
  %1251 = vmatpush.msra.mxu0 %v330
  %1252 = vmatpush.msra.mxu0 %v329
  %1253 = vmatpush.msra.mxu0 %v328
  %1254 = vmatpush.msra.mxu0 %v327
  %1255 = vmatpush.msra.mxu0 %v326
  %1256 = vmatpush.msra.mxu0 %v325
  %1257 = vmatpush.msra.mxu0 %v324
  %1258 = vmatpush.msra.mxu0 %v323
  %1259 = vmatpush.msra.mxu0 %v322
  %1260 = vmatpush.msra.mxu0 %v321
  %1261 = vmatpush.msra.mxu0 %v320
  %1262 = vmatpush.msra.mxu0 %v319
  %1263 = vmatpush.msra.mxu0 %v318
  %1264 = vmatpush.msra.mxu0 %v317
  %1265 = vmatmul.f32.gmra.mxu0 %v1193
  %v1266 = vpop.f32.mrf.mxu0
  %v1267 = vadd.f32 %v1226, %v1266
  %1268 = vmatmul.f32.gmra.mxu0 %v1195
  %v1269 = vpop.f32.mrf.mxu0
  %v1270 = vadd.f32 %v1229, %v1269
  %1271 = vmatmul.f32.gmra.mxu0 %v1197
  %v1272 = vpop.f32.mrf.mxu0
  %v1273 = vadd.f32 %v1232, %v1272
  %1274 = vmatmul.f32.gmra.mxu0 %v1199
  %v1275 = vpop.f32.mrf.mxu0
  %v1276 = vadd.f32 %v1235, %v1275
  %1277 = vmatmul.f32.gmra.mxu0 %v1201
  %v1278 = vpop.f32.mrf.mxu0
  %v1279 = vadd.f32 %v1238, %v1278
  %1280 = vmatmul.f32.gmra.mxu0 %v1203
  %v1281 = vpop.f32.mrf.mxu0
  %v1282 = vadd.f32 %v1241, %v1281
  %1283 = vmatmul.f32.gmra.mxu0 %v1205
  %v1284 = vpop.f32.mrf.mxu0
  %v1285 = vadd.f32 %v1244, %v1284
  %1286 = vmatmul.f32.gmra.mxu0 %v1207
  %v1287 = vpop.f32.mrf.mxu0
  %v1288 = vadd.f32 %v1247, %v1287
  %1289 = vdwg.mxu0
  %s1290 = scalar_lea.vmem %s4, 80
  %v1291 = vld [vmem:[%s1290] sm:$0xff]
  %v1292 = vld [vmem:[%s1290 + $0x8] sm:$0xff]
  %v1294 = vsel %vm535, %v1267, 0
  %v1297 = vsel %vm535, %v1270, 0
  %v1300 = vsel %vm535, %v1273, 0
  %v1303 = vsel %vm535, %v1276, 0
  %v1306 = vsel %vm535, %v1279, 0
  %v1309 = vsel %vm535, %v1282, 0
  %v1312 = vsel %vm535, %v1285, 0
  %v1315 = vsel %vm535, %v1288, 0
  %1317 = vmatpush.msra.mxu0 0.0
  %1318 = vmatpush.msra.mxu0 0.0
  %1319 = vmatpush.msra.mxu0 0.0
  %1320 = vmatpush.msra.mxu0 0.0
  %1321 = vmatpush.msra.mxu0 0.0
  %1322 = vmatpush.msra.mxu0 0.0
  %1323 = vmatpush.msra.mxu0 0.0
  %1324 = vmatpush.msra.mxu0 0.0
  %1325 = vmatpush.msra.mxu0 0.0
  %1326 = vmatpush.msra.mxu0 0.0
  %1327 = vmatpush.msra.mxu0 0.0
  %1328 = vmatpush.msra.mxu0 0.0
  %1329 = vmatpush.msra.mxu0 0.0
  %1330 = vmatpush.msra.mxu0 0.0
  %1331 = vmatpush.msra.mxu0 %v1292
  %1332 = vmatpush.msra.mxu0 %v1291
  %1333 = vmatmul.f32.gmra.mxu0 %v1294
  %v1334 = vpop.f32.mrf.mxu0
  %v1335 = vadd.f32 0.0, %v1334
  %1336 = vmatmul.f32.gmra.mxu0 %v1297
  %v1337 = vpop.f32.mrf.mxu0
  %v1338 = vadd.f32 0.0, %v1337
  %1339 = vmatmul.f32.gmra.mxu0 %v1300
  %v1340 = vpop.f32.mrf.mxu0
  %v1341 = vadd.f32 0.0, %v1340
  %1342 = vmatmul.f32.gmra.mxu0 %v1303
  %v1343 = vpop.f32.mrf.mxu0
  %v1344 = vadd.f32 0.0, %v1343
  %1345 = vmatmul.f32.gmra.mxu0 %v1306
  %v1346 = vpop.f32.mrf.mxu0
  %v1347 = vadd.f32 0.0, %v1346
  %1348 = vmatmul.f32.gmra.mxu0 %v1309
  %v1349 = vpop.f32.mrf.mxu0
  %v1350 = vadd.f32 0.0, %v1349
  %1351 = vmatmul.f32.gmra.mxu0 %v1312
  %v1352 = vpop.f32.mrf.mxu0
  %v1353 = vadd.f32 0.0, %v1352
  %1354 = vmatmul.f32.gmra.mxu0 %v1315
  %v1355 = vpop.f32.mrf.mxu0
  %v1356 = vadd.f32 0.0, %v1355
  %1357 = vdwg.mxu0
  %v1358 = vadd.f32 %v1183, %v1335
  %v1359 = vadd.f32 %v1184, %v1338
  %v1360 = vadd.f32 %v1185, %v1341
  %v1361 = vadd.f32 %v1186, %v1344
  %v1362 = vadd.f32 %v1187, %v1347
  %v1363 = vadd.f32 %v1188, %v1350
  %v1364 = vadd.f32 %v1189, %v1353
  %v1365 = vadd.f32 %v1190, %v1356
  %s1366 = scalar_lea.vmem %s3, 768
  %v1367 = vld [vmem:[%s1366] sm:$0xff]
  %v1368 = vld [vmem:[%s1366 + $0x8] sm:$0xff]
  %v1369 = vld [vmem:[%s1366 + $0x10] sm:$0xff]
  %v1370 = vld [vmem:[%s1366 + $0x18] sm:$0xff]
  %v1371 = vld [vmem:[%s1366 + $0x20] sm:$0xff]
  %v1372 = vld [vmem:[%s1366 + $0x28] sm:$0xff]
  %v1373 = vld [vmem:[%s1366 + $0x30] sm:$0xff]
  %v1374 = vld [vmem:[%s1366 + $0x38] sm:$0xff]
  %v1375 = vld [vmem:[%s1366 + $0x40] sm:$0xff]
  %v1376 = vld [vmem:[%s1366 + $0x48] sm:$0xff]
  %v1377 = vld [vmem:[%s1366 + $0x50] sm:$0xff]
  %v1378 = vld [vmem:[%s1366 + $0x58] sm:$0xff]
  %v1379 = vld [vmem:[%s1366 + $0x60] sm:$0xff]
  %v1380 = vld [vmem:[%s1366 + $0x68] sm:$0xff]
  %v1381 = vld [vmem:[%s1366 + $0x70] sm:$0xff]
  %v1382 = vld [vmem:[%s1366 + $0x78] sm:$0xff]
  %1383 = vmatpush.msra.mxu0 %v316
  %1384 = vmatpush.msra.mxu0 %v315
  %1385 = vmatpush.msra.mxu0 %v314
  %1386 = vmatpush.msra.mxu0 %v313
  %1387 = vmatpush.msra.mxu0 %v312
  %1388 = vmatpush.msra.mxu0 %v311
  %1389 = vmatpush.msra.mxu0 %v310
  %1390 = vmatpush.msra.mxu0 %v309
  %1391 = vmatpush.msra.mxu0 %v308
  %1392 = vmatpush.msra.mxu0 %v307
  %1393 = vmatpush.msra.mxu0 %v306
  %1394 = vmatpush.msra.mxu0 %v305
  %1395 = vmatpush.msra.mxu0 %v304
  %1396 = vmatpush.msra.mxu0 %v303
  %1397 = vmatpush.msra.mxu0 %v302
  %1398 = vmatpush.msra.mxu0 %v301
  %1399 = vmatmul.f32.gmra.mxu0 %v1367
  %v1400 = vpop.f32.mrf.mxu0
  %v1401 = vadd.f32 0.0, %v1400
  %1402 = vmatmul.f32.gmra.mxu0 %v1369
  %v1403 = vpop.f32.mrf.mxu0
  %v1404 = vadd.f32 0.0, %v1403
  %1405 = vmatmul.f32.gmra.mxu0 %v1371
  %v1406 = vpop.f32.mrf.mxu0
  %v1407 = vadd.f32 0.0, %v1406
  %1408 = vmatmul.f32.gmra.mxu0 %v1373
  %v1409 = vpop.f32.mrf.mxu0
  %v1410 = vadd.f32 0.0, %v1409
  %1411 = vmatmul.f32.gmra.mxu0 %v1375
  %v1412 = vpop.f32.mrf.mxu0
  %v1413 = vadd.f32 0.0, %v1412
  %1414 = vmatmul.f32.gmra.mxu0 %v1377
  %v1415 = vpop.f32.mrf.mxu0
  %v1416 = vadd.f32 0.0, %v1415
  %1417 = vmatmul.f32.gmra.mxu0 %v1379
  %v1418 = vpop.f32.mrf.mxu0
  %v1419 = vadd.f32 0.0, %v1418
  %1420 = vmatmul.f32.gmra.mxu0 %v1381
  %v1421 = vpop.f32.mrf.mxu0
  %v1422 = vadd.f32 0.0, %v1421
  %1423 = vdwg.mxu0
  %1424 = vmatpush.msra.mxu0 %v332
  %1425 = vmatpush.msra.mxu0 %v331
  %1426 = vmatpush.msra.mxu0 %v330
  %1427 = vmatpush.msra.mxu0 %v329
  %1428 = vmatpush.msra.mxu0 %v328
  %1429 = vmatpush.msra.mxu0 %v327
  %1430 = vmatpush.msra.mxu0 %v326
  %1431 = vmatpush.msra.mxu0 %v325
  %1432 = vmatpush.msra.mxu0 %v324
  %1433 = vmatpush.msra.mxu0 %v323
  %1434 = vmatpush.msra.mxu0 %v322
  %1435 = vmatpush.msra.mxu0 %v321
  %1436 = vmatpush.msra.mxu0 %v320
  %1437 = vmatpush.msra.mxu0 %v319
  %1438 = vmatpush.msra.mxu0 %v318
  %1439 = vmatpush.msra.mxu0 %v317
  %1440 = vmatmul.f32.gmra.mxu0 %v1368
  %v1441 = vpop.f32.mrf.mxu0
  %v1442 = vadd.f32 %v1401, %v1441
  %1443 = vmatmul.f32.gmra.mxu0 %v1370
  %v1444 = vpop.f32.mrf.mxu0
  %v1445 = vadd.f32 %v1404, %v1444
  %1446 = vmatmul.f32.gmra.mxu0 %v1372
  %v1447 = vpop.f32.mrf.mxu0
  %v1448 = vadd.f32 %v1407, %v1447
  %1449 = vmatmul.f32.gmra.mxu0 %v1374
  %v1450 = vpop.f32.mrf.mxu0
  %v1451 = vadd.f32 %v1410, %v1450
  %1452 = vmatmul.f32.gmra.mxu0 %v1376
  %v1453 = vpop.f32.mrf.mxu0
  %v1454 = vadd.f32 %v1413, %v1453
  %1455 = vmatmul.f32.gmra.mxu0 %v1378
  %v1456 = vpop.f32.mrf.mxu0
  %v1457 = vadd.f32 %v1416, %v1456
  %1458 = vmatmul.f32.gmra.mxu0 %v1380
  %v1459 = vpop.f32.mrf.mxu0
  %v1460 = vadd.f32 %v1419, %v1459
  %1461 = vmatmul.f32.gmra.mxu0 %v1382
  %v1462 = vpop.f32.mrf.mxu0
  %v1463 = vadd.f32 %v1422, %v1462
  %1464 = vdwg.mxu0
  %s1465 = scalar_lea.vmem %s4, 96
  %v1466 = vld [vmem:[%s1465] sm:$0xff]
  %v1467 = vld [vmem:[%s1465 + $0x8] sm:$0xff]
  %v1469 = vsel %vm535, %v1442, 0
  %v1472 = vsel %vm535, %v1445, 0
  %v1475 = vsel %vm535, %v1448, 0
  %v1478 = vsel %vm535, %v1451, 0
  %v1481 = vsel %vm535, %v1454, 0
  %v1484 = vsel %vm535, %v1457, 0
  %v1487 = vsel %vm535, %v1460, 0
  %v1490 = vsel %vm535, %v1463, 0
  %1492 = vmatpush.msra.mxu0 0.0
  %1493 = vmatpush.msra.mxu0 0.0
  %1494 = vmatpush.msra.mxu0 0.0
  %1495 = vmatpush.msra.mxu0 0.0
  %1496 = vmatpush.msra.mxu0 0.0
  %1497 = vmatpush.msra.mxu0 0.0
  %1498 = vmatpush.msra.mxu0 0.0
  %1499 = vmatpush.msra.mxu0 0.0
  %1500 = vmatpush.msra.mxu0 0.0
  %1501 = vmatpush.msra.mxu0 0.0
  %1502 = vmatpush.msra.mxu0 0.0
  %1503 = vmatpush.msra.mxu0 0.0
  %1504 = vmatpush.msra.mxu0 0.0
  %1505 = vmatpush.msra.mxu0 0.0
  %1506 = vmatpush.msra.mxu0 %v1467
  %1507 = vmatpush.msra.mxu0 %v1466
  %1508 = vmatmul.f32.gmra.mxu0 %v1469
  %v1509 = vpop.f32.mrf.mxu0
  %v1510 = vadd.f32 0.0, %v1509
  %1511 = vmatmul.f32.gmra.mxu0 %v1472
  %v1512 = vpop.f32.mrf.mxu0
  %v1513 = vadd.f32 0.0, %v1512
  %1514 = vmatmul.f32.gmra.mxu0 %v1475
  %v1515 = vpop.f32.mrf.mxu0
  %v1516 = vadd.f32 0.0, %v1515
  %1517 = vmatmul.f32.gmra.mxu0 %v1478
  %v1518 = vpop.f32.mrf.mxu0
  %v1519 = vadd.f32 0.0, %v1518
  %1520 = vmatmul.f32.gmra.mxu0 %v1481
  %v1521 = vpop.f32.mrf.mxu0
  %v1522 = vadd.f32 0.0, %v1521
  %1523 = vmatmul.f32.gmra.mxu0 %v1484
  %v1524 = vpop.f32.mrf.mxu0
  %v1525 = vadd.f32 0.0, %v1524
  %1526 = vmatmul.f32.gmra.mxu0 %v1487
  %v1527 = vpop.f32.mrf.mxu0
  %v1528 = vadd.f32 0.0, %v1527
  %1529 = vmatmul.f32.gmra.mxu0 %v1490
  %v1530 = vpop.f32.mrf.mxu0
  %v1531 = vadd.f32 0.0, %v1530
  %1532 = vdwg.mxu0
  %v1533 = vadd.f32 %v1358, %v1510
  %v1534 = vadd.f32 %v1359, %v1513
  %v1535 = vadd.f32 %v1360, %v1516
  %v1536 = vadd.f32 %v1361, %v1519
  %v1537 = vadd.f32 %v1362, %v1522
  %v1538 = vadd.f32 %v1363, %v1525
  %v1539 = vadd.f32 %v1364, %v1528
  %v1540 = vadd.f32 %v1365, %v1531
  %s1541 = scalar_lea.vmem %s3, 896
  %v1542 = vld [vmem:[%s1541] sm:$0xff]
  %v1543 = vld [vmem:[%s1541 + $0x8] sm:$0xff]
  %v1544 = vld [vmem:[%s1541 + $0x10] sm:$0xff]
  %v1545 = vld [vmem:[%s1541 + $0x18] sm:$0xff]
  %v1546 = vld [vmem:[%s1541 + $0x20] sm:$0xff]
  %v1547 = vld [vmem:[%s1541 + $0x28] sm:$0xff]
  %v1548 = vld [vmem:[%s1541 + $0x30] sm:$0xff]
  %v1549 = vld [vmem:[%s1541 + $0x38] sm:$0xff]
  %v1550 = vld [vmem:[%s1541 + $0x40] sm:$0xff]
  %v1551 = vld [vmem:[%s1541 + $0x48] sm:$0xff]
  %v1552 = vld [vmem:[%s1541 + $0x50] sm:$0xff]
  %v1553 = vld [vmem:[%s1541 + $0x58] sm:$0xff]
  %v1554 = vld [vmem:[%s1541 + $0x60] sm:$0xff]
  %v1555 = vld [vmem:[%s1541 + $0x68] sm:$0xff]
  %v1556 = vld [vmem:[%s1541 + $0x70] sm:$0xff]
  %v1557 = vld [vmem:[%s1541 + $0x78] sm:$0xff]
  %1558 = vmatpush.msra.mxu0 %v316
  %1559 = vmatpush.msra.mxu0 %v315
  %1560 = vmatpush.msra.mxu0 %v314
  %1561 = vmatpush.msra.mxu0 %v313
  %1562 = vmatpush.msra.mxu0 %v312
  %1563 = vmatpush.msra.mxu0 %v311
  %1564 = vmatpush.msra.mxu0 %v310
  %1565 = vmatpush.msra.mxu0 %v309
  %1566 = vmatpush.msra.mxu0 %v308
  %1567 = vmatpush.msra.mxu0 %v307
  %1568 = vmatpush.msra.mxu0 %v306
  %1569 = vmatpush.msra.mxu0 %v305
  %1570 = vmatpush.msra.mxu0 %v304
  %1571 = vmatpush.msra.mxu0 %v303
  %1572 = vmatpush.msra.mxu0 %v302
  %1573 = vmatpush.msra.mxu0 %v301
  %1574 = vmatmul.f32.gmra.mxu0 %v1542
  %v1575 = vpop.f32.mrf.mxu0
  %v1576 = vadd.f32 0.0, %v1575
  %1577 = vmatmul.f32.gmra.mxu0 %v1544
  %v1578 = vpop.f32.mrf.mxu0
  %v1579 = vadd.f32 0.0, %v1578
  %1580 = vmatmul.f32.gmra.mxu0 %v1546
  %v1581 = vpop.f32.mrf.mxu0
  %v1582 = vadd.f32 0.0, %v1581
  %1583 = vmatmul.f32.gmra.mxu0 %v1548
  %v1584 = vpop.f32.mrf.mxu0
  %v1585 = vadd.f32 0.0, %v1584
  %1586 = vmatmul.f32.gmra.mxu0 %v1550
  %v1587 = vpop.f32.mrf.mxu0
  %v1588 = vadd.f32 0.0, %v1587
  %1589 = vmatmul.f32.gmra.mxu0 %v1552
  %v1590 = vpop.f32.mrf.mxu0
  %v1591 = vadd.f32 0.0, %v1590
  %1592 = vmatmul.f32.gmra.mxu0 %v1554
  %v1593 = vpop.f32.mrf.mxu0
  %v1594 = vadd.f32 0.0, %v1593
  %1595 = vmatmul.f32.gmra.mxu0 %v1556
  %v1596 = vpop.f32.mrf.mxu0
  %v1597 = vadd.f32 0.0, %v1596
  %1598 = vdwg.mxu0
  %1599 = vmatpush.msra.mxu0 %v332
  %1600 = vmatpush.msra.mxu0 %v331
  %1601 = vmatpush.msra.mxu0 %v330
  %1602 = vmatpush.msra.mxu0 %v329
  %1603 = vmatpush.msra.mxu0 %v328
  %1604 = vmatpush.msra.mxu0 %v327
  %1605 = vmatpush.msra.mxu0 %v326
  %1606 = vmatpush.msra.mxu0 %v325
  %1607 = vmatpush.msra.mxu0 %v324
  %1608 = vmatpush.msra.mxu0 %v323
  %1609 = vmatpush.msra.mxu0 %v322
  %1610 = vmatpush.msra.mxu0 %v321
  %1611 = vmatpush.msra.mxu0 %v320
  %1612 = vmatpush.msra.mxu0 %v319
  %1613 = vmatpush.msra.mxu0 %v318
  %1614 = vmatpush.msra.mxu0 %v317
  %1615 = vmatmul.f32.gmra.mxu0 %v1543
  %v1616 = vpop.f32.mrf.mxu0
  %v1617 = vadd.f32 %v1576, %v1616
  %1618 = vmatmul.f32.gmra.mxu0 %v1545
  %v1619 = vpop.f32.mrf.mxu0
  %v1620 = vadd.f32 %v1579, %v1619
  %1621 = vmatmul.f32.gmra.mxu0 %v1547
  %v1622 = vpop.f32.mrf.mxu0
  %v1623 = vadd.f32 %v1582, %v1622
  %1624 = vmatmul.f32.gmra.mxu0 %v1549
  %v1625 = vpop.f32.mrf.mxu0
  %v1626 = vadd.f32 %v1585, %v1625
  %1627 = vmatmul.f32.gmra.mxu0 %v1551
  %v1628 = vpop.f32.mrf.mxu0
  %v1629 = vadd.f32 %v1588, %v1628
  %1630 = vmatmul.f32.gmra.mxu0 %v1553
  %v1631 = vpop.f32.mrf.mxu0
  %v1632 = vadd.f32 %v1591, %v1631
  %1633 = vmatmul.f32.gmra.mxu0 %v1555
  %v1634 = vpop.f32.mrf.mxu0
  %v1635 = vadd.f32 %v1594, %v1634
  %1636 = vmatmul.f32.gmra.mxu0 %v1557
  %v1637 = vpop.f32.mrf.mxu0
  %v1638 = vadd.f32 %v1597, %v1637
  %1639 = vdwg.mxu0
  %s1640 = scalar_lea.vmem %s4, 112
  %v1641 = vld [vmem:[%s1640] sm:$0xff]
  %v1642 = vld [vmem:[%s1640 + $0x8] sm:$0xff]
  %v1644 = vsel %vm535, %v1617, 0
  %v1647 = vsel %vm535, %v1620, 0
  %v1650 = vsel %vm535, %v1623, 0
  %v1653 = vsel %vm535, %v1626, 0
  %v1656 = vsel %vm535, %v1629, 0
  %v1659 = vsel %vm535, %v1632, 0
  %v1662 = vsel %vm535, %v1635, 0
  %v1665 = vsel %vm535, %v1638, 0
  %1667 = vmatpush.msra.mxu0 0.0
  %1668 = vmatpush.msra.mxu0 0.0
  %1669 = vmatpush.msra.mxu0 0.0
  %1670 = vmatpush.msra.mxu0 0.0
  %1671 = vmatpush.msra.mxu0 0.0
  %1672 = vmatpush.msra.mxu0 0.0
  %1673 = vmatpush.msra.mxu0 0.0
  %1674 = vmatpush.msra.mxu0 0.0
  %1675 = vmatpush.msra.mxu0 0.0
  %1676 = vmatpush.msra.mxu0 0.0
  %1677 = vmatpush.msra.mxu0 0.0
  %1678 = vmatpush.msra.mxu0 0.0
  %1679 = vmatpush.msra.mxu0 0.0
  %1680 = vmatpush.msra.mxu0 0.0
  %1681 = vmatpush.msra.mxu0 %v1642
  %1682 = vmatpush.msra.mxu0 %v1641
  %1683 = vmatmul.f32.gmra.mxu0 %v1644
  %v1684 = vpop.f32.mrf.mxu0
  %v1685 = vadd.f32 0.0, %v1684
  %1686 = vmatmul.f32.gmra.mxu0 %v1647
  %v1687 = vpop.f32.mrf.mxu0
  %v1688 = vadd.f32 0.0, %v1687
  %1689 = vmatmul.f32.gmra.mxu0 %v1650
  %v1690 = vpop.f32.mrf.mxu0
  %v1691 = vadd.f32 0.0, %v1690
  %1692 = vmatmul.f32.gmra.mxu0 %v1653
  %v1693 = vpop.f32.mrf.mxu0
  %v1694 = vadd.f32 0.0, %v1693
  %1695 = vmatmul.f32.gmra.mxu0 %v1656
  %v1696 = vpop.f32.mrf.mxu0
  %v1697 = vadd.f32 0.0, %v1696
  %1698 = vmatmul.f32.gmra.mxu0 %v1659
  %v1699 = vpop.f32.mrf.mxu0
  %v1700 = vadd.f32 0.0, %v1699
  %1701 = vmatmul.f32.gmra.mxu0 %v1662
  %v1702 = vpop.f32.mrf.mxu0
  %v1703 = vadd.f32 0.0, %v1702
  %1704 = vmatmul.f32.gmra.mxu0 %v1665
  %v1705 = vpop.f32.mrf.mxu0
  %v1706 = vadd.f32 0.0, %v1705
  %1707 = vdwg.mxu0
  %v1708 = vadd.f32 %v1533, %v1685
  %v1709 = vadd.f32 %v1534, %v1688
  %v1710 = vadd.f32 %v1535, %v1691
  %v1711 = vadd.f32 %v1536, %v1694
  %v1712 = vadd.f32 %v1537, %v1697
  %v1713 = vadd.f32 %v1538, %v1700
  %v1714 = vadd.f32 %v1539, %v1703
  %v1715 = vadd.f32 %v1540, %v1706
  %s1716 = scalar_lea.vmem %s3, 1024
  %v1717 = vld [vmem:[%s1716] sm:$0xff]
  %v1718 = vld [vmem:[%s1716 + $0x8] sm:$0xff]
  %v1719 = vld [vmem:[%s1716 + $0x10] sm:$0xff]
  %v1720 = vld [vmem:[%s1716 + $0x18] sm:$0xff]
  %v1721 = vld [vmem:[%s1716 + $0x20] sm:$0xff]
  %v1722 = vld [vmem:[%s1716 + $0x28] sm:$0xff]
  %v1723 = vld [vmem:[%s1716 + $0x30] sm:$0xff]
  %v1724 = vld [vmem:[%s1716 + $0x38] sm:$0xff]
  %v1725 = vld [vmem:[%s1716 + $0x40] sm:$0xff]
  %v1726 = vld [vmem:[%s1716 + $0x48] sm:$0xff]
  %v1727 = vld [vmem:[%s1716 + $0x50] sm:$0xff]
  %v1728 = vld [vmem:[%s1716 + $0x58] sm:$0xff]
  %v1729 = vld [vmem:[%s1716 + $0x60] sm:$0xff]
  %v1730 = vld [vmem:[%s1716 + $0x68] sm:$0xff]
  %v1731 = vld [vmem:[%s1716 + $0x70] sm:$0xff]
  %v1732 = vld [vmem:[%s1716 + $0x78] sm:$0xff]
  %1733 = vmatpush.msra.mxu0 %v316
  %1734 = vmatpush.msra.mxu0 %v315
  %1735 = vmatpush.msra.mxu0 %v314
  %1736 = vmatpush.msra.mxu0 %v313
  %1737 = vmatpush.msra.mxu0 %v312
  %1738 = vmatpush.msra.mxu0 %v311
  %1739 = vmatpush.msra.mxu0 %v310
  %1740 = vmatpush.msra.mxu0 %v309
  %1741 = vmatpush.msra.mxu0 %v308
  %1742 = vmatpush.msra.mxu0 %v307
  %1743 = vmatpush.msra.mxu0 %v306
  %1744 = vmatpush.msra.mxu0 %v305
  %1745 = vmatpush.msra.mxu0 %v304
  %1746 = vmatpush.msra.mxu0 %v303
  %1747 = vmatpush.msra.mxu0 %v302
  %1748 = vmatpush.msra.mxu0 %v301
  %1749 = vmatmul.f32.gmra.mxu0 %v1717
  %v1750 = vpop.f32.mrf.mxu0
  %v1751 = vadd.f32 0.0, %v1750
  %1752 = vmatmul.f32.gmra.mxu0 %v1719
  %v1753 = vpop.f32.mrf.mxu0
  %v1754 = vadd.f32 0.0, %v1753
  %1755 = vmatmul.f32.gmra.mxu0 %v1721
  %v1756 = vpop.f32.mrf.mxu0
  %v1757 = vadd.f32 0.0, %v1756
  %1758 = vmatmul.f32.gmra.mxu0 %v1723
  %v1759 = vpop.f32.mrf.mxu0
  %v1760 = vadd.f32 0.0, %v1759
  %1761 = vmatmul.f32.gmra.mxu0 %v1725
  %v1762 = vpop.f32.mrf.mxu0
  %v1763 = vadd.f32 0.0, %v1762
  %1764 = vmatmul.f32.gmra.mxu0 %v1727
  %v1765 = vpop.f32.mrf.mxu0
  %v1766 = vadd.f32 0.0, %v1765
  %1767 = vmatmul.f32.gmra.mxu0 %v1729
  %v1768 = vpop.f32.mrf.mxu0
  %v1769 = vadd.f32 0.0, %v1768
  %1770 = vmatmul.f32.gmra.mxu0 %v1731
  %v1771 = vpop.f32.mrf.mxu0
  %v1772 = vadd.f32 0.0, %v1771
  %1773 = vdwg.mxu0
  %1774 = vmatpush.msra.mxu0 %v332
  %1775 = vmatpush.msra.mxu0 %v331
  %1776 = vmatpush.msra.mxu0 %v330
  %1777 = vmatpush.msra.mxu0 %v329
  %1778 = vmatpush.msra.mxu0 %v328
  %1779 = vmatpush.msra.mxu0 %v327
  %1780 = vmatpush.msra.mxu0 %v326
  %1781 = vmatpush.msra.mxu0 %v325
  %1782 = vmatpush.msra.mxu0 %v324
  %1783 = vmatpush.msra.mxu0 %v323
  %1784 = vmatpush.msra.mxu0 %v322
  %1785 = vmatpush.msra.mxu0 %v321
  %1786 = vmatpush.msra.mxu0 %v320
  %1787 = vmatpush.msra.mxu0 %v319
  %1788 = vmatpush.msra.mxu0 %v318
  %1789 = vmatpush.msra.mxu0 %v317
  %1790 = vmatmul.f32.gmra.mxu0 %v1718
  %v1791 = vpop.f32.mrf.mxu0
  %v1792 = vadd.f32 %v1751, %v1791
  %1793 = vmatmul.f32.gmra.mxu0 %v1720
  %v1794 = vpop.f32.mrf.mxu0
  %v1795 = vadd.f32 %v1754, %v1794
  %1796 = vmatmul.f32.gmra.mxu0 %v1722
  %v1797 = vpop.f32.mrf.mxu0
  %v1798 = vadd.f32 %v1757, %v1797
  %1799 = vmatmul.f32.gmra.mxu0 %v1724
  %v1800 = vpop.f32.mrf.mxu0
  %v1801 = vadd.f32 %v1760, %v1800
  %1802 = vmatmul.f32.gmra.mxu0 %v1726
  %v1803 = vpop.f32.mrf.mxu0
  %v1804 = vadd.f32 %v1763, %v1803
  %1805 = vmatmul.f32.gmra.mxu0 %v1728
  %v1806 = vpop.f32.mrf.mxu0
  %v1807 = vadd.f32 %v1766, %v1806
  %1808 = vmatmul.f32.gmra.mxu0 %v1730
  %v1809 = vpop.f32.mrf.mxu0
  %v1810 = vadd.f32 %v1769, %v1809
  %1811 = vmatmul.f32.gmra.mxu0 %v1732
  %v1812 = vpop.f32.mrf.mxu0
  %v1813 = vadd.f32 %v1772, %v1812
  %1814 = vdwg.mxu0
  %s1815 = scalar_lea.vmem %s4, 128
  %v1816 = vld [vmem:[%s1815] sm:$0xff]
  %v1817 = vld [vmem:[%s1815 + $0x8] sm:$0xff]
  %v1819 = vsel %vm535, %v1792, 0
  %v1822 = vsel %vm535, %v1795, 0
  %v1825 = vsel %vm535, %v1798, 0
  %v1828 = vsel %vm535, %v1801, 0
  %v1831 = vsel %vm535, %v1804, 0
  %v1834 = vsel %vm535, %v1807, 0
  %v1837 = vsel %vm535, %v1810, 0
  %v1840 = vsel %vm535, %v1813, 0
  %1842 = vmatpush.msra.mxu0 0.0
  %1843 = vmatpush.msra.mxu0 0.0
  %1844 = vmatpush.msra.mxu0 0.0
  %1845 = vmatpush.msra.mxu0 0.0
  %1846 = vmatpush.msra.mxu0 0.0
  %1847 = vmatpush.msra.mxu0 0.0
  %1848 = vmatpush.msra.mxu0 0.0
  %1849 = vmatpush.msra.mxu0 0.0
  %1850 = vmatpush.msra.mxu0 0.0
  %1851 = vmatpush.msra.mxu0 0.0
  %1852 = vmatpush.msra.mxu0 0.0
  %1853 = vmatpush.msra.mxu0 0.0
  %1854 = vmatpush.msra.mxu0 0.0
  %1855 = vmatpush.msra.mxu0 0.0
  %1856 = vmatpush.msra.mxu0 %v1817
  %1857 = vmatpush.msra.mxu0 %v1816
  %1858 = vmatmul.f32.gmra.mxu0 %v1819
  %v1859 = vpop.f32.mrf.mxu0
  %v1860 = vadd.f32 0.0, %v1859
  %1861 = vmatmul.f32.gmra.mxu0 %v1822
  %v1862 = vpop.f32.mrf.mxu0
  %v1863 = vadd.f32 0.0, %v1862
  %1864 = vmatmul.f32.gmra.mxu0 %v1825
  %v1865 = vpop.f32.mrf.mxu0
  %v1866 = vadd.f32 0.0, %v1865
  %1867 = vmatmul.f32.gmra.mxu0 %v1828
  %v1868 = vpop.f32.mrf.mxu0
  %v1869 = vadd.f32 0.0, %v1868
  %1870 = vmatmul.f32.gmra.mxu0 %v1831
  %v1871 = vpop.f32.mrf.mxu0
  %v1872 = vadd.f32 0.0, %v1871
  %1873 = vmatmul.f32.gmra.mxu0 %v1834
  %v1874 = vpop.f32.mrf.mxu0
  %v1875 = vadd.f32 0.0, %v1874
  %1876 = vmatmul.f32.gmra.mxu0 %v1837
  %v1877 = vpop.f32.mrf.mxu0
  %v1878 = vadd.f32 0.0, %v1877
  %1879 = vmatmul.f32.gmra.mxu0 %v1840
  %v1880 = vpop.f32.mrf.mxu0
  %v1881 = vadd.f32 0.0, %v1880
  %1882 = vdwg.mxu0
  %v1883 = vadd.f32 %v1708, %v1860
  %v1884 = vadd.f32 %v1709, %v1863
  %v1885 = vadd.f32 %v1710, %v1866
  %v1886 = vadd.f32 %v1711, %v1869
  %v1887 = vadd.f32 %v1712, %v1872
  %v1888 = vadd.f32 %v1713, %v1875
  %v1889 = vadd.f32 %v1714, %v1878
  %v1890 = vadd.f32 %v1715, %v1881
  %v1891 = vld [vmem:[%s5] sm:$0x1]
  %v1893 = vperm.slane %v1891, 0
  %v1895 = vadd.f32 %v1883, %v1893
  %v1896 = vadd.f32 %v1884, %v1893
  %v1897 = vadd.f32 %v1885, %v1893
  %v1898 = vadd.f32 %v1886, %v1893
  %v1899 = vadd.f32 %v1887, %v1893
  %v1900 = vadd.f32 %v1888, %v1893
  %v1901 = vadd.f32 %v1889, %v1893
  %v1902 = vadd.f32 %v1890, %v1893
  %v1903 = vmax.f32 %v1895, 0.0
  %v1904 = vmax.f32 %v1896, 0.0
  %v1905 = vmax.f32 %v1897, 0.0
  %v1906 = vmax.f32 %v1898, 0.0
  %v1907 = vmax.f32 %v1899, 0.0
  %v1908 = vmax.f32 %v1900, 0.0
  %v1909 = vmax.f32 %v1901, 0.0
  %v1910 = vmax.f32 %v1902, 0.0
  %v1911 = vld [vmem:[%s6] sm:$0xff]
  %v1912 = vld [vmem:[%s6 + $0x8] sm:$0xff]
  %v1913 = vld [vmem:[%s6 + $0x10] sm:$0xff]
  %v1914 = vld [vmem:[%s6 + $0x18] sm:$0xff]
  %v1915 = vld [vmem:[%s7] sm:$0xff]
  %v1916 = vld [vmem:[%s7 + $0x8] sm:$0xff]
  %v1917 = vld [vmem:[%s7 + $0x10] sm:$0xff]
  %v1918 = vld [vmem:[%s7 + $0x18] sm:$0xff]
  %vm1919 = vcmask 261120
  %v1921 = vsel %vm1919, %v1907, 0
  %v1924 = vsel %vm1919, %v1908, 0
  %v1927 = vsel %vm1919, %v1909, 0
  %v1930 = vsel %vm1919, %v1910, 0
  %1932 = vmatpush.msra.mxu0 0.0
  %1933 = vmatpush.msra.mxu0 0.0
  %1934 = vmatpush.msra.mxu0 0.0
  %1935 = vmatpush.msra.mxu0 0.0
  %1936 = vmatpush.msra.mxu0 0.0
  %1937 = vmatpush.msra.mxu0 0.0
  %1938 = vmatpush.msra.mxu0 0.0
  %1939 = vmatpush.msra.mxu0 0.0
  %1940 = vmatpush.msra.mxu0 0.0
  %1941 = vmatpush.msra.mxu0 0.0
  %1942 = vmatpush.msra.mxu0 0.0
  %1943 = vmatpush.msra.mxu0 0.0
  %1944 = vmatpush.msra.mxu0 %v1918
  %1945 = vmatpush.msra.mxu0 %v1917
  %1946 = vmatpush.msra.mxu0 %v1916
  %1947 = vmatpush.msra.mxu0 %v1915
  %1948 = vmatmul.f32.gmra.mxu0 %v1921
  %v1949 = vpop.f32.mrf.mxu0
  %v1950 = vadd.f32 0.0, %v1949
  %1951 = vmatmul.f32.gmra.mxu0 %v1924
  %v1952 = vpop.f32.mrf.mxu0
  %v1953 = vadd.f32 0.0, %v1952
  %1954 = vmatmul.f32.gmra.mxu0 %v1927
  %v1955 = vpop.f32.mrf.mxu0
  %v1956 = vadd.f32 0.0, %v1955
  %1957 = vmatmul.f32.gmra.mxu0 %v1930
  %v1958 = vpop.f32.mrf.mxu0
  %v1959 = vadd.f32 0.0, %v1958
  %1960 = vdwg.mxu0
  %v1962 = vsel %vm1919, %v1903, 0
  %v1965 = vsel %vm1919, %v1904, 0
  %v1968 = vsel %vm1919, %v1905, 0
  %v1971 = vsel %vm1919, %v1906, 0
  %1973 = vmatpush.msra.mxu0 0.0
  %1974 = vmatpush.msra.mxu0 0.0
  %1975 = vmatpush.msra.mxu0 0.0
  %1976 = vmatpush.msra.mxu0 0.0
  %1977 = vmatpush.msra.mxu0 0.0
  %1978 = vmatpush.msra.mxu0 0.0
  %1979 = vmatpush.msra.mxu0 0.0
  %1980 = vmatpush.msra.mxu0 0.0
  %1981 = vmatpush.msra.mxu0 0.0
  %1982 = vmatpush.msra.mxu0 0.0
  %1983 = vmatpush.msra.mxu0 0.0
  %1984 = vmatpush.msra.mxu0 0.0
  %1985 = vmatpush.msra.mxu0 %v1914
  %1986 = vmatpush.msra.mxu0 %v1913
  %1987 = vmatpush.msra.mxu0 %v1912
  %1988 = vmatpush.msra.mxu0 %v1911
  %1989 = vmatmul.f32.gmra.mxu0 %v1962
  %v1990 = vpop.f32.mrf.mxu0
  %v1991 = vadd.f32 %v1950, %v1990
  %1992 = vmatmul.f32.gmra.mxu0 %v1965
  %v1993 = vpop.f32.mrf.mxu0
  %v1994 = vadd.f32 %v1953, %v1993
  %1995 = vmatmul.f32.gmra.mxu0 %v1968
  %v1996 = vpop.f32.mrf.mxu0
  %v1997 = vadd.f32 %v1956, %v1996
  %1998 = vmatmul.f32.gmra.mxu0 %v1971
  %v1999 = vpop.f32.mrf.mxu0
  %v2000 = vadd.f32 %v1959, %v1999
  %2001 = vdwg.mxu0
  %v2002 = vld [vmem:[%s8] sm:$0x1]
  %v2004 = vperm.slane %v2002, 0
  %v2006 = vadd.f32 %v1991, %v2004
  %v2007 = vadd.f32 %v1994, %v2004
  %v2008 = vadd.f32 %v1997, %v2004
  %v2009 = vadd.f32 %v2000, %v2004
  %v2010 = vmax.f32 %v2006, 0.0
  %v2011 = vmax.f32 %v2007, 0.0
  %v2012 = vmax.f32 %v2008, 0.0
  %v2013 = vmax.f32 %v2009, 0.0
  %v2014 = vsel %vm1919, %v2010, -inf
  %2015 = vmax.xlane.f32.xlu0 %v2014
  %v2016 = vpop.xlane.xlu0 %2015
  %v2017 = vsel %vm1919, %v2011, -inf
  %2018 = vmax.xlane.f32.xlu0 %v2017
  %v2019 = vpop.xlane.xlu0 %2018
  %v2020 = vsel %vm1919, %v2012, -inf
  %2021 = vmax.xlane.f32.xlu0 %v2020
  %v2022 = vpop.xlane.xlu0 %2021
  %v2023 = vsel %vm1919, %v2013, -inf
  %2024 = vmax.xlane.f32.xlu0 %v2023
  %v2025 = vpop.xlane.xlu0 %2024
  %v2026 = vmul.f32 %v2016, 0.5
  %v2027 = vmul.f32 %v2019, 0.5
  %v2028 = vmul.f32 %v2022, 0.5
  %v2029 = vmul.f32 %v2025, 0.5
  %vm2030 = vcmp.ge.f32.partialorder %v2010, %v2026
  %vm2031 = vcmp.ge.f32.partialorder %v2011, %v2027
  %vm2032 = vcmp.ge.f32.partialorder %v2012, %v2028
  %vm2033 = vcmp.ge.f32.partialorder %v2013, %v2029
  %v2034 = vsel %vm2030, %v2010, 0.0
  %v2035 = vsel %vm2031, %v2011, 0.0
  %v2036 = vsel %vm2032, %v2012, 0.0
  %v2037 = vsel %vm2033, %v2013, 0.0
  %v2038 = vld [vmem:[%s10] sm:$0xff]
  %v2039 = vld [vmem:[%s10 + $0x8] sm:$0xff]
  %v2040 = vld [vmem:[%s10 + $0x10] sm:$0xff]
  %v2041 = vld [vmem:[%s10 + $0x18] sm:$0xff]
  %v2042 = vld [vmem:[%s11] sm:$0xff]
  %v2043 = vld [vmem:[%s11 + $0x8] sm:$0xff]
  %v2044 = vld [vmem:[%s11 + $0x10] sm:$0xff]
  %v2045 = vld [vmem:[%s11 + $0x18] sm:$0xff]
  %v2047 = vsel %vm1919, %v2034, 0
  %v2050 = vsel %vm1919, %v2035, 0
  %v2053 = vsel %vm1919, %v2036, 0
  %v2056 = vsel %vm1919, %v2037, 0
  %2058 = vmatpush.msra.mxu0 0.0
  %2059 = vmatpush.msra.mxu0 0.0
  %2060 = vmatpush.msra.mxu0 0.0
  %2061 = vmatpush.msra.mxu0 0.0
  %2062 = vmatpush.msra.mxu0 0.0
  %2063 = vmatpush.msra.mxu0 0.0
  %2064 = vmatpush.msra.mxu0 0.0
  %2065 = vmatpush.msra.mxu0 0.0
  %2066 = vmatpush.msra.mxu0 0.0
  %2067 = vmatpush.msra.mxu0 0.0
  %2068 = vmatpush.msra.mxu0 0.0
  %2069 = vmatpush.msra.mxu0 0.0
  %2070 = vmatpush.msra.mxu0 %v2045
  %2071 = vmatpush.msra.mxu0 %v2044
  %2072 = vmatpush.msra.mxu0 %v2043
  %2073 = vmatpush.msra.mxu0 %v2042
  %2074 = vmatmul.f32.gmra.mxu0 %v2047
  %v2075 = vpop.f32.mrf.mxu0
  %v2076 = vadd.f32 0.0, %v2075
  %2077 = vmatmul.f32.gmra.mxu0 %v2050
  %v2078 = vpop.f32.mrf.mxu0
  %v2079 = vadd.f32 0.0, %v2078
  %2080 = vmatmul.f32.gmra.mxu0 %v2053
  %v2081 = vpop.f32.mrf.mxu0
  %v2082 = vadd.f32 0.0, %v2081
  %2083 = vmatmul.f32.gmra.mxu0 %v2056
  %v2084 = vpop.f32.mrf.mxu0
  %v2085 = vadd.f32 0.0, %v2084
  %2086 = vdwg.mxu0
  %2087 = vmatpush.msra.mxu0 0.0
  %2088 = vmatpush.msra.mxu0 0.0
  %2089 = vmatpush.msra.mxu0 0.0
  %2090 = vmatpush.msra.mxu0 0.0
  %2091 = vmatpush.msra.mxu0 0.0
  %2092 = vmatpush.msra.mxu0 0.0
  %2093 = vmatpush.msra.mxu0 0.0
  %2094 = vmatpush.msra.mxu0 0.0
  %2095 = vmatpush.msra.mxu0 0.0
  %2096 = vmatpush.msra.mxu0 0.0
  %2097 = vmatpush.msra.mxu0 0.0
  %2098 = vmatpush.msra.mxu0 0.0
  %2099 = vmatpush.msra.mxu0 %v2041
  %2100 = vmatpush.msra.mxu0 %v2040
  %2101 = vmatpush.msra.mxu0 %v2039
  %2102 = vmatpush.msra.mxu0 %v2038
  %2103 = vmatmul.f32.gmra.mxu0 %v1962
  %v2104 = vpop.f32.mrf.mxu0
  %v2105 = vadd.f32 %v2076, %v2104
  %2106 = vmatmul.f32.gmra.mxu0 %v1965
  %v2107 = vpop.f32.mrf.mxu0
  %v2108 = vadd.f32 %v2079, %v2107
  %2109 = vmatmul.f32.gmra.mxu0 %v1968
  %v2110 = vpop.f32.mrf.mxu0
  %v2111 = vadd.f32 %v2082, %v2110
  %2112 = vmatmul.f32.gmra.mxu0 %v1971
  %v2113 = vpop.f32.mrf.mxu0
  %v2114 = vadd.f32 %v2085, %v2113
  %2115 = vdwg.mxu0
  %v2116 = vld [vmem:[%s9] sm:$0xff]
  %v2117 = vld [vmem:[%s9 + $0x8] sm:$0xff]
  %v2118 = vld [vmem:[%s9 + $0x10] sm:$0xff]
  %v2119 = vld [vmem:[%s9 + $0x18] sm:$0xff]
  %s2120 = scalar_lea.vmem %s10, 32
  %v2121 = vld [vmem:[%s2120] sm:$0xff]
  %v2122 = vld [vmem:[%s2120 + $0x8] sm:$0xff]
  %v2123 = vld [vmem:[%s2120 + $0x10] sm:$0xff]
  %v2124 = vld [vmem:[%s2120 + $0x18] sm:$0xff]
  %s2125 = scalar_lea.vmem %s11, 32
  %v2126 = vld [vmem:[%s2125] sm:$0xff]
  %v2127 = vld [vmem:[%s2125 + $0x8] sm:$0xff]
  %v2128 = vld [vmem:[%s2125 + $0x10] sm:$0xff]
  %v2129 = vld [vmem:[%s2125 + $0x18] sm:$0xff]
  %2130 = vmatpush.msra.mxu0 0.0
  %2131 = vmatpush.msra.mxu0 0.0
  %2132 = vmatpush.msra.mxu0 0.0
  %2133 = vmatpush.msra.mxu0 0.0
  %2134 = vmatpush.msra.mxu0 0.0
  %2135 = vmatpush.msra.mxu0 0.0
  %2136 = vmatpush.msra.mxu0 0.0
  %2137 = vmatpush.msra.mxu0 0.0
  %2138 = vmatpush.msra.mxu0 0.0
  %2139 = vmatpush.msra.mxu0 0.0
  %2140 = vmatpush.msra.mxu0 0.0
  %2141 = vmatpush.msra.mxu0 0.0
  %2142 = vmatpush.msra.mxu0 %v2129
  %2143 = vmatpush.msra.mxu0 %v2128
  %2144 = vmatpush.msra.mxu0 %v2127
  %2145 = vmatpush.msra.mxu0 %v2126
  %2146 = vmatmul.f32.gmra.mxu0 %v2047
  %v2147 = vpop.f32.mrf.mxu0
  %v2148 = vadd.f32 0.0, %v2147
  %2149 = vmatmul.f32.gmra.mxu0 %v2050
  %v2150 = vpop.f32.mrf.mxu0
  %v2151 = vadd.f32 0.0, %v2150
  %2152 = vmatmul.f32.gmra.mxu0 %v2053
  %v2153 = vpop.f32.mrf.mxu0
  %v2154 = vadd.f32 0.0, %v2153
  %2155 = vmatmul.f32.gmra.mxu0 %v2056
  %v2156 = vpop.f32.mrf.mxu0
  %v2157 = vadd.f32 0.0, %v2156
  %2158 = vdwg.mxu0
  %2159 = vmatpush.msra.mxu0 0.0
  %2160 = vmatpush.msra.mxu0 0.0
  %2161 = vmatpush.msra.mxu0 0.0
  %2162 = vmatpush.msra.mxu0 0.0
  %2163 = vmatpush.msra.mxu0 0.0
  %2164 = vmatpush.msra.mxu0 0.0
  %2165 = vmatpush.msra.mxu0 0.0
  %2166 = vmatpush.msra.mxu0 0.0
  %2167 = vmatpush.msra.mxu0 0.0
  %2168 = vmatpush.msra.mxu0 0.0
  %2169 = vmatpush.msra.mxu0 0.0
  %2170 = vmatpush.msra.mxu0 0.0
  %2171 = vmatpush.msra.mxu0 %v2124
  %2172 = vmatpush.msra.mxu0 %v2123
  %2173 = vmatpush.msra.mxu0 %v2122
  %2174 = vmatpush.msra.mxu0 %v2121
  %2175 = vmatmul.f32.gmra.mxu0 %v1962
  %v2176 = vpop.f32.mrf.mxu0
  %v2177 = vadd.f32 %v2148, %v2176
  %2178 = vmatmul.f32.gmra.mxu0 %v1965
  %v2179 = vpop.f32.mrf.mxu0
  %v2180 = vadd.f32 %v2151, %v2179
  %2181 = vmatmul.f32.gmra.mxu0 %v1968
  %v2182 = vpop.f32.mrf.mxu0
  %v2183 = vadd.f32 %v2154, %v2182
  %2184 = vmatmul.f32.gmra.mxu0 %v1971
  %v2185 = vpop.f32.mrf.mxu0
  %v2186 = vadd.f32 %v2157, %v2185
  %2187 = vdwg.mxu0
  %s2188 = scalar_lea.vmem %s9, 32
  %v2189 = vld [vmem:[%s2188] sm:$0xff]
  %v2190 = vld [vmem:[%s2188 + $0x8] sm:$0xff]
  %v2191 = vld [vmem:[%s2188 + $0x10] sm:$0xff]
  %v2192 = vld [vmem:[%s2188 + $0x18] sm:$0xff]
  %v2194 = vsel %vm1919, %v2189, 0
  %v2197 = vsel %vm1919, %v2190, 0
  %v2200 = vsel %vm1919, %v2191, 0
  %v2203 = vsel %vm1919, %v2192, 0
  %2205 = vmatpush.msra.mxu0 0.0
  %2206 = vmatpush.msra.mxu0 0.0
  %2207 = vmatpush.msra.mxu0 0.0
  %2208 = vmatpush.msra.mxu0 0.0
  %2209 = vmatpush.msra.mxu0 0.0
  %2210 = vmatpush.msra.mxu0 0.0
  %2211 = vmatpush.msra.mxu0 0.0
  %2212 = vmatpush.msra.mxu0 0.0
  %2213 = vmatpush.msra.mxu0 0.0
  %2214 = vmatpush.msra.mxu0 0.0
  %2215 = vmatpush.msra.mxu0 0.0
  %2216 = vmatpush.msra.mxu0 0.0
  %2217 = vmatpush.msra.mxu0 %v2186
  %2218 = vmatpush.msra.mxu0 %v2183
  %2219 = vmatpush.msra.mxu0 %v2180
  %2220 = vmatpush.msra.mxu0 %v2177
  %2221 = vmatmul.f32.gmra.mxu0 %v2194
  %v2222 = vpop.f32.mrf.mxu0
  %v2223 = vadd.f32 0.0, %v2222
  %2224 = vmatmul.f32.gmra.mxu0 %v2197
  %v2225 = vpop.f32.mrf.mxu0
  %v2226 = vadd.f32 0.0, %v2225
  %2227 = vmatmul.f32.gmra.mxu0 %v2200
  %v2228 = vpop.f32.mrf.mxu0
  %v2229 = vadd.f32 0.0, %v2228
  %2230 = vmatmul.f32.gmra.mxu0 %v2203
  %v2231 = vpop.f32.mrf.mxu0
  %v2232 = vadd.f32 0.0, %v2231
  %2233 = vdwg.mxu0
  %v2235 = vsel %vm1919, %v2116, 0
  %v2238 = vsel %vm1919, %v2117, 0
  %v2241 = vsel %vm1919, %v2118, 0
  %v2244 = vsel %vm1919, %v2119, 0
  %2246 = vmatpush.msra.mxu0 0.0
  %2247 = vmatpush.msra.mxu0 0.0
  %2248 = vmatpush.msra.mxu0 0.0
  %2249 = vmatpush.msra.mxu0 0.0
  %2250 = vmatpush.msra.mxu0 0.0
  %2251 = vmatpush.msra.mxu0 0.0
  %2252 = vmatpush.msra.mxu0 0.0
  %2253 = vmatpush.msra.mxu0 0.0
  %2254 = vmatpush.msra.mxu0 0.0
  %2255 = vmatpush.msra.mxu0 0.0
  %2256 = vmatpush.msra.mxu0 0.0
  %2257 = vmatpush.msra.mxu0 0.0
  %2258 = vmatpush.msra.mxu0 %v2114
  %2259 = vmatpush.msra.mxu0 %v2111
  %2260 = vmatpush.msra.mxu0 %v2108
  %2261 = vmatpush.msra.mxu0 %v2105
  %2262 = vmatmul.f32.gmra.mxu0 %v2235
  %v2263 = vpop.f32.mrf.mxu0
  %v2264 = vadd.f32 %v2223, %v2263
  %2265 = vmatmul.f32.gmra.mxu0 %v2238
  %v2266 = vpop.f32.mrf.mxu0
  %v2267 = vadd.f32 %v2226, %v2266
  %2268 = vmatmul.f32.gmra.mxu0 %v2241
  %v2269 = vpop.f32.mrf.mxu0
  %v2270 = vadd.f32 %v2229, %v2269
  %2271 = vmatmul.f32.gmra.mxu0 %v2244
  %v2272 = vpop.f32.mrf.mxu0
  %v2273 = vadd.f32 %v2232, %v2272
  %2274 = vdwg.mxu0
  %s2275 = scalar_lea.vmem %s10, 64
  %v2276 = vld [vmem:[%s2275] sm:$0xff]
  %v2277 = vld [vmem:[%s2275 + $0x8] sm:$0xff]
  %v2278 = vld [vmem:[%s2275 + $0x10] sm:$0xff]
  %v2279 = vld [vmem:[%s2275 + $0x18] sm:$0xff]
  %s2280 = scalar_lea.vmem %s11, 64
  %v2281 = vld [vmem:[%s2280] sm:$0xff]
  %v2282 = vld [vmem:[%s2280 + $0x8] sm:$0xff]
  %v2283 = vld [vmem:[%s2280 + $0x10] sm:$0xff]
  %v2284 = vld [vmem:[%s2280 + $0x18] sm:$0xff]
  %2285 = vmatpush.msra.mxu0 0.0
  %2286 = vmatpush.msra.mxu0 0.0
  %2287 = vmatpush.msra.mxu0 0.0
  %2288 = vmatpush.msra.mxu0 0.0
  %2289 = vmatpush.msra.mxu0 0.0
  %2290 = vmatpush.msra.mxu0 0.0
  %2291 = vmatpush.msra.mxu0 0.0
  %2292 = vmatpush.msra.mxu0 0.0
  %2293 = vmatpush.msra.mxu0 0.0
  %2294 = vmatpush.msra.mxu0 0.0
  %2295 = vmatpush.msra.mxu0 0.0
  %2296 = vmatpush.msra.mxu0 0.0
  %2297 = vmatpush.msra.mxu0 %v2284
  %2298 = vmatpush.msra.mxu0 %v2283
  %2299 = vmatpush.msra.mxu0 %v2282
  %2300 = vmatpush.msra.mxu0 %v2281
  %2301 = vmatmul.f32.gmra.mxu0 %v2047
  %v2302 = vpop.f32.mrf.mxu0
  %v2303 = vadd.f32 0.0, %v2302
  %2304 = vmatmul.f32.gmra.mxu0 %v2050
  %v2305 = vpop.f32.mrf.mxu0
  %v2306 = vadd.f32 0.0, %v2305
  %2307 = vmatmul.f32.gmra.mxu0 %v2053
  %v2308 = vpop.f32.mrf.mxu0
  %v2309 = vadd.f32 0.0, %v2308
  %2310 = vmatmul.f32.gmra.mxu0 %v2056
  %v2311 = vpop.f32.mrf.mxu0
  %v2312 = vadd.f32 0.0, %v2311
  %2313 = vdwg.mxu0
  %2314 = vmatpush.msra.mxu0 0.0
  %2315 = vmatpush.msra.mxu0 0.0
  %2316 = vmatpush.msra.mxu0 0.0
  %2317 = vmatpush.msra.mxu0 0.0
  %2318 = vmatpush.msra.mxu0 0.0
  %2319 = vmatpush.msra.mxu0 0.0
  %2320 = vmatpush.msra.mxu0 0.0
  %2321 = vmatpush.msra.mxu0 0.0
  %2322 = vmatpush.msra.mxu0 0.0
  %2323 = vmatpush.msra.mxu0 0.0
  %2324 = vmatpush.msra.mxu0 0.0
  %2325 = vmatpush.msra.mxu0 0.0
  %2326 = vmatpush.msra.mxu0 %v2279
  %2327 = vmatpush.msra.mxu0 %v2278
  %2328 = vmatpush.msra.mxu0 %v2277
  %2329 = vmatpush.msra.mxu0 %v2276
  %2330 = vmatmul.f32.gmra.mxu0 %v1962
  %v2331 = vpop.f32.mrf.mxu0
  %v2332 = vadd.f32 %v2303, %v2331
  %2333 = vmatmul.f32.gmra.mxu0 %v1965
  %v2334 = vpop.f32.mrf.mxu0
  %v2335 = vadd.f32 %v2306, %v2334
  %2336 = vmatmul.f32.gmra.mxu0 %v1968
  %v2337 = vpop.f32.mrf.mxu0
  %v2338 = vadd.f32 %v2309, %v2337
  %2339 = vmatmul.f32.gmra.mxu0 %v1971
  %v2340 = vpop.f32.mrf.mxu0
  %v2341 = vadd.f32 %v2312, %v2340
  %2342 = vdwg.mxu0
  %s2343 = scalar_lea.vmem %s9, 64
  %v2344 = vld [vmem:[%s2343] sm:$0xff]
  %v2345 = vld [vmem:[%s2343 + $0x8] sm:$0xff]
  %v2346 = vld [vmem:[%s2343 + $0x10] sm:$0xff]
  %v2347 = vld [vmem:[%s2343 + $0x18] sm:$0xff]
  %v2349 = vsel %vm1919, %v2344, 0
  %v2352 = vsel %vm1919, %v2345, 0
  %v2355 = vsel %vm1919, %v2346, 0
  %v2358 = vsel %vm1919, %v2347, 0
  %2360 = vmatpush.msra.mxu0 0.0
  %2361 = vmatpush.msra.mxu0 0.0
  %2362 = vmatpush.msra.mxu0 0.0
  %2363 = vmatpush.msra.mxu0 0.0
  %2364 = vmatpush.msra.mxu0 0.0
  %2365 = vmatpush.msra.mxu0 0.0
  %2366 = vmatpush.msra.mxu0 0.0
  %2367 = vmatpush.msra.mxu0 0.0
  %2368 = vmatpush.msra.mxu0 0.0
  %2369 = vmatpush.msra.mxu0 0.0
  %2370 = vmatpush.msra.mxu0 0.0
  %2371 = vmatpush.msra.mxu0 0.0
  %2372 = vmatpush.msra.mxu0 %v2341
  %2373 = vmatpush.msra.mxu0 %v2338
  %2374 = vmatpush.msra.mxu0 %v2335
  %2375 = vmatpush.msra.mxu0 %v2332
  %2376 = vmatmul.f32.gmra.mxu0 %v2349
  %v2377 = vpop.f32.mrf.mxu0
  %v2378 = vadd.f32 0.0, %v2377
  %2379 = vmatmul.f32.gmra.mxu0 %v2352
  %v2380 = vpop.f32.mrf.mxu0
  %v2381 = vadd.f32 0.0, %v2380
  %2382 = vmatmul.f32.gmra.mxu0 %v2355
  %v2383 = vpop.f32.mrf.mxu0
  %v2384 = vadd.f32 0.0, %v2383
  %2385 = vmatmul.f32.gmra.mxu0 %v2358
  %v2386 = vpop.f32.mrf.mxu0
  %v2387 = vadd.f32 0.0, %v2386
  %2388 = vdwg.mxu0
  %v2389 = vadd.f32 %v2264, %v2378
  %v2390 = vadd.f32 %v2267, %v2381
  %v2391 = vadd.f32 %v2270, %v2384
  %v2392 = vadd.f32 %v2273, %v2387
  %s2393 = scalar_lea.vmem %s10, 96
  %v2394 = vld [vmem:[%s2393] sm:$0xff]
  %v2395 = vld [vmem:[%s2393 + $0x8] sm:$0xff]
  %v2396 = vld [vmem:[%s2393 + $0x10] sm:$0xff]
  %v2397 = vld [vmem:[%s2393 + $0x18] sm:$0xff]
  %s2398 = scalar_lea.vmem %s11, 96
  %v2399 = vld [vmem:[%s2398] sm:$0xff]
  %v2400 = vld [vmem:[%s2398 + $0x8] sm:$0xff]
  %v2401 = vld [vmem:[%s2398 + $0x10] sm:$0xff]
  %v2402 = vld [vmem:[%s2398 + $0x18] sm:$0xff]
  %2403 = vmatpush.msra.mxu0 0.0
  %2404 = vmatpush.msra.mxu0 0.0
  %2405 = vmatpush.msra.mxu0 0.0
  %2406 = vmatpush.msra.mxu0 0.0
  %2407 = vmatpush.msra.mxu0 0.0
  %2408 = vmatpush.msra.mxu0 0.0
  %2409 = vmatpush.msra.mxu0 0.0
  %2410 = vmatpush.msra.mxu0 0.0
  %2411 = vmatpush.msra.mxu0 0.0
  %2412 = vmatpush.msra.mxu0 0.0
  %2413 = vmatpush.msra.mxu0 0.0
  %2414 = vmatpush.msra.mxu0 0.0
  %2415 = vmatpush.msra.mxu0 %v2402
  %2416 = vmatpush.msra.mxu0 %v2401
  %2417 = vmatpush.msra.mxu0 %v2400
  %2418 = vmatpush.msra.mxu0 %v2399
  %2419 = vmatmul.f32.gmra.mxu0 %v2047
  %v2420 = vpop.f32.mrf.mxu0
  %v2421 = vadd.f32 0.0, %v2420
  %2422 = vmatmul.f32.gmra.mxu0 %v2050
  %v2423 = vpop.f32.mrf.mxu0
  %v2424 = vadd.f32 0.0, %v2423
  %2425 = vmatmul.f32.gmra.mxu0 %v2053
  %v2426 = vpop.f32.mrf.mxu0
  %v2427 = vadd.f32 0.0, %v2426
  %2428 = vmatmul.f32.gmra.mxu0 %v2056
  %v2429 = vpop.f32.mrf.mxu0
  %v2430 = vadd.f32 0.0, %v2429
  %2431 = vdwg.mxu0
  %2432 = vmatpush.msra.mxu0 0.0
  %2433 = vmatpush.msra.mxu0 0.0
  %2434 = vmatpush.msra.mxu0 0.0
  %2435 = vmatpush.msra.mxu0 0.0
  %2436 = vmatpush.msra.mxu0 0.0
  %2437 = vmatpush.msra.mxu0 0.0
  %2438 = vmatpush.msra.mxu0 0.0
  %2439 = vmatpush.msra.mxu0 0.0
  %2440 = vmatpush.msra.mxu0 0.0
  %2441 = vmatpush.msra.mxu0 0.0
  %2442 = vmatpush.msra.mxu0 0.0
  %2443 = vmatpush.msra.mxu0 0.0
  %2444 = vmatpush.msra.mxu0 %v2397
  %2445 = vmatpush.msra.mxu0 %v2396
  %2446 = vmatpush.msra.mxu0 %v2395
  %2447 = vmatpush.msra.mxu0 %v2394
  %2448 = vmatmul.f32.gmra.mxu0 %v1962
  %v2449 = vpop.f32.mrf.mxu0
  %v2450 = vadd.f32 %v2421, %v2449
  %2451 = vmatmul.f32.gmra.mxu0 %v1965
  %v2452 = vpop.f32.mrf.mxu0
  %v2453 = vadd.f32 %v2424, %v2452
  %2454 = vmatmul.f32.gmra.mxu0 %v1968
  %v2455 = vpop.f32.mrf.mxu0
  %v2456 = vadd.f32 %v2427, %v2455
  %2457 = vmatmul.f32.gmra.mxu0 %v1971
  %v2458 = vpop.f32.mrf.mxu0
  %v2459 = vadd.f32 %v2430, %v2458
  %2460 = vdwg.mxu0
  %s2461 = scalar_lea.vmem %s9, 96
  %v2462 = vld [vmem:[%s2461] sm:$0xff]
  %v2463 = vld [vmem:[%s2461 + $0x8] sm:$0xff]
  %v2464 = vld [vmem:[%s2461 + $0x10] sm:$0xff]
  %v2465 = vld [vmem:[%s2461 + $0x18] sm:$0xff]
  %v2467 = vsel %vm1919, %v2462, 0
  %v2470 = vsel %vm1919, %v2463, 0
  %v2473 = vsel %vm1919, %v2464, 0
  %v2476 = vsel %vm1919, %v2465, 0
  %2478 = vmatpush.msra.mxu0 0.0
  %2479 = vmatpush.msra.mxu0 0.0
  %2480 = vmatpush.msra.mxu0 0.0
  %2481 = vmatpush.msra.mxu0 0.0
  %2482 = vmatpush.msra.mxu0 0.0
  %2483 = vmatpush.msra.mxu0 0.0
  %2484 = vmatpush.msra.mxu0 0.0
  %2485 = vmatpush.msra.mxu0 0.0
  %2486 = vmatpush.msra.mxu0 0.0
  %2487 = vmatpush.msra.mxu0 0.0
  %2488 = vmatpush.msra.mxu0 0.0
  %2489 = vmatpush.msra.mxu0 0.0
  %2490 = vmatpush.msra.mxu0 %v2459
  %2491 = vmatpush.msra.mxu0 %v2456
  %2492 = vmatpush.msra.mxu0 %v2453
  %2493 = vmatpush.msra.mxu0 %v2450
  %2494 = vmatmul.f32.gmra.mxu0 %v2467
  %v2495 = vpop.f32.mrf.mxu0
  %v2496 = vadd.f32 0.0, %v2495
  %2497 = vmatmul.f32.gmra.mxu0 %v2470
  %v2498 = vpop.f32.mrf.mxu0
  %v2499 = vadd.f32 0.0, %v2498
  %2500 = vmatmul.f32.gmra.mxu0 %v2473
  %v2501 = vpop.f32.mrf.mxu0
  %v2502 = vadd.f32 0.0, %v2501
  %2503 = vmatmul.f32.gmra.mxu0 %v2476
  %v2504 = vpop.f32.mrf.mxu0
  %v2505 = vadd.f32 0.0, %v2504
  %2506 = vdwg.mxu0
  %v2507 = vadd.f32 %v2389, %v2496
  %v2508 = vadd.f32 %v2390, %v2499
  %v2509 = vadd.f32 %v2391, %v2502
  %v2510 = vadd.f32 %v2392, %v2505
  %s2511 = scalar_lea.vmem %s10, 128
  %v2512 = vld [vmem:[%s2511] sm:$0xff]
  %v2513 = vld [vmem:[%s2511 + $0x8] sm:$0xff]
  %v2514 = vld [vmem:[%s2511 + $0x10] sm:$0xff]
  %v2515 = vld [vmem:[%s2511 + $0x18] sm:$0xff]
  %s2516 = scalar_lea.vmem %s11, 128
  %v2517 = vld [vmem:[%s2516] sm:$0xff]
  %v2518 = vld [vmem:[%s2516 + $0x8] sm:$0xff]
  %v2519 = vld [vmem:[%s2516 + $0x10] sm:$0xff]
  %v2520 = vld [vmem:[%s2516 + $0x18] sm:$0xff]
  %2521 = vmatpush.msra.mxu0 0.0
  %2522 = vmatpush.msra.mxu0 0.0
  %2523 = vmatpush.msra.mxu0 0.0
  %2524 = vmatpush.msra.mxu0 0.0
  %2525 = vmatpush.msra.mxu0 0.0
  %2526 = vmatpush.msra.mxu0 0.0
  %2527 = vmatpush.msra.mxu0 0.0
  %2528 = vmatpush.msra.mxu0 0.0
  %2529 = vmatpush.msra.mxu0 0.0
  %2530 = vmatpush.msra.mxu0 0.0
  %2531 = vmatpush.msra.mxu0 0.0
  %2532 = vmatpush.msra.mxu0 0.0
  %2533 = vmatpush.msra.mxu0 %v2520
  %2534 = vmatpush.msra.mxu0 %v2519
  %2535 = vmatpush.msra.mxu0 %v2518
  %2536 = vmatpush.msra.mxu0 %v2517
  %2537 = vmatmul.f32.gmra.mxu0 %v2047
  %v2538 = vpop.f32.mrf.mxu0
  %v2539 = vadd.f32 0.0, %v2538
  %2540 = vmatmul.f32.gmra.mxu0 %v2050
  %v2541 = vpop.f32.mrf.mxu0
  %v2542 = vadd.f32 0.0, %v2541
  %2543 = vmatmul.f32.gmra.mxu0 %v2053
  %v2544 = vpop.f32.mrf.mxu0
  %v2545 = vadd.f32 0.0, %v2544
  %2546 = vmatmul.f32.gmra.mxu0 %v2056
  %v2547 = vpop.f32.mrf.mxu0
  %v2548 = vadd.f32 0.0, %v2547
  %2549 = vdwg.mxu0
  %2550 = vmatpush.msra.mxu0 0.0
  %2551 = vmatpush.msra.mxu0 0.0
  %2552 = vmatpush.msra.mxu0 0.0
  %2553 = vmatpush.msra.mxu0 0.0
  %2554 = vmatpush.msra.mxu0 0.0
  %2555 = vmatpush.msra.mxu0 0.0
  %2556 = vmatpush.msra.mxu0 0.0
  %2557 = vmatpush.msra.mxu0 0.0
  %2558 = vmatpush.msra.mxu0 0.0
  %2559 = vmatpush.msra.mxu0 0.0
  %2560 = vmatpush.msra.mxu0 0.0
  %2561 = vmatpush.msra.mxu0 0.0
  %2562 = vmatpush.msra.mxu0 %v2515
  %2563 = vmatpush.msra.mxu0 %v2514
  %2564 = vmatpush.msra.mxu0 %v2513
  %2565 = vmatpush.msra.mxu0 %v2512
  %2566 = vmatmul.f32.gmra.mxu0 %v1962
  %v2567 = vpop.f32.mrf.mxu0
  %v2568 = vadd.f32 %v2539, %v2567
  %2569 = vmatmul.f32.gmra.mxu0 %v1965
  %v2570 = vpop.f32.mrf.mxu0
  %v2571 = vadd.f32 %v2542, %v2570
  %2572 = vmatmul.f32.gmra.mxu0 %v1968
  %v2573 = vpop.f32.mrf.mxu0
  %v2574 = vadd.f32 %v2545, %v2573
  %2575 = vmatmul.f32.gmra.mxu0 %v1971
  %v2576 = vpop.f32.mrf.mxu0
  %v2577 = vadd.f32 %v2548, %v2576
  %2578 = vdwg.mxu0
  %s2579 = scalar_lea.vmem %s9, 128
  %v2580 = vld [vmem:[%s2579] sm:$0xff]
  %v2581 = vld [vmem:[%s2579 + $0x8] sm:$0xff]
  %v2582 = vld [vmem:[%s2579 + $0x10] sm:$0xff]
  %v2583 = vld [vmem:[%s2579 + $0x18] sm:$0xff]
  %v2585 = vsel %vm1919, %v2580, 0
  %v2588 = vsel %vm1919, %v2581, 0
  %v2591 = vsel %vm1919, %v2582, 0
  %v2594 = vsel %vm1919, %v2583, 0
  %2596 = vmatpush.msra.mxu0 0.0
  %2597 = vmatpush.msra.mxu0 0.0
  %2598 = vmatpush.msra.mxu0 0.0
  %2599 = vmatpush.msra.mxu0 0.0
  %2600 = vmatpush.msra.mxu0 0.0
  %2601 = vmatpush.msra.mxu0 0.0
  %2602 = vmatpush.msra.mxu0 0.0
  %2603 = vmatpush.msra.mxu0 0.0
  %2604 = vmatpush.msra.mxu0 0.0
  %2605 = vmatpush.msra.mxu0 0.0
  %2606 = vmatpush.msra.mxu0 0.0
  %2607 = vmatpush.msra.mxu0 0.0
  %2608 = vmatpush.msra.mxu0 %v2577
  %2609 = vmatpush.msra.mxu0 %v2574
  %2610 = vmatpush.msra.mxu0 %v2571
  %2611 = vmatpush.msra.mxu0 %v2568
  %2612 = vmatmul.f32.gmra.mxu0 %v2585
  %v2613 = vpop.f32.mrf.mxu0
  %v2614 = vadd.f32 0.0, %v2613
  %2615 = vmatmul.f32.gmra.mxu0 %v2588
  %v2616 = vpop.f32.mrf.mxu0
  %v2617 = vadd.f32 0.0, %v2616
  %2618 = vmatmul.f32.gmra.mxu0 %v2591
  %v2619 = vpop.f32.mrf.mxu0
  %v2620 = vadd.f32 0.0, %v2619
  %2621 = vmatmul.f32.gmra.mxu0 %v2594
  %v2622 = vpop.f32.mrf.mxu0
  %v2623 = vadd.f32 0.0, %v2622
  %2624 = vdwg.mxu0
  %v2625 = vadd.f32 %v2507, %v2614
  %v2626 = vadd.f32 %v2508, %v2617
  %v2627 = vadd.f32 %v2509, %v2620
  %v2628 = vadd.f32 %v2510, %v2623
  %s2629 = scalar_lea.vmem %s10, 160
  %v2630 = vld [vmem:[%s2629] sm:$0xff]
  %v2631 = vld [vmem:[%s2629 + $0x8] sm:$0xff]
  %v2632 = vld [vmem:[%s2629 + $0x10] sm:$0xff]
  %v2633 = vld [vmem:[%s2629 + $0x18] sm:$0xff]
  %s2634 = scalar_lea.vmem %s11, 160
  %v2635 = vld [vmem:[%s2634] sm:$0xff]
  %v2636 = vld [vmem:[%s2634 + $0x8] sm:$0xff]
  %v2637 = vld [vmem:[%s2634 + $0x10] sm:$0xff]
  %v2638 = vld [vmem:[%s2634 + $0x18] sm:$0xff]
  %2639 = vmatpush.msra.mxu0 0.0
  %2640 = vmatpush.msra.mxu0 0.0
  %2641 = vmatpush.msra.mxu0 0.0
  %2642 = vmatpush.msra.mxu0 0.0
  %2643 = vmatpush.msra.mxu0 0.0
  %2644 = vmatpush.msra.mxu0 0.0
  %2645 = vmatpush.msra.mxu0 0.0
  %2646 = vmatpush.msra.mxu0 0.0
  %2647 = vmatpush.msra.mxu0 0.0
  %2648 = vmatpush.msra.mxu0 0.0
  %2649 = vmatpush.msra.mxu0 0.0
  %2650 = vmatpush.msra.mxu0 0.0
  %2651 = vmatpush.msra.mxu0 %v2638
  %2652 = vmatpush.msra.mxu0 %v2637
  %2653 = vmatpush.msra.mxu0 %v2636
  %2654 = vmatpush.msra.mxu0 %v2635
  %2655 = vmatmul.f32.gmra.mxu0 %v2047
  %v2656 = vpop.f32.mrf.mxu0
  %v2657 = vadd.f32 0.0, %v2656
  %2658 = vmatmul.f32.gmra.mxu0 %v2050
  %v2659 = vpop.f32.mrf.mxu0
  %v2660 = vadd.f32 0.0, %v2659
  %2661 = vmatmul.f32.gmra.mxu0 %v2053
  %v2662 = vpop.f32.mrf.mxu0
  %v2663 = vadd.f32 0.0, %v2662
  %2664 = vmatmul.f32.gmra.mxu0 %v2056
  %v2665 = vpop.f32.mrf.mxu0
  %v2666 = vadd.f32 0.0, %v2665
  %2667 = vdwg.mxu0
  %2668 = vmatpush.msra.mxu0 0.0
  %2669 = vmatpush.msra.mxu0 0.0
  %2670 = vmatpush.msra.mxu0 0.0
  %2671 = vmatpush.msra.mxu0 0.0
  %2672 = vmatpush.msra.mxu0 0.0
  %2673 = vmatpush.msra.mxu0 0.0
  %2674 = vmatpush.msra.mxu0 0.0
  %2675 = vmatpush.msra.mxu0 0.0
  %2676 = vmatpush.msra.mxu0 0.0
  %2677 = vmatpush.msra.mxu0 0.0
  %2678 = vmatpush.msra.mxu0 0.0
  %2679 = vmatpush.msra.mxu0 0.0
  %2680 = vmatpush.msra.mxu0 %v2633
  %2681 = vmatpush.msra.mxu0 %v2632
  %2682 = vmatpush.msra.mxu0 %v2631
  %2683 = vmatpush.msra.mxu0 %v2630
  %2684 = vmatmul.f32.gmra.mxu0 %v1962
  %v2685 = vpop.f32.mrf.mxu0
  %v2686 = vadd.f32 %v2657, %v2685
  %2687 = vmatmul.f32.gmra.mxu0 %v1965
  %v2688 = vpop.f32.mrf.mxu0
  %v2689 = vadd.f32 %v2660, %v2688
  %2690 = vmatmul.f32.gmra.mxu0 %v1968
  %v2691 = vpop.f32.mrf.mxu0
  %v2692 = vadd.f32 %v2663, %v2691
  %2693 = vmatmul.f32.gmra.mxu0 %v1971
  %v2694 = vpop.f32.mrf.mxu0
  %v2695 = vadd.f32 %v2666, %v2694
  %2696 = vdwg.mxu0
  %s2697 = scalar_lea.vmem %s9, 160
  %v2698 = vld [vmem:[%s2697] sm:$0xff]
  %v2699 = vld [vmem:[%s2697 + $0x8] sm:$0xff]
  %v2700 = vld [vmem:[%s2697 + $0x10] sm:$0xff]
  %v2701 = vld [vmem:[%s2697 + $0x18] sm:$0xff]
  %v2703 = vsel %vm1919, %v2698, 0
  %v2706 = vsel %vm1919, %v2699, 0
  %v2709 = vsel %vm1919, %v2700, 0
  %v2712 = vsel %vm1919, %v2701, 0
  %2714 = vmatpush.msra.mxu0 0.0
  %2715 = vmatpush.msra.mxu0 0.0
  %2716 = vmatpush.msra.mxu0 0.0
  %2717 = vmatpush.msra.mxu0 0.0
  %2718 = vmatpush.msra.mxu0 0.0
  %2719 = vmatpush.msra.mxu0 0.0
  %2720 = vmatpush.msra.mxu0 0.0
  %2721 = vmatpush.msra.mxu0 0.0
  %2722 = vmatpush.msra.mxu0 0.0
  %2723 = vmatpush.msra.mxu0 0.0
  %2724 = vmatpush.msra.mxu0 0.0
  %2725 = vmatpush.msra.mxu0 0.0
  %2726 = vmatpush.msra.mxu0 %v2695
  %2727 = vmatpush.msra.mxu0 %v2692
  %2728 = vmatpush.msra.mxu0 %v2689
  %2729 = vmatpush.msra.mxu0 %v2686
  %2730 = vmatmul.f32.gmra.mxu0 %v2703
  %v2731 = vpop.f32.mrf.mxu0
  %v2732 = vadd.f32 0.0, %v2731
  %2733 = vmatmul.f32.gmra.mxu0 %v2706
  %v2734 = vpop.f32.mrf.mxu0
  %v2735 = vadd.f32 0.0, %v2734
  %2736 = vmatmul.f32.gmra.mxu0 %v2709
  %v2737 = vpop.f32.mrf.mxu0
  %v2738 = vadd.f32 0.0, %v2737
  %2739 = vmatmul.f32.gmra.mxu0 %v2712
  %v2740 = vpop.f32.mrf.mxu0
  %v2741 = vadd.f32 0.0, %v2740
  %2742 = vdwg.mxu0
  %v2743 = vadd.f32 %v2625, %v2732
  %v2744 = vadd.f32 %v2626, %v2735
  %v2745 = vadd.f32 %v2627, %v2738
  %v2746 = vadd.f32 %v2628, %v2741
  %s2747 = scalar_lea.vmem %s10, 192
  %v2748 = vld [vmem:[%s2747] sm:$0xff]
  %v2749 = vld [vmem:[%s2747 + $0x8] sm:$0xff]
  %v2750 = vld [vmem:[%s2747 + $0x10] sm:$0xff]
  %v2751 = vld [vmem:[%s2747 + $0x18] sm:$0xff]
  %s2752 = scalar_lea.vmem %s11, 192
  %v2753 = vld [vmem:[%s2752] sm:$0xff]
  %v2754 = vld [vmem:[%s2752 + $0x8] sm:$0xff]
  %v2755 = vld [vmem:[%s2752 + $0x10] sm:$0xff]
  %v2756 = vld [vmem:[%s2752 + $0x18] sm:$0xff]
  %2757 = vmatpush.msra.mxu0 0.0
  %2758 = vmatpush.msra.mxu0 0.0
  %2759 = vmatpush.msra.mxu0 0.0
  %2760 = vmatpush.msra.mxu0 0.0
  %2761 = vmatpush.msra.mxu0 0.0
  %2762 = vmatpush.msra.mxu0 0.0
  %2763 = vmatpush.msra.mxu0 0.0
  %2764 = vmatpush.msra.mxu0 0.0
  %2765 = vmatpush.msra.mxu0 0.0
  %2766 = vmatpush.msra.mxu0 0.0
  %2767 = vmatpush.msra.mxu0 0.0
  %2768 = vmatpush.msra.mxu0 0.0
  %2769 = vmatpush.msra.mxu0 %v2756
  %2770 = vmatpush.msra.mxu0 %v2755
  %2771 = vmatpush.msra.mxu0 %v2754
  %2772 = vmatpush.msra.mxu0 %v2753
  %2773 = vmatmul.f32.gmra.mxu0 %v2047
  %v2774 = vpop.f32.mrf.mxu0
  %v2775 = vadd.f32 0.0, %v2774
  %2776 = vmatmul.f32.gmra.mxu0 %v2050
  %v2777 = vpop.f32.mrf.mxu0
  %v2778 = vadd.f32 0.0, %v2777
  %2779 = vmatmul.f32.gmra.mxu0 %v2053
  %v2780 = vpop.f32.mrf.mxu0
  %v2781 = vadd.f32 0.0, %v2780
  %2782 = vmatmul.f32.gmra.mxu0 %v2056
  %v2783 = vpop.f32.mrf.mxu0
  %v2784 = vadd.f32 0.0, %v2783
  %2785 = vdwg.mxu0
  %2786 = vmatpush.msra.mxu0 0.0
  %2787 = vmatpush.msra.mxu0 0.0
  %2788 = vmatpush.msra.mxu0 0.0
  %2789 = vmatpush.msra.mxu0 0.0
  %2790 = vmatpush.msra.mxu0 0.0
  %2791 = vmatpush.msra.mxu0 0.0
  %2792 = vmatpush.msra.mxu0 0.0
  %2793 = vmatpush.msra.mxu0 0.0
  %2794 = vmatpush.msra.mxu0 0.0
  %2795 = vmatpush.msra.mxu0 0.0
  %2796 = vmatpush.msra.mxu0 0.0
  %2797 = vmatpush.msra.mxu0 0.0
  %2798 = vmatpush.msra.mxu0 %v2751
  %2799 = vmatpush.msra.mxu0 %v2750
  %2800 = vmatpush.msra.mxu0 %v2749
  %2801 = vmatpush.msra.mxu0 %v2748
  %2802 = vmatmul.f32.gmra.mxu0 %v1962
  %v2803 = vpop.f32.mrf.mxu0
  %v2804 = vadd.f32 %v2775, %v2803
  %2805 = vmatmul.f32.gmra.mxu0 %v1965
  %v2806 = vpop.f32.mrf.mxu0
  %v2807 = vadd.f32 %v2778, %v2806
  %2808 = vmatmul.f32.gmra.mxu0 %v1968
  %v2809 = vpop.f32.mrf.mxu0
  %v2810 = vadd.f32 %v2781, %v2809
  %2811 = vmatmul.f32.gmra.mxu0 %v1971
  %v2812 = vpop.f32.mrf.mxu0
  %v2813 = vadd.f32 %v2784, %v2812
  %2814 = vdwg.mxu0
  %s2815 = scalar_lea.vmem %s9, 192
  %v2816 = vld [vmem:[%s2815] sm:$0xff]
  %v2817 = vld [vmem:[%s2815 + $0x8] sm:$0xff]
  %v2818 = vld [vmem:[%s2815 + $0x10] sm:$0xff]
  %v2819 = vld [vmem:[%s2815 + $0x18] sm:$0xff]
  %v2821 = vsel %vm1919, %v2816, 0
  %v2824 = vsel %vm1919, %v2817, 0
  %v2827 = vsel %vm1919, %v2818, 0
  %v2830 = vsel %vm1919, %v2819, 0
  %2832 = vmatpush.msra.mxu0 0.0
  %2833 = vmatpush.msra.mxu0 0.0
  %2834 = vmatpush.msra.mxu0 0.0
  %2835 = vmatpush.msra.mxu0 0.0
  %2836 = vmatpush.msra.mxu0 0.0
  %2837 = vmatpush.msra.mxu0 0.0
  %2838 = vmatpush.msra.mxu0 0.0
  %2839 = vmatpush.msra.mxu0 0.0
  %2840 = vmatpush.msra.mxu0 0.0
  %2841 = vmatpush.msra.mxu0 0.0
  %2842 = vmatpush.msra.mxu0 0.0
  %2843 = vmatpush.msra.mxu0 0.0
  %2844 = vmatpush.msra.mxu0 %v2813
  %2845 = vmatpush.msra.mxu0 %v2810
  %2846 = vmatpush.msra.mxu0 %v2807
  %2847 = vmatpush.msra.mxu0 %v2804
  %2848 = vmatmul.f32.gmra.mxu0 %v2821
  %v2849 = vpop.f32.mrf.mxu0
  %v2850 = vadd.f32 0.0, %v2849
  %2851 = vmatmul.f32.gmra.mxu0 %v2824
  %v2852 = vpop.f32.mrf.mxu0
  %v2853 = vadd.f32 0.0, %v2852
  %2854 = vmatmul.f32.gmra.mxu0 %v2827
  %v2855 = vpop.f32.mrf.mxu0
  %v2856 = vadd.f32 0.0, %v2855
  %2857 = vmatmul.f32.gmra.mxu0 %v2830
  %v2858 = vpop.f32.mrf.mxu0
  %v2859 = vadd.f32 0.0, %v2858
  %2860 = vdwg.mxu0
  %v2861 = vadd.f32 %v2743, %v2850
  %v2862 = vadd.f32 %v2744, %v2853
  %v2863 = vadd.f32 %v2745, %v2856
  %v2864 = vadd.f32 %v2746, %v2859
  %s2865 = scalar_lea.vmem %s10, 224
  %v2866 = vld [vmem:[%s2865] sm:$0xff]
  %v2867 = vld [vmem:[%s2865 + $0x8] sm:$0xff]
  %v2868 = vld [vmem:[%s2865 + $0x10] sm:$0xff]
  %v2869 = vld [vmem:[%s2865 + $0x18] sm:$0xff]
  %s2870 = scalar_lea.vmem %s11, 224
  %v2871 = vld [vmem:[%s2870] sm:$0xff]
  %v2872 = vld [vmem:[%s2870 + $0x8] sm:$0xff]
  %v2873 = vld [vmem:[%s2870 + $0x10] sm:$0xff]
  %v2874 = vld [vmem:[%s2870 + $0x18] sm:$0xff]
  %2875 = vmatpush.msra.mxu0 0.0
  %2876 = vmatpush.msra.mxu0 0.0
  %2877 = vmatpush.msra.mxu0 0.0
  %2878 = vmatpush.msra.mxu0 0.0
  %2879 = vmatpush.msra.mxu0 0.0
  %2880 = vmatpush.msra.mxu0 0.0
  %2881 = vmatpush.msra.mxu0 0.0
  %2882 = vmatpush.msra.mxu0 0.0
  %2883 = vmatpush.msra.mxu0 0.0
  %2884 = vmatpush.msra.mxu0 0.0
  %2885 = vmatpush.msra.mxu0 0.0
  %2886 = vmatpush.msra.mxu0 0.0
  %2887 = vmatpush.msra.mxu0 %v2874
  %2888 = vmatpush.msra.mxu0 %v2873
  %2889 = vmatpush.msra.mxu0 %v2872
  %2890 = vmatpush.msra.mxu0 %v2871
  %2891 = vmatmul.f32.gmra.mxu0 %v2047
  %v2892 = vpop.f32.mrf.mxu0
  %v2893 = vadd.f32 0.0, %v2892
  %2894 = vmatmul.f32.gmra.mxu0 %v2050
  %v2895 = vpop.f32.mrf.mxu0
  %v2896 = vadd.f32 0.0, %v2895
  %2897 = vmatmul.f32.gmra.mxu0 %v2053
  %v2898 = vpop.f32.mrf.mxu0
  %v2899 = vadd.f32 0.0, %v2898
  %2900 = vmatmul.f32.gmra.mxu0 %v2056
  %v2901 = vpop.f32.mrf.mxu0
  %v2902 = vadd.f32 0.0, %v2901
  %2903 = vdwg.mxu0
  %2904 = vmatpush.msra.mxu0 0.0
  %2905 = vmatpush.msra.mxu0 0.0
  %2906 = vmatpush.msra.mxu0 0.0
  %2907 = vmatpush.msra.mxu0 0.0
  %2908 = vmatpush.msra.mxu0 0.0
  %2909 = vmatpush.msra.mxu0 0.0
  %2910 = vmatpush.msra.mxu0 0.0
  %2911 = vmatpush.msra.mxu0 0.0
  %2912 = vmatpush.msra.mxu0 0.0
  %2913 = vmatpush.msra.mxu0 0.0
  %2914 = vmatpush.msra.mxu0 0.0
  %2915 = vmatpush.msra.mxu0 0.0
  %2916 = vmatpush.msra.mxu0 %v2869
  %2917 = vmatpush.msra.mxu0 %v2868
  %2918 = vmatpush.msra.mxu0 %v2867
  %2919 = vmatpush.msra.mxu0 %v2866
  %2920 = vmatmul.f32.gmra.mxu0 %v1962
  %v2921 = vpop.f32.mrf.mxu0
  %v2922 = vadd.f32 %v2893, %v2921
  %2923 = vmatmul.f32.gmra.mxu0 %v1965
  %v2924 = vpop.f32.mrf.mxu0
  %v2925 = vadd.f32 %v2896, %v2924
  %2926 = vmatmul.f32.gmra.mxu0 %v1968
  %v2927 = vpop.f32.mrf.mxu0
  %v2928 = vadd.f32 %v2899, %v2927
  %2929 = vmatmul.f32.gmra.mxu0 %v1971
  %v2930 = vpop.f32.mrf.mxu0
  %v2931 = vadd.f32 %v2902, %v2930
  %2932 = vdwg.mxu0
  %s2933 = scalar_lea.vmem %s9, 224
  %v2934 = vld [vmem:[%s2933] sm:$0xff]
  %v2935 = vld [vmem:[%s2933 + $0x8] sm:$0xff]
  %v2936 = vld [vmem:[%s2933 + $0x10] sm:$0xff]
  %v2937 = vld [vmem:[%s2933 + $0x18] sm:$0xff]
  %v2939 = vsel %vm1919, %v2934, 0
  %v2942 = vsel %vm1919, %v2935, 0
  %v2945 = vsel %vm1919, %v2936, 0
  %v2948 = vsel %vm1919, %v2937, 0
  %2950 = vmatpush.msra.mxu0 0.0
  %2951 = vmatpush.msra.mxu0 0.0
  %2952 = vmatpush.msra.mxu0 0.0
  %2953 = vmatpush.msra.mxu0 0.0
  %2954 = vmatpush.msra.mxu0 0.0
  %2955 = vmatpush.msra.mxu0 0.0
  %2956 = vmatpush.msra.mxu0 0.0
  %2957 = vmatpush.msra.mxu0 0.0
  %2958 = vmatpush.msra.mxu0 0.0
  %2959 = vmatpush.msra.mxu0 0.0
  %2960 = vmatpush.msra.mxu0 0.0
  %2961 = vmatpush.msra.mxu0 0.0
  %2962 = vmatpush.msra.mxu0 %v2931
  %2963 = vmatpush.msra.mxu0 %v2928
  %2964 = vmatpush.msra.mxu0 %v2925
  %2965 = vmatpush.msra.mxu0 %v2922
  %2966 = vmatmul.f32.gmra.mxu0 %v2939
  %v2967 = vpop.f32.mrf.mxu0
  %v2968 = vadd.f32 0.0, %v2967
  %2969 = vmatmul.f32.gmra.mxu0 %v2942
  %v2970 = vpop.f32.mrf.mxu0
  %v2971 = vadd.f32 0.0, %v2970
  %2972 = vmatmul.f32.gmra.mxu0 %v2945
  %v2973 = vpop.f32.mrf.mxu0
  %v2974 = vadd.f32 0.0, %v2973
  %2975 = vmatmul.f32.gmra.mxu0 %v2948
  %v2976 = vpop.f32.mrf.mxu0
  %v2977 = vadd.f32 0.0, %v2976
  %2978 = vdwg.mxu0
  %v2979 = vadd.f32 %v2861, %v2968
  %v2980 = vadd.f32 %v2862, %v2971
  %v2981 = vadd.f32 %v2863, %v2974
  %v2982 = vadd.f32 %v2864, %v2977
  %s2983 = scalar_lea.vmem %s10, 256
  %v2984 = vld [vmem:[%s2983] sm:$0xff]
  %v2985 = vld [vmem:[%s2983 + $0x8] sm:$0xff]
  %v2986 = vld [vmem:[%s2983 + $0x10] sm:$0xff]
  %v2987 = vld [vmem:[%s2983 + $0x18] sm:$0xff]
  %s2988 = scalar_lea.vmem %s11, 256
  %v2989 = vld [vmem:[%s2988] sm:$0xff]
  %v2990 = vld [vmem:[%s2988 + $0x8] sm:$0xff]
  %v2991 = vld [vmem:[%s2988 + $0x10] sm:$0xff]
  %v2992 = vld [vmem:[%s2988 + $0x18] sm:$0xff]
  %2993 = vmatpush.msra.mxu0 0.0
  %2994 = vmatpush.msra.mxu0 0.0
  %2995 = vmatpush.msra.mxu0 0.0
  %2996 = vmatpush.msra.mxu0 0.0
  %2997 = vmatpush.msra.mxu0 0.0
  %2998 = vmatpush.msra.mxu0 0.0
  %2999 = vmatpush.msra.mxu0 0.0
  %3000 = vmatpush.msra.mxu0 0.0
  %3001 = vmatpush.msra.mxu0 0.0
  %3002 = vmatpush.msra.mxu0 0.0
  %3003 = vmatpush.msra.mxu0 0.0
  %3004 = vmatpush.msra.mxu0 0.0
  %3005 = vmatpush.msra.mxu0 %v2992
  %3006 = vmatpush.msra.mxu0 %v2991
  %3007 = vmatpush.msra.mxu0 %v2990
  %3008 = vmatpush.msra.mxu0 %v2989
  %3009 = vmatmul.f32.gmra.mxu0 %v2047
  %v3010 = vpop.f32.mrf.mxu0
  %v3011 = vadd.f32 0.0, %v3010
  %3012 = vmatmul.f32.gmra.mxu0 %v2050
  %v3013 = vpop.f32.mrf.mxu0
  %v3014 = vadd.f32 0.0, %v3013
  %3015 = vmatmul.f32.gmra.mxu0 %v2053
  %v3016 = vpop.f32.mrf.mxu0
  %v3017 = vadd.f32 0.0, %v3016
  %3018 = vmatmul.f32.gmra.mxu0 %v2056
  %v3019 = vpop.f32.mrf.mxu0
  %v3020 = vadd.f32 0.0, %v3019
  %3021 = vdwg.mxu0
  %3022 = vmatpush.msra.mxu0 0.0
  %3023 = vmatpush.msra.mxu0 0.0
  %3024 = vmatpush.msra.mxu0 0.0
  %3025 = vmatpush.msra.mxu0 0.0
  %3026 = vmatpush.msra.mxu0 0.0
  %3027 = vmatpush.msra.mxu0 0.0
  %3028 = vmatpush.msra.mxu0 0.0
  %3029 = vmatpush.msra.mxu0 0.0
  %3030 = vmatpush.msra.mxu0 0.0
  %3031 = vmatpush.msra.mxu0 0.0
  %3032 = vmatpush.msra.mxu0 0.0
  %3033 = vmatpush.msra.mxu0 0.0
  %3034 = vmatpush.msra.mxu0 %v2987
  %3035 = vmatpush.msra.mxu0 %v2986
  %3036 = vmatpush.msra.mxu0 %v2985
  %3037 = vmatpush.msra.mxu0 %v2984
  %3038 = vmatmul.f32.gmra.mxu0 %v1962
  %v3039 = vpop.f32.mrf.mxu0
  %v3040 = vadd.f32 %v3011, %v3039
  %3041 = vmatmul.f32.gmra.mxu0 %v1965
  %v3042 = vpop.f32.mrf.mxu0
  %v3043 = vadd.f32 %v3014, %v3042
  %3044 = vmatmul.f32.gmra.mxu0 %v1968
  %v3045 = vpop.f32.mrf.mxu0
  %v3046 = vadd.f32 %v3017, %v3045
  %3047 = vmatmul.f32.gmra.mxu0 %v1971
  %v3048 = vpop.f32.mrf.mxu0
  %v3049 = vadd.f32 %v3020, %v3048
  %3050 = vdwg.mxu0
  %s3051 = scalar_lea.vmem %s9, 256
  %v3052 = vld [vmem:[%s3051] sm:$0xff]
  %v3053 = vld [vmem:[%s3051 + $0x8] sm:$0xff]
  %v3054 = vld [vmem:[%s3051 + $0x10] sm:$0xff]
  %v3055 = vld [vmem:[%s3051 + $0x18] sm:$0xff]
  %v3057 = vsel %vm1919, %v3052, 0
  %v3060 = vsel %vm1919, %v3053, 0
  %v3063 = vsel %vm1919, %v3054, 0
  %v3066 = vsel %vm1919, %v3055, 0
  %3068 = vmatpush.msra.mxu0 0.0
  %3069 = vmatpush.msra.mxu0 0.0
  %3070 = vmatpush.msra.mxu0 0.0
  %3071 = vmatpush.msra.mxu0 0.0
  %3072 = vmatpush.msra.mxu0 0.0
  %3073 = vmatpush.msra.mxu0 0.0
  %3074 = vmatpush.msra.mxu0 0.0
  %3075 = vmatpush.msra.mxu0 0.0
  %3076 = vmatpush.msra.mxu0 0.0
  %3077 = vmatpush.msra.mxu0 0.0
  %3078 = vmatpush.msra.mxu0 0.0
  %3079 = vmatpush.msra.mxu0 0.0
  %3080 = vmatpush.msra.mxu0 %v3049
  %3081 = vmatpush.msra.mxu0 %v3046
  %3082 = vmatpush.msra.mxu0 %v3043
  %3083 = vmatpush.msra.mxu0 %v3040
  %3084 = vmatmul.f32.gmra.mxu0 %v3057
  %v3085 = vpop.f32.mrf.mxu0
  %v3086 = vadd.f32 0.0, %v3085
  %3087 = vmatmul.f32.gmra.mxu0 %v3060
  %v3088 = vpop.f32.mrf.mxu0
  %v3089 = vadd.f32 0.0, %v3088
  %3090 = vmatmul.f32.gmra.mxu0 %v3063
  %v3091 = vpop.f32.mrf.mxu0
  %v3092 = vadd.f32 0.0, %v3091
  %3093 = vmatmul.f32.gmra.mxu0 %v3066
  %v3094 = vpop.f32.mrf.mxu0
  %v3095 = vadd.f32 0.0, %v3094
  %3096 = vdwg.mxu0
  %v3097 = vadd.f32 %v2979, %v3086
  %v3098 = vadd.f32 %v2980, %v3089
  %v3099 = vadd.f32 %v2981, %v3092
  %v3100 = vadd.f32 %v2982, %v3095
  %v3101 = vld [vmem:[%s12] sm:$0x1]
  %v3103 = vperm.slane %v3101, 0
  %v3105 = vadd.f32 %v3097, %v3103
  %v3106 = vadd.f32 %v3098, %v3103
  %v3107 = vadd.f32 %v3099, %v3103
  %v3108 = vadd.f32 %v3100, %v3103
  %v3109 = vld [vmem:[%s13] sm:$0xff]
  %v3110 = vld [vmem:[%s13 + $0x8] sm:$0xff]
  %v3111 = vld [vmem:[%s13 + $0x10] sm:$0xff]
  %v3112 = vld [vmem:[%s13 + $0x18] sm:$0xff]
  %v3113 = vld [vmem:[%s13 + $0x20] sm:$0xff]
  %v3114 = vld [vmem:[%s13 + $0x28] sm:$0xff]
  %v3115 = vld [vmem:[%s13 + $0x30] sm:$0xff]
  %v3116 = vld [vmem:[%s13 + $0x38] sm:$0xff]
  %v3117 = vld [vmem:[%s13 + $0x40] sm:$0xff]
  %v3118 = vld [vmem:[%s13 + $0x48] sm:$0xff]
  %v3119 = vld [vmem:[%s13 + $0x50] sm:$0xff]
  %v3120 = vld [vmem:[%s13 + $0x58] sm:$0xff]
  %v3121 = vld [vmem:[%s13 + $0x60] sm:$0xff]
  %v3122 = vld [vmem:[%s13 + $0x68] sm:$0xff]
  %v3123 = vld [vmem:[%s13 + $0x70] sm:$0xff]
  %v3124 = vld [vmem:[%s13 + $0x78] sm:$0xff]
  %v3125 = vld [vmem:[%s13 + $0x80] sm:$0xff]
  %v3126 = vld [vmem:[%s13 + $0x88] sm:$0xff]
  %v3127 = vld [vmem:[%s13 + $0x90] sm:$0xff]
  %v3128 = vld [vmem:[%s13 + $0x98] sm:$0xff]
  %v3129 = vld [vmem:[%s13 + $0xa0] sm:$0xff]
  %v3130 = vld [vmem:[%s13 + $0xa8] sm:$0xff]
  %v3131 = vld [vmem:[%s13 + $0xb0] sm:$0xff]
  %v3132 = vld [vmem:[%s13 + $0xb8] sm:$0xff]
  %v3133 = vld [vmem:[%s13 + $0xc0] sm:$0xff]
  %v3134 = vld [vmem:[%s13 + $0xc8] sm:$0xff]
  %v3135 = vld [vmem:[%s13 + $0xd0] sm:$0xff]
  %v3136 = vld [vmem:[%s13 + $0xd8] sm:$0xff]
  %v3137 = vld [vmem:[%s13 + $0xe0] sm:$0xff]
  %v3138 = vld [vmem:[%s13 + $0xe8] sm:$0xff]
  %v3139 = vld [vmem:[%s13 + $0xf0] sm:$0xff]
  %v3140 = vld [vmem:[%s13 + $0xf8] sm:$0xff]
  %v3141 = vld [vmem:[%s13 + $0x100] sm:$0xff]
  %v3142 = vld [vmem:[%s13 + $0x108] sm:$0xff]
  %v3143 = vld [vmem:[%s13 + $0x110] sm:$0xff]
  %v3144 = vld [vmem:[%s13 + $0x118] sm:$0xff]
  %v3145 = vld [vmem:[%s13 + $0x120] sm:$0xff]
  %v3146 = vld [vmem:[%s13 + $0x128] sm:$0xff]
  %v3147 = vld [vmem:[%s13 + $0x130] sm:$0xff]
  %v3148 = vld [vmem:[%s13 + $0x138] sm:$0xff]
  %v3149 = vld [vmem:[%s13 + $0x140] sm:$0xff]
  %v3150 = vld [vmem:[%s13 + $0x148] sm:$0xff]
  %v3151 = vld [vmem:[%s13 + $0x150] sm:$0xff]
  %v3152 = vld [vmem:[%s13 + $0x158] sm:$0xff]
  %v3153 = vld [vmem:[%s13 + $0x160] sm:$0xff]
  %v3154 = vld [vmem:[%s13 + $0x168] sm:$0xff]
  %v3155 = vld [vmem:[%s13 + $0x170] sm:$0xff]
  %v3156 = vld [vmem:[%s13 + $0x178] sm:$0xff]
  %v3157 = vld [vmem:[%s13 + $0x180] sm:$0xff]
  %v3158 = vld [vmem:[%s13 + $0x188] sm:$0xff]
  %v3159 = vld [vmem:[%s13 + $0x190] sm:$0xff]
  %v3160 = vld [vmem:[%s13 + $0x198] sm:$0xff]
  %v3161 = vld [vmem:[%s13 + $0x1a0] sm:$0xff]
  %v3162 = vld [vmem:[%s13 + $0x1a8] sm:$0xff]
  %v3163 = vld [vmem:[%s13 + $0x1b0] sm:$0xff]
  %v3164 = vld [vmem:[%s13 + $0x1b8] sm:$0xff]
  %v3165 = vld [vmem:[%s13 + $0x1c0] sm:$0xff]
  %v3166 = vld [vmem:[%s13 + $0x1c8] sm:$0xff]
  %v3167 = vld [vmem:[%s13 + $0x1d0] sm:$0xff]
  %v3168 = vld [vmem:[%s13 + $0x1d8] sm:$0xff]
  %v3169 = vld [vmem:[%s13 + $0x1e0] sm:$0xff]
  %v3170 = vld [vmem:[%s13 + $0x1e8] sm:$0xff]
  %v3171 = vld [vmem:[%s13 + $0x1f0] sm:$0xff]
  %v3172 = vld [vmem:[%s13 + $0x1f8] sm:$0xff]
  %v3174 = vsel %vm1919, %v3109, 0
  %v3177 = vsel %vm1919, %v3110, 0
  %v3180 = vsel %vm1919, %v3111, 0
  %v3183 = vsel %vm1919, %v3112, 0
  %v3186 = vsel %vm1919, %v3113, 0
  %v3189 = vsel %vm1919, %v3114, 0
  %v3192 = vsel %vm1919, %v3115, 0
  %v3195 = vsel %vm1919, %v3116, 0
  %v3198 = vsel %vm1919, %v3117, 0
  %v3201 = vsel %vm1919, %v3118, 0
  %v3204 = vsel %vm1919, %v3119, 0
  %v3207 = vsel %vm1919, %v3120, 0
  %v3210 = vsel %vm1919, %v3121, 0
  %v3213 = vsel %vm1919, %v3122, 0
  %v3216 = vsel %vm1919, %v3123, 0
  %v3219 = vsel %vm1919, %v3124, 0
  %v3222 = vsel %vm1919, %v3125, 0
  %v3225 = vsel %vm1919, %v3126, 0
  %v3228 = vsel %vm1919, %v3127, 0
  %v3231 = vsel %vm1919, %v3128, 0
  %v3234 = vsel %vm1919, %v3129, 0
  %v3237 = vsel %vm1919, %v3130, 0
  %v3240 = vsel %vm1919, %v3131, 0
  %v3243 = vsel %vm1919, %v3132, 0
  %v3246 = vsel %vm1919, %v3133, 0
  %v3249 = vsel %vm1919, %v3134, 0
  %v3252 = vsel %vm1919, %v3135, 0
  %v3255 = vsel %vm1919, %v3136, 0
  %v3258 = vsel %vm1919, %v3137, 0
  %v3261 = vsel %vm1919, %v3138, 0
  %v3264 = vsel %vm1919, %v3139, 0
  %v3267 = vsel %vm1919, %v3140, 0
  %v3270 = vsel %vm1919, %v3141, 0
  %v3273 = vsel %vm1919, %v3142, 0
  %v3276 = vsel %vm1919, %v3143, 0
  %v3279 = vsel %vm1919, %v3144, 0
  %v3282 = vsel %vm1919, %v3145, 0
  %v3285 = vsel %vm1919, %v3146, 0
  %v3288 = vsel %vm1919, %v3147, 0
  %v3291 = vsel %vm1919, %v3148, 0
  %v3294 = vsel %vm1919, %v3149, 0
  %v3297 = vsel %vm1919, %v3150, 0
  %v3300 = vsel %vm1919, %v3151, 0
  %v3303 = vsel %vm1919, %v3152, 0
  %v3306 = vsel %vm1919, %v3153, 0
  %v3309 = vsel %vm1919, %v3154, 0
  %v3312 = vsel %vm1919, %v3155, 0
  %v3315 = vsel %vm1919, %v3156, 0
  %v3318 = vsel %vm1919, %v3157, 0
  %v3321 = vsel %vm1919, %v3158, 0
  %v3324 = vsel %vm1919, %v3159, 0
  %v3327 = vsel %vm1919, %v3160, 0
  %v3330 = vsel %vm1919, %v3161, 0
  %v3333 = vsel %vm1919, %v3162, 0
  %v3336 = vsel %vm1919, %v3163, 0
  %v3339 = vsel %vm1919, %v3164, 0
  %v3342 = vsel %vm1919, %v3165, 0
  %v3345 = vsel %vm1919, %v3166, 0
  %v3348 = vsel %vm1919, %v3167, 0
  %v3351 = vsel %vm1919, %v3168, 0
  %v3354 = vsel %vm1919, %v3169, 0
  %v3357 = vsel %vm1919, %v3170, 0
  %v3360 = vsel %vm1919, %v3171, 0
  %v3363 = vsel %vm1919, %v3172, 0
  %3365 = vmatpush.msra.mxu0 0.0
  %3366 = vmatpush.msra.mxu0 0.0
  %3367 = vmatpush.msra.mxu0 0.0
  %3368 = vmatpush.msra.mxu0 0.0
  %3369 = vmatpush.msra.mxu0 0.0
  %3370 = vmatpush.msra.mxu0 0.0
  %3371 = vmatpush.msra.mxu0 0.0
  %3372 = vmatpush.msra.mxu0 0.0
  %3373 = vmatpush.msra.mxu0 0.0
  %3374 = vmatpush.msra.mxu0 0.0
  %3375 = vmatpush.msra.mxu0 0.0
  %3376 = vmatpush.msra.mxu0 0.0
  %3377 = vmatpush.msra.mxu0 %v3108
  %3378 = vmatpush.msra.mxu0 %v3107
  %3379 = vmatpush.msra.mxu0 %v3106
  %3380 = vmatpush.msra.mxu0 %v3105
  %3381 = vmatmul.f32.gmra.mxu0 %v3174
  %v3382 = vpop.f32.mrf.mxu0
  %v3383 = vadd.f32 0.0, %v3382
  %3384 = vmatmul.f32.gmra.mxu0 %v3177
  %v3385 = vpop.f32.mrf.mxu0
  %v3386 = vadd.f32 0.0, %v3385
  %3387 = vmatmul.f32.gmra.mxu0 %v3180
  %v3388 = vpop.f32.mrf.mxu0
  %v3389 = vadd.f32 0.0, %v3388
  %3390 = vmatmul.f32.gmra.mxu0 %v3183
  %v3391 = vpop.f32.mrf.mxu0
  %v3392 = vadd.f32 0.0, %v3391
  %3393 = vmatmul.f32.gmra.mxu0 %v3186
  %v3394 = vpop.f32.mrf.mxu0
  %v3395 = vadd.f32 0.0, %v3394
  %3396 = vmatmul.f32.gmra.mxu0 %v3189
  %v3397 = vpop.f32.mrf.mxu0
  %v3398 = vadd.f32 0.0, %v3397
  %3399 = vmatmul.f32.gmra.mxu0 %v3192
  %v3400 = vpop.f32.mrf.mxu0
  %v3401 = vadd.f32 0.0, %v3400
  %3402 = vmatmul.f32.gmra.mxu0 %v3195
  %v3403 = vpop.f32.mrf.mxu0
  %v3404 = vadd.f32 0.0, %v3403
  %3405 = vmatmul.f32.gmra.mxu0 %v3198
  %v3406 = vpop.f32.mrf.mxu0
  %v3407 = vadd.f32 0.0, %v3406
  %3408 = vmatmul.f32.gmra.mxu0 %v3201
  %v3409 = vpop.f32.mrf.mxu0
  %v3410 = vadd.f32 0.0, %v3409
  %3411 = vmatmul.f32.gmra.mxu0 %v3204
  %v3412 = vpop.f32.mrf.mxu0
  %v3413 = vadd.f32 0.0, %v3412
  %3414 = vmatmul.f32.gmra.mxu0 %v3207
  %v3415 = vpop.f32.mrf.mxu0
  %v3416 = vadd.f32 0.0, %v3415
  %3417 = vmatmul.f32.gmra.mxu0 %v3210
  %v3418 = vpop.f32.mrf.mxu0
  %v3419 = vadd.f32 0.0, %v3418
  %3420 = vmatmul.f32.gmra.mxu0 %v3213
  %v3421 = vpop.f32.mrf.mxu0
  %v3422 = vadd.f32 0.0, %v3421
  %3423 = vmatmul.f32.gmra.mxu0 %v3216
  %v3424 = vpop.f32.mrf.mxu0
  %v3425 = vadd.f32 0.0, %v3424
  %3426 = vmatmul.f32.gmra.mxu0 %v3219
  %v3427 = vpop.f32.mrf.mxu0
  %v3428 = vadd.f32 0.0, %v3427
  %3429 = vmatmul.f32.gmra.mxu0 %v3222
  %v3430 = vpop.f32.mrf.mxu0
  %v3431 = vadd.f32 0.0, %v3430
  %3432 = vmatmul.f32.gmra.mxu0 %v3225
  %v3433 = vpop.f32.mrf.mxu0
  %v3434 = vadd.f32 0.0, %v3433
  %3435 = vmatmul.f32.gmra.mxu0 %v3228
  %v3436 = vpop.f32.mrf.mxu0
  %v3437 = vadd.f32 0.0, %v3436
  %3438 = vmatmul.f32.gmra.mxu0 %v3231
  %v3439 = vpop.f32.mrf.mxu0
  %v3440 = vadd.f32 0.0, %v3439
  %3441 = vmatmul.f32.gmra.mxu0 %v3234
  %v3442 = vpop.f32.mrf.mxu0
  %v3443 = vadd.f32 0.0, %v3442
  %3444 = vmatmul.f32.gmra.mxu0 %v3237
  %v3445 = vpop.f32.mrf.mxu0
  %v3446 = vadd.f32 0.0, %v3445
  %3447 = vmatmul.f32.gmra.mxu0 %v3240
  %v3448 = vpop.f32.mrf.mxu0
  %v3449 = vadd.f32 0.0, %v3448
  %3450 = vmatmul.f32.gmra.mxu0 %v3243
  %v3451 = vpop.f32.mrf.mxu0
  %v3452 = vadd.f32 0.0, %v3451
  %3453 = vmatmul.f32.gmra.mxu0 %v3246
  %v3454 = vpop.f32.mrf.mxu0
  %v3455 = vadd.f32 0.0, %v3454
  %3456 = vmatmul.f32.gmra.mxu0 %v3249
  %v3457 = vpop.f32.mrf.mxu0
  %v3458 = vadd.f32 0.0, %v3457
  %3459 = vmatmul.f32.gmra.mxu0 %v3252
  %v3460 = vpop.f32.mrf.mxu0
  %v3461 = vadd.f32 0.0, %v3460
  %3462 = vmatmul.f32.gmra.mxu0 %v3255
  %v3463 = vpop.f32.mrf.mxu0
  %v3464 = vadd.f32 0.0, %v3463
  %3465 = vmatmul.f32.gmra.mxu0 %v3258
  %v3466 = vpop.f32.mrf.mxu0
  %v3467 = vadd.f32 0.0, %v3466
  %3468 = vmatmul.f32.gmra.mxu0 %v3261
  %v3469 = vpop.f32.mrf.mxu0
  %v3470 = vadd.f32 0.0, %v3469
  %3471 = vmatmul.f32.gmra.mxu0 %v3264
  %v3472 = vpop.f32.mrf.mxu0
  %v3473 = vadd.f32 0.0, %v3472
  %3474 = vmatmul.f32.gmra.mxu0 %v3267
  %v3475 = vpop.f32.mrf.mxu0
  %v3476 = vadd.f32 0.0, %v3475
  %3477 = vmatmul.f32.gmra.mxu0 %v3270
  %v3478 = vpop.f32.mrf.mxu0
  %v3479 = vadd.f32 0.0, %v3478
  %3480 = vmatmul.f32.gmra.mxu0 %v3273
  %v3481 = vpop.f32.mrf.mxu0
  %v3482 = vadd.f32 0.0, %v3481
  %3483 = vmatmul.f32.gmra.mxu0 %v3276
  %v3484 = vpop.f32.mrf.mxu0
  %v3485 = vadd.f32 0.0, %v3484
  %3486 = vmatmul.f32.gmra.mxu0 %v3279
  %v3487 = vpop.f32.mrf.mxu0
  %v3488 = vadd.f32 0.0, %v3487
  %3489 = vmatmul.f32.gmra.mxu0 %v3282
  %v3490 = vpop.f32.mrf.mxu0
  %v3491 = vadd.f32 0.0, %v3490
  %3492 = vmatmul.f32.gmra.mxu0 %v3285
  %v3493 = vpop.f32.mrf.mxu0
  %v3494 = vadd.f32 0.0, %v3493
  %3495 = vmatmul.f32.gmra.mxu0 %v3288
  %v3496 = vpop.f32.mrf.mxu0
  %v3497 = vadd.f32 0.0, %v3496
  %3498 = vmatmul.f32.gmra.mxu0 %v3291
  %v3499 = vpop.f32.mrf.mxu0
  %v3500 = vadd.f32 0.0, %v3499
  %3501 = vmatmul.f32.gmra.mxu0 %v3294
  %v3502 = vpop.f32.mrf.mxu0
  %v3503 = vadd.f32 0.0, %v3502
  %3504 = vmatmul.f32.gmra.mxu0 %v3297
  %v3505 = vpop.f32.mrf.mxu0
  %v3506 = vadd.f32 0.0, %v3505
  %3507 = vmatmul.f32.gmra.mxu0 %v3300
  %v3508 = vpop.f32.mrf.mxu0
  %v3509 = vadd.f32 0.0, %v3508
  %3510 = vmatmul.f32.gmra.mxu0 %v3303
  %v3511 = vpop.f32.mrf.mxu0
  %v3512 = vadd.f32 0.0, %v3511
  %3513 = vmatmul.f32.gmra.mxu0 %v3306
  %v3514 = vpop.f32.mrf.mxu0
  %v3515 = vadd.f32 0.0, %v3514
  %3516 = vmatmul.f32.gmra.mxu0 %v3309
  %v3517 = vpop.f32.mrf.mxu0
  %v3518 = vadd.f32 0.0, %v3517
  %3519 = vmatmul.f32.gmra.mxu0 %v3312
  %v3520 = vpop.f32.mrf.mxu0
  %v3521 = vadd.f32 0.0, %v3520
  %3522 = vmatmul.f32.gmra.mxu0 %v3315
  %v3523 = vpop.f32.mrf.mxu0
  %v3524 = vadd.f32 0.0, %v3523
  %3525 = vmatmul.f32.gmra.mxu0 %v3318
  %v3526 = vpop.f32.mrf.mxu0
  %v3527 = vadd.f32 0.0, %v3526
  %3528 = vmatmul.f32.gmra.mxu0 %v3321
  %v3529 = vpop.f32.mrf.mxu0
  %v3530 = vadd.f32 0.0, %v3529
  %3531 = vmatmul.f32.gmra.mxu0 %v3324
  %v3532 = vpop.f32.mrf.mxu0
  %v3533 = vadd.f32 0.0, %v3532
  %3534 = vmatmul.f32.gmra.mxu0 %v3327
  %v3535 = vpop.f32.mrf.mxu0
  %v3536 = vadd.f32 0.0, %v3535
  %3537 = vmatmul.f32.gmra.mxu0 %v3330
  %v3538 = vpop.f32.mrf.mxu0
  %v3539 = vadd.f32 0.0, %v3538
  %3540 = vmatmul.f32.gmra.mxu0 %v3333
  %v3541 = vpop.f32.mrf.mxu0
  %v3542 = vadd.f32 0.0, %v3541
  %3543 = vmatmul.f32.gmra.mxu0 %v3336
  %v3544 = vpop.f32.mrf.mxu0
  %v3545 = vadd.f32 0.0, %v3544
  %3546 = vmatmul.f32.gmra.mxu0 %v3339
  %v3547 = vpop.f32.mrf.mxu0
  %v3548 = vadd.f32 0.0, %v3547
  %3549 = vmatmul.f32.gmra.mxu0 %v3342
  %v3550 = vpop.f32.mrf.mxu0
  %v3551 = vadd.f32 0.0, %v3550
  %3552 = vmatmul.f32.gmra.mxu0 %v3345
  %v3553 = vpop.f32.mrf.mxu0
  %v3554 = vadd.f32 0.0, %v3553
  %3555 = vmatmul.f32.gmra.mxu0 %v3348
  %v3556 = vpop.f32.mrf.mxu0
  %v3557 = vadd.f32 0.0, %v3556
  %3558 = vmatmul.f32.gmra.mxu0 %v3351
  %v3559 = vpop.f32.mrf.mxu0
  %v3560 = vadd.f32 0.0, %v3559
  %3561 = vmatmul.f32.gmra.mxu0 %v3354
  %v3562 = vpop.f32.mrf.mxu0
  %v3563 = vadd.f32 0.0, %v3562
  %3564 = vmatmul.f32.gmra.mxu0 %v3357
  %v3565 = vpop.f32.mrf.mxu0
  %v3566 = vadd.f32 0.0, %v3565
  %3567 = vmatmul.f32.gmra.mxu0 %v3360
  %v3568 = vpop.f32.mrf.mxu0
  %v3569 = vadd.f32 0.0, %v3568
  %3570 = vmatmul.f32.gmra.mxu0 %v3363
  %v3571 = vpop.f32.mrf.mxu0
  %v3572 = vadd.f32 0.0, %v3571
  %3573 = vdwg.mxu0
  %3574 = vst [vmem:[%s14] sm:$0xff] %v3383
  %3575 = vst [vmem:[%s14 + $0x8] sm:$0xff] %v3386
  %3576 = vst [vmem:[%s14 + $0x10] sm:$0xff] %v3389
  %3577 = vst [vmem:[%s14 + $0x18] sm:$0xff] %v3392
  %3578 = vst [vmem:[%s14 + $0x20] sm:$0xff] %v3395
  %3579 = vst [vmem:[%s14 + $0x28] sm:$0xff] %v3398
  %3580 = vst [vmem:[%s14 + $0x30] sm:$0xff] %v3401
  %3581 = vst [vmem:[%s14 + $0x38] sm:$0xff] %v3404
  %3582 = vst [vmem:[%s14 + $0x40] sm:$0xff] %v3407
  %3583 = vst [vmem:[%s14 + $0x48] sm:$0xff] %v3410
  %3584 = vst [vmem:[%s14 + $0x50] sm:$0xff] %v3413
  %3585 = vst [vmem:[%s14 + $0x58] sm:$0xff] %v3416
  %3586 = vst [vmem:[%s14 + $0x60] sm:$0xff] %v3419
  %3587 = vst [vmem:[%s14 + $0x68] sm:$0xff] %v3422
  %3588 = vst [vmem:[%s14 + $0x70] sm:$0xff] %v3425
  %3589 = vst [vmem:[%s14 + $0x78] sm:$0xff] %v3428
  %3590 = vst [vmem:[%s14 + $0x80] sm:$0xff] %v3431
  %3591 = vst [vmem:[%s14 + $0x88] sm:$0xff] %v3434
  %3592 = vst [vmem:[%s14 + $0x90] sm:$0xff] %v3437
  %3593 = vst [vmem:[%s14 + $0x98] sm:$0xff] %v3440
  %3594 = vst [vmem:[%s14 + $0xa0] sm:$0xff] %v3443
  %3595 = vst [vmem:[%s14 + $0xa8] sm:$0xff] %v3446
  %3596 = vst [vmem:[%s14 + $0xb0] sm:$0xff] %v3449
  %3597 = vst [vmem:[%s14 + $0xb8] sm:$0xff] %v3452
  %3598 = vst [vmem:[%s14 + $0xc0] sm:$0xff] %v3455
  %3599 = vst [vmem:[%s14 + $0xc8] sm:$0xff] %v3458
  %3600 = vst [vmem:[%s14 + $0xd0] sm:$0xff] %v3461
  %3601 = vst [vmem:[%s14 + $0xd8] sm:$0xff] %v3464
  %3602 = vst [vmem:[%s14 + $0xe0] sm:$0xff] %v3467
  %3603 = vst [vmem:[%s14 + $0xe8] sm:$0xff] %v3470
  %3604 = vst [vmem:[%s14 + $0xf0] sm:$0xff] %v3473
  %3605 = vst [vmem:[%s14 + $0xf8] sm:$0xff] %v3476
  %3606 = vst [vmem:[%s14 + $0x100] sm:$0xff] %v3479
  %3607 = vst [vmem:[%s14 + $0x108] sm:$0xff] %v3482
  %3608 = vst [vmem:[%s14 + $0x110] sm:$0xff] %v3485
  %3609 = vst [vmem:[%s14 + $0x118] sm:$0xff] %v3488
  %3610 = vst [vmem:[%s14 + $0x120] sm:$0xff] %v3491
  %3611 = vst [vmem:[%s14 + $0x128] sm:$0xff] %v3494
  %3612 = vst [vmem:[%s14 + $0x130] sm:$0xff] %v3497
  %3613 = vst [vmem:[%s14 + $0x138] sm:$0xff] %v3500
  %3614 = vst [vmem:[%s14 + $0x140] sm:$0xff] %v3503
  %3615 = vst [vmem:[%s14 + $0x148] sm:$0xff] %v3506
  %3616 = vst [vmem:[%s14 + $0x150] sm:$0xff] %v3509
  %3617 = vst [vmem:[%s14 + $0x158] sm:$0xff] %v3512
  %3618 = vst [vmem:[%s14 + $0x160] sm:$0xff] %v3515
  %3619 = vst [vmem:[%s14 + $0x168] sm:$0xff] %v3518
  %3620 = vst [vmem:[%s14 + $0x170] sm:$0xff] %v3521
  %3621 = vst [vmem:[%s14 + $0x178] sm:$0xff] %v3524
  %3622 = vst [vmem:[%s14 + $0x180] sm:$0xff] %v3527
  %3623 = vst [vmem:[%s14 + $0x188] sm:$0xff] %v3530
  %3624 = vst [vmem:[%s14 + $0x190] sm:$0xff] %v3533
  %3625 = vst [vmem:[%s14 + $0x198] sm:$0xff] %v3536
  %3626 = vst [vmem:[%s14 + $0x1a0] sm:$0xff] %v3539
  %3627 = vst [vmem:[%s14 + $0x1a8] sm:$0xff] %v3542
  %3628 = vst [vmem:[%s14 + $0x1b0] sm:$0xff] %v3545
  %3629 = vst [vmem:[%s14 + $0x1b8] sm:$0xff] %v3548
  %3630 = vst [vmem:[%s14 + $0x1c0] sm:$0xff] %v3551
  %3631 = vst [vmem:[%s14 + $0x1c8] sm:$0xff] %v3554
  %3632 = vst [vmem:[%s14 + $0x1d0] sm:$0xff] %v3557
  %3633 = vst [vmem:[%s14 + $0x1d8] sm:$0xff] %v3560
  %3634 = vst [vmem:[%s14 + $0x1e0] sm:$0xff] %v3563
  %3635 = vst [vmem:[%s14 + $0x1e8] sm:$0xff] %v3566
  %3636 = vst [vmem:[%s14 + $0x1f0] sm:$0xff] %v3569
  %3637 = vst [vmem:[%s14 + $0x1f8] sm:$0xff] %v3572
  // Predicated region
  $region58: #{motion_sparse_forward.1} parent=0 // pred_check
    _
  $region59: #{motion_sparse_forward.1} parent=0 // pred_check_branch
    %3639 = sbr.rel (0) target = $region61
  $region60: #{motion_sparse_forward.1} parent=0 // pred_region
    _
  $region61: #{motion_sparse_forward.1} parent=0 // pred_fallthru
    _
  // Predicated region
  $region62: #{motion_sparse_forward.1} parent=0 // pred_check
    _
  $region63: #{motion_sparse_forward.1} parent=0 // pred_check_branch
    %3641 = sbr.rel (0) target = $region65
  $region64: #{motion_sparse_forward.1} parent=0 // pred_region
    _
  $region65: #{motion_sparse_forward.1} parent=0 // pred_fallthru
    _

</llo_original>
